<compile_context>
chip_gen: v7x
topology: tpu7x:2x2x1
jax: 0.10.0
libtpu: 0.0.40
codegen_flags: <defaults>
</compile_context>

<pallas_src>
import jax
import jax.numpy as jnp
from jax.experimental import pallas as pl
from jax.experimental.pallas import tpu as pltpu


LADDER_DIM = 128
DIM_FFN = 512
OUT_PAD = 128     # lane-dense padded output width
BOX_DIM = 4
CLS_DIM = 2
MAX_TILE_N = 512  # rows per grid step (review: 256-1024; weights stay resident)


# ----------------------------------------------------------------------------
# Fused Pallas kernel: reg_proj + fused-MLP heads, one dispatch, row-tiled
# ----------------------------------------------------------------------------
def _fused_head_kernel(x_ref,
                       wrp_ref, brp_ref,
                       w1_ref, b1_ref,
                       bw2_ref, bb2_ref, cw2_ref, cb2_ref,
                       w3_ref, b3_ref,
                       o_ref):
    # reg = reg_proj(reg_tokens[-1]);  tgt = 0  =>  reg_token = reg
    x = x_ref[...]                                        # (tn, 128) bf16
    reg = jnp.dot(x, wrp_ref[...], preferred_element_type=jnp.float32)
    reg = reg + brp_ref[...]
    # TODO(synk): GA decoder would transform reg_token here; stubbed as identity.
    rt = reg.astype(jnp.bfloat16)                         # (tn, 512) bf16

    # Fused first hidden layers of bbox_embed and cls_embed:
    #   rt @ [bw1 | cw1]  ->  (tn, 1024), split at the lane-512 boundary.
    a = jnp.dot(rt, w1_ref[...], preferred_element_type=jnp.float32) + b1_ref[...]
    a = jnp.maximum(a, 0.0).astype(jnp.bfloat16)
    h = a[:, :DIM_FFN]                                    # bbox branch
    g = a[:, DIM_FFN:]                                    # cls branch

    # Second hidden layers (different inputs -> kept separate).
    h = jnp.dot(h, bw2_ref[...], preferred_element_type=jnp.float32) + bb2_ref[...]
    h = jnp.maximum(h, 0.0).astype(jnp.bfloat16)
    g = jnp.dot(g, cw2_ref[...], preferred_element_type=jnp.float32) + cb2_ref[...]
    g = jnp.maximum(g, 0.0).astype(jnp.bfloat16)

    # Merged final layer: [h | g] @ [bw3p ; cw3p] -> (tn, 128).
    hg = jnp.concatenate([h, g], axis=1)                  # (tn, 1024) bf16
    y = jnp.dot(hg, w3_ref[...], preferred_element_type=jnp.float32) + b3_ref[...]

    # cols 0:4 = sigmoid(bbox), cols 4:6 = cls logits, rest padding.
    col = jax.lax.broadcasted_iota(jnp.int32, y.shape, 1)
    o_ref[...] = jnp.where(col < BOX_DIM, jax.nn.sigmoid(y), y)


def _round_up(n, m):
    return ((n + m - 1) // m) * m


def fused_heads(reg_flat, prepared):
    """reg_flat: (N, ladder_dim) f32/bf16 -> (N, OUT_PAD) f32 slab."""
    N = reg_flat.shape[0]
    # Row tile: multiple of 16 (bf16 sublane packing); pad N up to a tile multiple.
    tile_n = min(MAX_TILE_N, _round_up(N, 16))
    n_pad = _round_up(N, tile_n)
    x = reg_flat.astype(jnp.bfloat16)
    if n_pad != N:
        x = jnp.pad(x, ((0, n_pad - N), (0, 0)))

    weights = tuple(prepared)
    grid = (pl.cdiv(n_pad, tile_n),)

    # Weights/biases: full-block, constant index_map -> VMEM-resident across tiles.
    const_spec = lambda shape: pl.BlockSpec(shape, lambda i: (0, 0))
    in_specs = ([pl.BlockSpec((tile_n, LADDER_DIM), lambda i: (i, 0))]
                + [const_spec(w.shape) for w in weights])
    out_specs = pl.BlockSpec((tile_n, OUT_PAD), lambda i: (i, 0))

    slab = pl.pallas_call(
        _fused_head_kernel,
        out_shape=jax.ShapeDtypeStruct((n_pad, OUT_PAD), jnp.float32),
        grid=grid,
        in_specs=in_specs,
        out_specs=out_specs,
        compiler_params=pltpu.CompilerParams(
            dimension_semantics=("parallel",)),
    )(x, *weights)
    return slab[:N]


# ----------------------------------------------------------------------------
# Parameter init (nn.Linear-style uniform) + TPU-friendly preparation
# ----------------------------------------------------------------------------
def init_linear(key, fan_in, fan_out):
    kw, kb = jax.random.split(key)
    bound = 1.0 / jnp.sqrt(float(fan_in))
    w = jax.random.uniform(kw, (fan_in, fan_out), jnp.float32, -bound, bound)
    b = jax.random.uniform(kb, (1, fan_out), jnp.float32, -bound, bound)
    return w, b


def init_mlp3(key, d_in, d_hidden, d_out):
    k1, k2, k3 = jax.random.split(key, 3)
    return (init_linear(k1, d_in, d_hidden),
            init_linear(k2, d_hidden, d_hidden),
            init_linear(k3, d_hidden, d_out))


def _pad_last_layer(w, b, col_offset):
    """Pad (K, d_out)/(1, d_out) final layer into OUT_PAD lanes at col_offset."""
    K, d_out = w.shape
    w_pad = jnp.zeros((K, OUT_PAD), jnp.float32).at[:, col_offset:col_offset + d_out].set(w)
    b_pad = jnp.zeros((1, OUT_PAD), jnp.float32).at[:, col_offset:col_offset + d_out].set(b)
    return w_pad, b_pad


def prepare_params(params):
    """Fuse/merge head layers, cast weights to bf16, keep biases f32."""
    (wrp, brp) = params["reg_proj"]
    (bw1, bb1), (bw2, bb2), (bw3, bb3) = params["bbox_embed"]
    (cw1, cb1), (cw2, cb2), (cw3, cb3) = params["cls_embed"]

    # Fused first hidden layer:  rt @ [bw1 | cw1] + [bb1 | cb1]
    w1 = jnp.concatenate([bw1, cw1], axis=1)              # (512, 1024)
    b1 = jnp.concatenate([bb1, cb1], axis=1)              # (1, 1024)

    # Merged, lane-padded final layer (disjoint output column ranges).
    bw3p, bb3p = _pad_last_layer(bw3, bb3, 0)              # bbox -> cols 0:4
    cw3p, cb3p = _pad_last_layer(cw3, cb3, BOX_DIM)        # cls  -> cols 4:6
    w3 = jnp.concatenate([bw3p, cw3p], axis=0)             # (1024, 128)
    b3 = bb3p + cb3p                                       # exact (disjoint cols)

    bf = lambda a: a.astype(jnp.bfloat16)
    return (bf(wrp), brp,
            bf(w1), b1,
            bf(bw2), bb2, bf(cw2), cb2,
            bf(w3), b3)


# ----------------------------------------------------------------------------
# Forward pass (inference path of Model.forward, training=False)
# ----------------------------------------------------------------------------
def model_forward(prepared, image, text_ids, reg_tokens_last):
    nq, bs, ladder_dim = reg_tokens_last.shape

    # pad_mask = (text_ids == 0) — consumed by the (stubbed) GA decoder.
    pad_mask = (text_ids == 0)
    del image, pad_mask
    # TODO(synk): backbone/bridger/neck/decoder are external modules (stubbed).

    reg_flat = reg_tokens_last.reshape(nq * bs, ladder_dim)
    slab = fused_heads(reg_flat, prepared)             # (nq*bs, 128), one dispatch

    slab = slab.reshape(nq, bs, OUT_PAD)
    pred_box = slab[:, :, :BOX_DIM].transpose(1, 0, 2)                  # (bs, nq, 4)
    pred_cls = slab[:, :, BOX_DIM:BOX_DIM + CLS_DIM].transpose(1, 0, 2) # (bs, nq, 2)

    # argmax(softmax(pred_cls)[..., 0]) == argmax(logit0 - logit1)  (monotone)
    score = pred_cls[:, :, 0] - pred_cls[:, :, 1]
    index = jnp.argmax(score, axis=-1)
    pred_box_sel = pred_box[jnp.arange(bs), index]                      # (bs, 4)

    return {"pred_box": pred_box_sel, "pred_cls": pred_cls}


# ----------------------------------------------------------------------------
if __name__ == "__main__":
    key = jax.random.PRNGKey(0)
    k_img, k_txt, k_reg, k_p1, k_p2, k_p3 = jax.random.split(key, 6)

    bs = 2
    num_queries = 8
    seq_len = 8

    # Small deterministic example inputs.
    image = jax.random.normal(k_img, (bs, 3, 16, 16), jnp.float32)
    text_ids = jnp.concatenate(
        [jax.random.randint(k_txt, (bs, seq_len - 3), 1, 100, jnp.int32),
         jnp.zeros((bs, 3), jnp.int32)], axis=-1)
    # Bridger-output stub: reg_tokens[-1] with shape (num_queries, bs, ladder_dim)
    reg_tokens_last = jax.random.normal(
        k_reg, (num_queries, bs, LADDER_DIM), jnp.float32)

    params = {
        "reg_proj": init_linear(k_p1, LADDER_DIM, DIM_FFN),
        "bbox_embed": init_mlp3(k_p2, DIM_FFN, DIM_FFN, BOX_DIM),
        "cls_embed": init_mlp3(k_p3, DIM_FFN, DIM_FFN, CLS_DIM),
    }
    prepared = prepare_params(params)

    fwd = jax.jit(model_forward)
    out = fwd(prepared, image, text_ids, reg_tokens_last)
    jax.block_until_ready(out)

    assert out["pred_box"].shape == (bs, 4)
    assert out["pred_cls"].shape == (bs, num_queries, 2)
    assert jnp.all(out["pred_box"] >= 0.0) and jnp.all(out["pred_box"] <= 1.0)
    assert jnp.all(jnp.isfinite(out["pred_cls"]))
    print("KERNEL_OK")
</pallas_src>

<mosaic_0001>
module attributes {stable_mosaic.version = 11 : i64} {
  func.func @_fused_head_kernel(%arg0: i32, %arg1: memref<16x128xbf16, #tpu.memory_space<vmem>>, %arg2: memref<128x512xbf16, #tpu.memory_space<vmem>>, %arg3: memref<1x512xf32, #tpu.memory_space<vmem>>, %arg4: memref<512x1024xbf16, #tpu.memory_space<vmem>>, %arg5: memref<1x1024xf32, #tpu.memory_space<vmem>>, %arg6: memref<512x512xbf16, #tpu.memory_space<vmem>>, %arg7: memref<1x512xf32, #tpu.memory_space<vmem>>, %arg8: memref<512x512xbf16, #tpu.memory_space<vmem>>, %arg9: memref<1x512xf32, #tpu.memory_space<vmem>>, %arg10: memref<1024x128xbf16, #tpu.memory_space<vmem>>, %arg11: memref<1x128xf32, #tpu.memory_space<vmem>>, %arg12: memref<16x128xf32, #tpu.memory_space<vmem>>) attributes {dimension_semantics = [#tpu.dimension_semantics<parallel>], iteration_bounds = array<i64: 1>, scalar_prefetch = 0 : i64, scratch_operands = 0 : i64, tpu.core_type = #tpu.core_type<tc>, window_params = [{transform_indices = @transform_0, window_bounds = array<i64: 16, 128>}, {pipeline_mode = #tpu.pipeline_mode<synchronous>, transform_indices = @transform_1, window_bounds = array<i64: 128, 512>}, {pipeline_mode = #tpu.pipeline_mode<synchronous>, transform_indices = @transform_2, window_bounds = array<i64: 1, 512>}, {pipeline_mode = #tpu.pipeline_mode<synchronous>, transform_indices = @transform_3, window_bounds = array<i64: 512, 1024>}, {pipeline_mode = #tpu.pipeline_mode<synchronous>, transform_indices = @transform_4, window_bounds = array<i64: 1, 1024>}, {pipeline_mode = #tpu.pipeline_mode<synchronous>, transform_indices = @transform_5, window_bounds = array<i64: 512, 512>}, {pipeline_mode = #tpu.pipeline_mode<synchronous>, transform_indices = @transform_6, window_bounds = array<i64: 1, 512>}, {pipeline_mode = #tpu.pipeline_mode<synchronous>, transform_indices = @transform_7, window_bounds = array<i64: 512, 512>}, {pipeline_mode = #tpu.pipeline_mode<synchronous>, transform_indices = @transform_8, window_bounds = array<i64: 1, 512>}, {pipeline_mode = #tpu.pipeline_mode<synchronous>, transform_indices = @transform_9, window_bounds = array<i64: 1024, 128>}, {pipeline_mode = #tpu.pipeline_mode<synchronous>, transform_indices = @transform_10, window_bounds = array<i64: 1, 128>}, {transform_indices = @transform_11, window_bounds = array<i64: 16, 128>}]} {
    %c0 = arith.constant 0 : index
    %c0_0 = arith.constant 0 : index
    %0 = vector.load %arg1[%c0, %c0_0] : memref<16x128xbf16, #tpu.memory_space<vmem>>, vector<16x128xbf16>
    %c0_1 = arith.constant 0 : index
    %c0_2 = arith.constant 0 : index
    %1 = vector.load %arg2[%c0_1, %c0_2] : memref<128x512xbf16, #tpu.memory_space<vmem>>, vector<128x512xbf16>
    %cst = arith.constant dense<0.000000e+00> : vector<16x512xf32>
    %2 = tpu.matmul %0, %1, %cst {dimension_numbers = #tpu.dot_dimension_numbers<[1], [0], [0], [1], [0, 0, 1, 1], [], []>} : vector<16x128xbf16>, vector<128x512xbf16>, vector<16x512xf32> -> vector<16x512xf32>
    %c0_3 = arith.constant 0 : index
    %c0_4 = arith.constant 0 : index
    %3 = vector.load %arg3[%c0_3, %c0_4] : memref<1x512xf32, #tpu.memory_space<vmem>>, vector<1x512xf32>
    %4 = vector.broadcast %3 : vector<1x512xf32> to vector<16x512xf32>
    %5 = arith.addf %2, %4 : vector<16x512xf32>
    %6 = arith.truncf %5 : vector<16x512xf32> to vector<16x512xbf16>
    %c0_5 = arith.constant 0 : index
    %c0_6 = arith.constant 0 : index
    %7 = vector.load %arg4[%c0_5, %c0_6] : memref<512x1024xbf16, #tpu.memory_space<vmem>>, vector<512x1024xbf16>
    %cst_7 = arith.constant dense<0.000000e+00> : vector<16x1024xf32>
    %8 = tpu.matmul %6, %7, %cst_7 {dimension_numbers = #tpu.dot_dimension_numbers<[1], [0], [0], [1], [0, 0, 1, 1], [], []>} : vector<16x512xbf16>, vector<512x1024xbf16>, vector<16x1024xf32> -> vector<16x1024xf32>
    %c0_8 = arith.constant 0 : index
    %c0_9 = arith.constant 0 : index
    %9 = vector.load %arg5[%c0_8, %c0_9] : memref<1x1024xf32, #tpu.memory_space<vmem>>, vector<1x1024xf32>
    %10 = vector.broadcast %9 : vector<1x1024xf32> to vector<16x1024xf32>
    %11 = arith.addf %8, %10 : vector<16x1024xf32>
    %cst_10 = arith.constant 0.000000e+00 : f32
    %12 = vector.broadcast %cst_10 : f32 to vector<16x1024xf32>
    %13 = arith.maximumf %11, %12 : vector<16x1024xf32>
    %14 = arith.truncf %13 : vector<16x1024xf32> to vector<16x1024xbf16>
    %15 = vector.extract_strided_slice %14 {offsets = [0, 0], sizes = [16, 512], strides = [1, 1]} : vector<16x1024xbf16> to vector<16x512xbf16>
    %16 = vector.extract_strided_slice %14 {offsets = [0, 512], sizes = [16, 512], strides = [1, 1]} : vector<16x1024xbf16> to vector<16x512xbf16>
    %c0_11 = arith.constant 0 : index
    %c0_12 = arith.constant 0 : index
    %17 = vector.load %arg6[%c0_11, %c0_12] : memref<512x512xbf16, #tpu.memory_space<vmem>>, vector<512x512xbf16>
    %cst_13 = arith.constant dense<0.000000e+00> : vector<16x512xf32>
    %18 = tpu.matmul %15, %17, %cst_13 {dimension_numbers = #tpu.dot_dimension_numbers<[1], [0], [0], [1], [0, 0, 1, 1], [], []>} : vector<16x512xbf16>, vector<512x512xbf16>, vector<16x512xf32> -> vector<16x512xf32>
    %c0_14 = arith.constant 0 : index
    %c0_15 = arith.constant 0 : index
    %19 = vector.load %arg7[%c0_14, %c0_15] : memref<1x512xf32, #tpu.memory_space<vmem>>, vector<1x512xf32>
    %20 = vector.broadcast %19 : vector<1x512xf32> to vector<16x512xf32>
    %21 = arith.addf %18, %20 : vector<16x512xf32>
    %cst_16 = arith.constant 0.000000e+00 : f32
    %22 = vector.broadcast %cst_16 : f32 to vector<16x512xf32>
    %23 = arith.maximumf %21, %22 : vector<16x512xf32>
    %24 = arith.truncf %23 : vector<16x512xf32> to vector<16x512xbf16>
    %c0_17 = arith.constant 0 : index
    %c0_18 = arith.constant 0 : index
    %25 = vector.load %arg8[%c0_17, %c0_18] : memref<512x512xbf16, #tpu.memory_space<vmem>>, vector<512x512xbf16>
    %cst_19 = arith.constant dense<0.000000e+00> : vector<16x512xf32>
    %26 = tpu.matmul %16, %25, %cst_19 {dimension_numbers = #tpu.dot_dimension_numbers<[1], [0], [0], [1], [0, 0, 1, 1], [], []>} : vector<16x512xbf16>, vector<512x512xbf16>, vector<16x512xf32> -> vector<16x512xf32>
    %c0_20 = arith.constant 0 : index
    %c0_21 = arith.constant 0 : index
    %27 = vector.load %arg9[%c0_20, %c0_21] : memref<1x512xf32, #tpu.memory_space<vmem>>, vector<1x512xf32>
    %28 = vector.broadcast %27 : vector<1x512xf32> to vector<16x512xf32>
    %29 = arith.addf %26, %28 : vector<16x512xf32>
    %cst_22 = arith.constant 0.000000e+00 : f32
    %30 = vector.broadcast %cst_22 : f32 to vector<16x512xf32>
    %31 = arith.maximumf %29, %30 : vector<16x512xf32>
    %32 = arith.truncf %31 : vector<16x512xf32> to vector<16x512xbf16>
    %33 = tpu.concatenate %24, %32 in 1 : vector<16x512xbf16>, vector<16x512xbf16> -> vector<16x1024xbf16>
    %c0_23 = arith.constant 0 : index
    %c0_24 = arith.constant 0 : index
    %34 = vector.load %arg10[%c0_23, %c0_24] : memref<1024x128xbf16, #tpu.memory_space<vmem>>, vector<1024x128xbf16>
    %cst_25 = arith.constant dense<0.000000e+00> : vector<16x128xf32>
    %35 = tpu.matmul %33, %34, %cst_25 {dimension_numbers = #tpu.dot_dimension_numbers<[1], [0], [0], [1], [0, 0, 1, 1], [], []>} : vector<16x1024xbf16>, vector<1024x128xbf16>, vector<16x128xf32> -> vector<16x128xf32>
    %c0_26 = arith.constant 0 : index
    %c0_27 = arith.constant 0 : index
    %36 = vector.load %arg11[%c0_26, %c0_27] : memref<1x128xf32, #tpu.memory_space<vmem>>, vector<1x128xf32>
    %37 = vector.broadcast %36 : vector<1x128xf32> to vector<16x128xf32>
    %38 = arith.addf %35, %37 : vector<16x128xf32>
    %39 = tpu.iota {dimensions = array<i32: 1>} : vector<16x128xi32>
    %c4_i32 = arith.constant 4 : i32
    %40 = vector.broadcast %c4_i32 : i32 to vector<16x128xi32>
    %41 = arith.cmpi slt, %39, %40 : vector<16x128xi32>
    %42 = arith.negf %38 : vector<16x128xf32>
    %43 = math.exp %42 : vector<16x128xf32>
    %cst_28 = arith.constant 1.000000e+00 : f32
    %44 = vector.broadcast %cst_28 : f32 to vector<16x128xf32>
    %45 = arith.addf %44, %43 : vector<16x128xf32>
    %46 = arith.divf %44, %45 : vector<16x128xf32>
    %47 = arith.select %41, %46, %38 : vector<16x128xi1>, vector<16x128xf32>
    %c0_29 = arith.constant 0 : index
    %c0_30 = arith.constant 0 : index
    %48 = vector.load %arg12[%c0_29, %c0_30] : memref<16x128xf32, #tpu.memory_space<vmem>>, vector<16x128xf32>
    tpu.vector_store %arg12[%c0_29, %c0_30], %47 {strides = array<i32>} : memref<16x128xf32, #tpu.memory_space<vmem>>, vector<16x128xf32>,
    return
  }
  func.func @transform_0(%arg0: i32) -> (i32, i32) {
    %c0_i32 = arith.constant 0 : i32
    %c0_i32_0 = arith.constant 0 : i32
    return %arg0, %c0_i32 : i32, i32
  }
  func.func @transform_1(%arg0: i32) -> (i32, i32) {
    %c0_i32 = arith.constant 0 : i32
    %c0_i32_0 = arith.constant 0 : i32
    %c0_i32_1 = arith.constant 0 : i32
    return %c0_i32, %c0_i32_0 : i32, i32
  }
  func.func @transform_2(%arg0: i32) -> (i32, i32) {
    %c0_i32 = arith.constant 0 : i32
    %c0_i32_0 = arith.constant 0 : i32
    %c0_i32_1 = arith.constant 0 : i32
    return %c0_i32, %c0_i32_0 : i32, i32
  }
  func.func @transform_3(%arg0: i32) -> (i32, i32) {
    %c0_i32 = arith.constant 0 : i32
    %c0_i32_0 = arith.constant 0 : i32
    %c0_i32_1 = arith.constant 0 : i32
    return %c0_i32, %c0_i32_0 : i32, i32
  }
  func.func @transform_4(%arg0: i32) -> (i32, i32) {
    %c0_i32 = arith.constant 0 : i32
    %c0_i32_0 = arith.constant 0 : i32
    %c0_i32_1 = arith.constant 0 : i32
    return %c0_i32, %c0_i32_0 : i32, i32
  }
  func.func @transform_5(%arg0: i32) -> (i32, i32) {
    %c0_i32 = arith.constant 0 : i32
    %c0_i32_0 = arith.constant 0 : i32
    %c0_i32_1 = arith.constant 0 : i32
    return %c0_i32, %c0_i32_0 : i32, i32
  }
  func.func @transform_6(%arg0: i32) -> (i32, i32) {
    %c0_i32 = arith.constant 0 : i32
    %c0_i32_0 = arith.constant 0 : i32
    %c0_i32_1 = arith.constant 0 : i32
    return %c0_i32, %c0_i32_0 : i32, i32
  }
  func.func @transform_7(%arg0: i32) -> (i32, i32) {
    %c0_i32 = arith.constant 0 : i32
    %c0_i32_0 = arith.constant 0 : i32
    %c0_i32_1 = arith.constant 0 : i32
    return %c0_i32, %c0_i32_0 : i32, i32
  }
  func.func @transform_8(%arg0: i32) -> (i32, i32) {
    %c0_i32 = arith.constant 0 : i32
    %c0_i32_0 = arith.constant 0 : i32
    %c0_i32_1 = arith.constant 0 : i32
    return %c0_i32, %c0_i32_0 : i32, i32
  }
  func.func @transform_9(%arg0: i32) -> (i32, i32) {
    %c0_i32 = arith.constant 0 : i32
    %c0_i32_0 = arith.constant 0 : i32
    %c0_i32_1 = arith.constant 0 : i32
    return %c0_i32, %c0_i32_0 : i32, i32
  }
  func.func @transform_10(%arg0: i32) -> (i32, i32) {
    %c0_i32 = arith.constant 0 : i32
    %c0_i32_0 = arith.constant 0 : i32
    %c0_i32_1 = arith.constant 0 : i32
    return %c0_i32, %c0_i32_0 : i32, i32
  }
  func.func @transform_11(%arg0: i32) -> (i32, i32) {
    %c0_i32 = arith.constant 0 : i32
    %c0_i32_0 = arith.constant 0 : i32
    return %arg0, %c0_i32 : i32, i32
  }
}

</mosaic_0001>

<llo_original>
// kernel: model_forward.1
$region0: #{model_forward.1}
  #allocation0 [shape = 'u32[]', space=smem, size = 0x4, offset = 0x4, fixed_abs, tag = 'smem constant byte address 0x4 - core index']
  #allocation1 [shape = 'u32[144,128]{1,0:T(1,128)}', space=vmem, size = 0x12000, scoped, tag = 'internal scratch']
  %s0 = inlined_call_operand.vmem [shape: bf16[16,128], index: 0, kind: input, shape index: {}]
  %s1 = inlined_call_operand.hbm [shape: bf16[128,512], index: 1, kind: input, shape index: {}]
  %s2 = inlined_call_operand.vmem [shape: f32[1,512], index: 2, kind: input, shape index: {}]
  %s3 = inlined_call_operand.hbm [shape: bf16[512,1024], index: 3, kind: input, shape index: {}]
  %s4 = inlined_call_operand.vmem [shape: f32[1,1024], index: 4, kind: input, shape index: {}]
  %s5 = inlined_call_operand.hbm [shape: bf16[512,512], index: 5, kind: input, shape index: {}]
  %s6 = inlined_call_operand.vmem [shape: f32[1,512], index: 6, kind: input, shape index: {}]
  %s7 = inlined_call_operand.hbm [shape: bf16[512,512], index: 7, kind: input, shape index: {}]
  %s8 = inlined_call_operand.vmem [shape: f32[1,512], index: 8, kind: input, shape index: {}]
  %s9 = inlined_call_operand.hbm [shape: bf16[1024,128], index: 9, kind: input, shape index: {}]
  %s10 = inlined_call_operand.vmem [shape: f32[1,128], index: 10, kind: input, shape index: {}]
  %s11 = inlined_call_operand.vmem [shape: f32[16,128], index: 11, kind: output, shape index: {}]
  %s12 = sld [smem:[#allocation0]]
  $region74: #{model_forward.1} parent=0
    _
  %s14 = ssub.s32 1, %s12
  %s15 = scalar_select 0, %s14, %s12
  $region1: #{model_forward.1} parent=0
    #allocation2 [shape = 'u8[131072]{0}', space=vmem, size = 0x20000, scoped, tag = 'input window, operand 1, single buffered']
    #allocation3 [shape = 's32[1]{0}', space=sflag, size = 0x4, scoped, tag = 'scoped memory for model_forward.1']
    #allocation4 [shape = 'u8[1048576]{0}', space=vmem, size = 0x100000, scoped, tag = 'input window, operand 3, single buffered']
    #allocation5 [shape = 's32[1]{0}', space=sflag, size = 0x4, scoped, tag = 'scoped memory for model_forward.1']
    #allocation6 [shape = 'u8[524288]{0}', space=vmem, size = 0x80000, scoped, tag = 'input window, operand 5, single buffered']
    #allocation7 [shape = 'u8[524288]{0}', space=vmem, size = 0x80000, scoped, tag = 'input window, operand 7, single buffered']
    #allocation8 [shape = 's32[1]{0}', space=sflag, size = 0x4, scoped, tag = 'scoped memory for model_forward.1']
    #allocation9 [shape = 'u8[262144]{0}', space=vmem, size = 0x40000, scoped, tag = 'input window, operand 9, single buffered']
    %16 = vsyncpa [#allocation3], 0
    %17 = vsyncpa [#allocation5], 0
    %18 = vsyncpa [#allocation8], 0
    // Predicated region
    $region2: #{model_forward.1} parent=1 // pred_check
      _
    $region3: #{model_forward.1} parent=1 // pred_check_branch
      %20 = sbr.rel (0) target = $region5
    $region4: #{model_forward.1} parent=1 // pred_region
      _
    $region5: #{model_forward.1} parent=1 // pred_fallthru
      _
    // Predicated region
    $region6: #{model_forward.1} parent=1 // pred_check
      _
    $region7: #{model_forward.1} parent=1 // pred_check_branch
      %22 = sbr.rel (0) target = $region9
    $region8: #{model_forward.1} parent=1 // pred_region
      %s24 = ssub.s32 4096, 4096
      %25 = vsyncadd [#allocation3], %s24
      %s26 = sshll.u32 [#allocation2], 4
      %s27 = int_to_ptr.vmem [resolvable:$true] %s26
      %32 = dma.hbm_to_vmem [thread:$0]  %s1, 4096, %s27, [#allocation3], 256, 256, 16
    $region9: #{model_forward.1} parent=1 // pred_fallthru
      _
    // Predicated region
    $region10: #{model_forward.1} parent=1 // pred_check
      _
    $region11: #{model_forward.1} parent=1 // pred_check_branch
      %34 = sbr.rel (0) target = $region13
    $region12: #{model_forward.1} parent=1 // pred_region
      _
    $region13: #{model_forward.1} parent=1 // pred_fallthru
      _
    // Predicated region
    $region14: #{model_forward.1} parent=1 // pred_check
      _
    $region15: #{model_forward.1} parent=1 // pred_check_branch
      %36 = sbr.rel (0) target = $region17
    $region16: #{model_forward.1} parent=1 // pred_region
      %s38 = ssub.s32 32768, 32768
      %39 = vsyncadd [#allocation5], %s38
      %s40 = sshll.u32 [#allocation4], 4
      %s41 = int_to_ptr.vmem [resolvable:$true] %s40
      %46 = dma.hbm_to_vmem [thread:$0]  %s3, 32768, %s41, [#allocation5], 512, 512, 32
    $region17: #{model_forward.1} parent=1 // pred_fallthru
      _
    // Predicated region
    $region18: #{model_forward.1} parent=1 // pred_check
      _
    $region19: #{model_forward.1} parent=1 // pred_check_branch
      %48 = sbr.rel (0) target = $region21
    $region20: #{model_forward.1} parent=1 // pred_region
      _
    $region21: #{model_forward.1} parent=1 // pred_fallthru
      _
    // Predicated region
    $region22: #{model_forward.1} parent=1 // pred_check
      _
    $region23: #{model_forward.1} parent=1 // pred_check_branch
      %50 = sbr.rel (0) target = $region25
    $region24: #{model_forward.1} parent=1 // pred_region
      %s52 = ssub.s32 16384, 16384
      %53 = vsyncadd [#allocation5], %s52
      %s54 = sshll.u32 [#allocation6], 4
      %s55 = int_to_ptr.vmem [resolvable:$true] %s54
      %60 = dma.hbm_to_vmem [thread:$0]  %s5, 16384, %s55, [#allocation5], 256, 256, 16
    $region25: #{model_forward.1} parent=1 // pred_fallthru
      _
    // Predicated region
    $region26: #{model_forward.1} parent=1 // pred_check
      _
    $region27: #{model_forward.1} parent=1 // pred_check_branch
      %62 = sbr.rel (0) target = $region29
    $region28: #{model_forward.1} parent=1 // pred_region
      _
    $region29: #{model_forward.1} parent=1 // pred_fallthru
      _
    // Predicated region
    $region30: #{model_forward.1} parent=1 // pred_check
      _
    $region31: #{model_forward.1} parent=1 // pred_check_branch
      %64 = sbr.rel (0) target = $region33
    $region32: #{model_forward.1} parent=1 // pred_region
      %s66 = ssub.s32 16384, 16384
      %67 = vsyncadd [#allocation8], %s66
      %s68 = sshll.u32 [#allocation7], 4
      %s69 = int_to_ptr.vmem [resolvable:$true] %s68
      %74 = dma.hbm_to_vmem [thread:$0]  %s7, 16384, %s69, [#allocation8], 256, 256, 16
    $region33: #{model_forward.1} parent=1 // pred_fallthru
      _
    // Predicated region
    $region34: #{model_forward.1} parent=1 // pred_check
      _
    $region35: #{model_forward.1} parent=1 // pred_check_branch
      %76 = sbr.rel (0) target = $region37
    $region36: #{model_forward.1} parent=1 // pred_region
      _
    $region37: #{model_forward.1} parent=1 // pred_fallthru
      _
    // Predicated region
    $region38: #{model_forward.1} parent=1 // pred_check
      _
    $region39: #{model_forward.1} parent=1 // pred_check_branch
      %78 = sbr.rel (0) target = $region41
    $region40: #{model_forward.1} parent=1 // pred_region
      %s80 = ssub.s32 8192, 8192
      %81 = vsyncadd [#allocation8], %s80
      %s82 = sshll.u32 [#allocation9], 4
      %s83 = int_to_ptr.vmem [resolvable:$true] %s82
      %88 = dma.hbm_to_vmem [thread:$0]  %s9, 8192, %s83, [#allocation8], 64, 64, 4
    $region41: #{model_forward.1} parent=1 // pred_fallthru
      _
    // Predicated region
    $region42: #{model_forward.1} parent=1 // pred_check
      _
    $region43: #{model_forward.1} parent=1 // pred_check_branch
      %90 = sbr.rel (0) target = $region45
    $region44: #{model_forward.1} parent=1 // pred_region
      _
    $region45: #{model_forward.1} parent=1 // pred_fallthru
      _
    // Predicated region
    $region46: #{model_forward.1} parent=1 // pred_check
      _
    $region47: #{model_forward.1} parent=1 // pred_check_branch
      %92 = sbr.rel (0) target = $region49
    $region48: #{model_forward.1} parent=1 // pred_region
      %93 = dma.done [#allocation3], 4096
    $region49: #{model_forward.1} parent=1 // pred_fallthru
      _
    // Predicated region
    $region50: #{model_forward.1} parent=1 // pred_check
      _
    $region51: #{model_forward.1} parent=1 // pred_check_branch
      %95 = sbr.rel (0) target = $region53
    $region52: #{model_forward.1} parent=1 // pred_region
      %96 = dma.done [#allocation5], 32768
    $region53: #{model_forward.1} parent=1 // pred_fallthru
      _
    // Predicated region
    $region54: #{model_forward.1} parent=1 // pred_check
      _
    $region55: #{model_forward.1} parent=1 // pred_check_branch
      %98 = sbr.rel (0) target = $region57
    $region56: #{model_forward.1} parent=1 // pred_region
      %99 = dma.done [#allocation5], 16384
    $region57: #{model_forward.1} parent=1 // pred_fallthru
      _
    // Predicated region
    $region58: #{model_forward.1} parent=1 // pred_check
      _
    $region59: #{model_forward.1} parent=1 // pred_check_branch
      %101 = sbr.rel (0) target = $region61
    $region60: #{model_forward.1} parent=1 // pred_region
      %102 = dma.done [#allocation8], 16384
    $region61: #{model_forward.1} parent=1 // pred_fallthru
      _
    // Predicated region
    $region62: #{model_forward.1} parent=1 // pred_check
      _
    $region63: #{model_forward.1} parent=1 // pred_check_branch
      %104 = sbr.rel (0) target = $region65
    $region64: #{model_forward.1} parent=1 // pred_region
      %105 = dma.done [#allocation8], 8192
    $region65: #{model_forward.1} parent=1 // pred_fallthru
      _
    %v107 = vld [vmem:[%s0] sm:$0xf]
    %v108 = vld [vmem:[%s0 + $0x4] sm:$0xf]
    %v109 = vld [vmem:[#allocation2] sm:$0xff]
    %v110 = vld [vmem:[#allocation2 + $0x8] sm:$0xff]
    %v111 = vld [vmem:[#allocation2 + $0x10] sm:$0xff]
    %v112 = vld [vmem:[#allocation2 + $0x18] sm:$0xff]
    %v113 = vld [vmem:[#allocation2 + $0x20] sm:$0xff]
    %v114 = vld [vmem:[#allocation2 + $0x28] sm:$0xff]
    %v115 = vld [vmem:[#allocation2 + $0x30] sm:$0xff]
    %v116 = vld [vmem:[#allocation2 + $0x38] sm:$0xff]
    %v117 = vld [vmem:[#allocation2 + $0x40] sm:$0xff]
    %v118 = vld [vmem:[#allocation2 + $0x48] sm:$0xff]
    %v119 = vld [vmem:[#allocation2 + $0x50] sm:$0xff]
    %v120 = vld [vmem:[#allocation2 + $0x58] sm:$0xff]
    %v121 = vld [vmem:[#allocation2 + $0x60] sm:$0xff]
    %v122 = vld [vmem:[#allocation2 + $0x68] sm:$0xff]
    %v123 = vld [vmem:[#allocation2 + $0x70] sm:$0xff]
    %v124 = vld [vmem:[#allocation2 + $0x78] sm:$0xff]
    %v125 = vld [vmem:[#allocation2 + $0x80] sm:$0xff]
    %v126 = vld [vmem:[#allocation2 + $0x88] sm:$0xff]
    %v127 = vld [vmem:[#allocation2 + $0x90] sm:$0xff]
    %v128 = vld [vmem:[#allocation2 + $0x98] sm:$0xff]
    %v129 = vld [vmem:[#allocation2 + $0xa0] sm:$0xff]
    %v130 = vld [vmem:[#allocation2 + $0xa8] sm:$0xff]
    %v131 = vld [vmem:[#allocation2 + $0xb0] sm:$0xff]
    %v132 = vld [vmem:[#allocation2 + $0xb8] sm:$0xff]
    %v133 = vld [vmem:[#allocation2 + $0xc0] sm:$0xff]
    %v134 = vld [vmem:[#allocation2 + $0xc8] sm:$0xff]
    %v135 = vld [vmem:[#allocation2 + $0xd0] sm:$0xff]
    %v136 = vld [vmem:[#allocation2 + $0xd8] sm:$0xff]
    %v137 = vld [vmem:[#allocation2 + $0xe0] sm:$0xff]
    %v138 = vld [vmem:[#allocation2 + $0xe8] sm:$0xff]
    %v139 = vld [vmem:[#allocation2 + $0xf0] sm:$0xff]
    %v140 = vld [vmem:[#allocation2 + $0xf8] sm:$0xff]
    %v141 = vld [vmem:[%s2] sm:$0xf]
    %v143 = vlaneseq
    %v144 = vshrl.u32 %v143, 7
    %v145 = vsub.s32 0, %v144
    %v146 = vrot.slane %v141, %v145
    %v147 = vlaneseq
    %v148 = vshrl.u32 %v147, 7
    %v149 = vsub.s32 1, %v148
    %v150 = vrot.slane %v141, %v149
    %v151 = vlaneseq
    %v152 = vshrl.u32 %v151, 7
    %v153 = vsub.s32 2, %v152
    %v154 = vrot.slane %v141, %v153
    %v155 = vlaneseq
    %v156 = vshrl.u32 %v155, 7
    %v157 = vsub.s32 3, %v156
    %v158 = vrot.slane %v141, %v157
    %v165 = vunpack.c.l.b16 %v107
    %v166 = vunpack.c.l.b16 %v108
    %v167 = vpack.c.b16 %v166, %v165
    %v201 = vunpack.c.l.b16 %v109
    %v202 = vunpack.c.h.b16 %v109
    %v203 = vunpack.c.l.b16 %v110
    %v204 = vunpack.c.h.b16 %v110
    %v205 = vunpack.c.l.b16 %v111
    %v206 = vunpack.c.h.b16 %v111
    %v207 = vunpack.c.l.b16 %v112
    %v208 = vunpack.c.h.b16 %v112
    %v209 = vunpack.c.l.b16 %v113
    %v210 = vunpack.c.h.b16 %v113
    %v211 = vunpack.c.l.b16 %v114
    %v212 = vunpack.c.h.b16 %v114
    %v213 = vunpack.c.l.b16 %v115
    %v214 = vunpack.c.h.b16 %v115
    %v215 = vunpack.c.l.b16 %v116
    %v216 = vunpack.c.h.b16 %v116
    %v217 = vunpack.c.l.b16 %v117
    %v218 = vunpack.c.h.b16 %v117
    %v219 = vunpack.c.l.b16 %v118
    %v220 = vunpack.c.h.b16 %v118
    %v221 = vunpack.c.l.b16 %v119
    %v222 = vunpack.c.h.b16 %v119
    %v223 = vunpack.c.l.b16 %v120
    %v224 = vunpack.c.h.b16 %v120
    %v225 = vunpack.c.l.b16 %v121
    %v226 = vunpack.c.h.b16 %v121
    %v227 = vunpack.c.l.b16 %v122
    %v228 = vunpack.c.h.b16 %v122
    %v229 = vunpack.c.l.b16 %v123
    %v230 = vunpack.c.h.b16 %v123
    %v231 = vunpack.c.l.b16 %v124
    %v232 = vunpack.c.h.b16 %v124
    %v233 = vunpack.c.l.b16 %v125
    %v234 = vunpack.c.h.b16 %v125
    %v235 = vunpack.c.l.b16 %v126
    %v236 = vunpack.c.h.b16 %v126
    %v237 = vunpack.c.l.b16 %v127
    %v238 = vunpack.c.h.b16 %v127
    %v239 = vunpack.c.l.b16 %v128
    %v240 = vunpack.c.h.b16 %v128
    %v241 = vunpack.c.l.b16 %v129
    %v242 = vunpack.c.h.b16 %v129
    %v243 = vunpack.c.l.b16 %v130
    %v244 = vunpack.c.h.b16 %v130
    %v245 = vunpack.c.l.b16 %v131
    %v246 = vunpack.c.h.b16 %v131
    %v247 = vunpack.c.l.b16 %v132
    %v248 = vunpack.c.h.b16 %v132
    %v249 = vunpack.c.l.b16 %v133
    %v250 = vunpack.c.h.b16 %v133
    %v251 = vunpack.c.l.b16 %v134
    %v252 = vunpack.c.h.b16 %v134
    %v253 = vunpack.c.l.b16 %v135
    %v254 = vunpack.c.h.b16 %v135
    %v255 = vunpack.c.l.b16 %v136
    %v256 = vunpack.c.h.b16 %v136
    %v257 = vunpack.c.l.b16 %v137
    %v258 = vunpack.c.h.b16 %v137
    %v259 = vunpack.c.l.b16 %v138
    %v260 = vunpack.c.h.b16 %v138
    %v261 = vunpack.c.l.b16 %v139
    %v262 = vunpack.c.h.b16 %v139
    %v263 = vunpack.c.l.b16 %v140
    %v264 = vunpack.c.h.b16 %v140
    %v265 = vpack.c.b16 %v205, %v201
    %v266 = vpack.c.b16 %v206, %v202
    %v267 = vpack.c.b16 %v207, %v203
    %v268 = vpack.c.b16 %v208, %v204
    %v269 = vpack.c.b16 %v213, %v209
    %v270 = vpack.c.b16 %v214, %v210
    %v271 = vpack.c.b16 %v215, %v211
    %v272 = vpack.c.b16 %v216, %v212
    %v273 = vpack.c.b16 %v221, %v217
    %v274 = vpack.c.b16 %v222, %v218
    %v275 = vpack.c.b16 %v223, %v219
    %v276 = vpack.c.b16 %v224, %v220
    %v277 = vpack.c.b16 %v229, %v225
    %v278 = vpack.c.b16 %v230, %v226
    %v279 = vpack.c.b16 %v231, %v227
    %v280 = vpack.c.b16 %v232, %v228
    %v281 = vpack.c.b16 %v237, %v233
    %v282 = vpack.c.b16 %v238, %v234
    %v283 = vpack.c.b16 %v239, %v235
    %v284 = vpack.c.b16 %v240, %v236
    %v285 = vpack.c.b16 %v245, %v241
    %v286 = vpack.c.b16 %v246, %v242
    %v287 = vpack.c.b16 %v247, %v243
    %v288 = vpack.c.b16 %v248, %v244
    %v289 = vpack.c.b16 %v253, %v249
    %v290 = vpack.c.b16 %v254, %v250
    %v291 = vpack.c.b16 %v255, %v251
    %v292 = vpack.c.b16 %v256, %v252
    %v293 = vpack.c.b16 %v261, %v257
    %v294 = vpack.c.b16 %v262, %v258
    %v295 = vpack.c.b16 %v263, %v259
    %v296 = vpack.c.b16 %v264, %v260
    %329 = vmatprep.subr.bf16.mxu0 %v266
    %330 = vmatpush1.bf16.msra.mxu0 %v265
    %331 = vmatprep.subr.bf16.mxu0 %v270
    %332 = vmatpush1.bf16.msra.mxu0 %v269
    %333 = vmatprep.subr.bf16.mxu0 %v274
    %334 = vmatpush1.bf16.msra.mxu0 %v273
    %335 = vmatprep.subr.bf16.mxu0 %v278
    %336 = vmatpush1.bf16.msra.mxu0 %v277
    %337 = vmatprep.subr.bf16.mxu0 %v282
    %338 = vmatpush1.bf16.msra.mxu0 %v281
    %339 = vmatprep.subr.bf16.mxu0 %v286
    %340 = vmatpush1.bf16.msra.mxu0 %v285
    %341 = vmatprep.subr.bf16.mxu0 %v290
    %342 = vmatpush1.bf16.msra.mxu0 %v289
    %343 = vmatprep.subr.bf16.mxu0 %v294
    %344 = vmatpush1.bf16.msra.mxu0 %v293
    %345 = vmatprep.subr.bf16.mxu0 0
    %346 = vmatpush1.bf16.msra.mxu0 0
    %347 = vmatprep.subr.bf16.mxu0 0
    %348 = vmatpush1.bf16.msra.mxu0 0
    %349 = vmatprep.subr.bf16.mxu0 0
    %350 = vmatpush1.bf16.msra.mxu0 0
    %351 = vmatprep.subr.bf16.mxu0 0
    %352 = vmatpush1.bf16.msra.mxu0 0
    %353 = vmatprep.subr.bf16.mxu0 0
    %354 = vmatpush1.bf16.msra.mxu0 0
    %355 = vmatprep.subr.bf16.mxu0 0
    %356 = vmatpush1.bf16.msra.mxu0 0
    %357 = vmatprep.subr.bf16.mxu0 0
    %358 = vmatpush1.bf16.msra.mxu0 0
    %359 = vmatprep.subr.bf16.mxu0 0
    %360 = vmatpush1.bf16.msra.mxu0 0
    %361 = vmatprep.mubr.bf16.mxu0 0
    %362 = vmatmul.mubr.bf16.gmra.mrb[0].mxu0 %v167
    %v363 = vpop.f32.mrb[0].mxu0
    %v364 = vadd.f32 %v146, %v363
    %v365 = vpop.f32.mrb[0].mxu0
    %v366 = vadd.f32 %v150, %v365
    %v367 = vpop.f32.mrb[0].mxu0
    %v368 = vadd.f32 %v146, %v367
    %v369 = vpop.f32.mrb[0].mxu0
    %v370 = vadd.f32 %v150, %v369
    %371 = vdwg.mxu0
    %372 = vmatprep.subr.bf16.mxu0 %v268
    %373 = vmatpush1.bf16.msra.mxu0 %v267
    %374 = vmatprep.subr.bf16.mxu0 %v272
    %375 = vmatpush1.bf16.msra.mxu0 %v271
    %376 = vmatprep.subr.bf16.mxu0 %v276
    %377 = vmatpush1.bf16.msra.mxu0 %v275
    %378 = vmatprep.subr.bf16.mxu0 %v280
    %379 = vmatpush1.bf16.msra.mxu0 %v279
    %380 = vmatprep.subr.bf16.mxu0 %v284
    %381 = vmatpush1.bf16.msra.mxu0 %v283
    %382 = vmatprep.subr.bf16.mxu0 %v288
    %383 = vmatpush1.bf16.msra.mxu0 %v287
    %384 = vmatprep.subr.bf16.mxu0 %v292
    %385 = vmatpush1.bf16.msra.mxu0 %v291
    %386 = vmatprep.subr.bf16.mxu0 %v296
    %387 = vmatpush1.bf16.msra.mxu0 %v295
    %388 = vmatprep.subr.bf16.mxu0 0
    %389 = vmatpush1.bf16.msra.mxu0 0
    %390 = vmatprep.subr.bf16.mxu0 0
    %391 = vmatpush1.bf16.msra.mxu0 0
    %392 = vmatprep.subr.bf16.mxu0 0
    %393 = vmatpush1.bf16.msra.mxu0 0
    %394 = vmatprep.subr.bf16.mxu0 0
    %395 = vmatpush1.bf16.msra.mxu0 0
    %396 = vmatprep.subr.bf16.mxu0 0
    %397 = vmatpush1.bf16.msra.mxu0 0
    %398 = vmatprep.subr.bf16.mxu0 0
    %399 = vmatpush1.bf16.msra.mxu0 0
    %400 = vmatprep.subr.bf16.mxu0 0
    %401 = vmatpush1.bf16.msra.mxu0 0
    %402 = vmatprep.subr.bf16.mxu0 0
    %403 = vmatpush1.bf16.msra.mxu0 0
    %404 = vmatprep.mubr.bf16.mxu0 0
    %405 = vmatmul.mubr.bf16.gmra.mrb[0].mxu0 %v167
    %v406 = vpop.f32.mrb[0].mxu0
    %v407 = vadd.f32 %v154, %v406
    %v408 = vpop.f32.mrb[0].mxu0
    %v409 = vadd.f32 %v158, %v408
    %v410 = vpop.f32.mrb[0].mxu0
    %v411 = vadd.f32 %v154, %v410
    %v412 = vpop.f32.mrb[0].mxu0
    %v413 = vadd.f32 %v158, %v412
    %414 = vdwg.mxu0
    %v415 = vpack.c.bf16 %v368, %v364
    %v416 = vpack.c.bf16 %v370, %v366
    %v417 = vpack.c.bf16 %v411, %v407
    %v418 = vpack.c.bf16 %v413, %v409
    %v419 = vld [vmem:[#allocation4] sm:$0xff]
    %v420 = vld [vmem:[#allocation4 + $0x8] sm:$0xff]
    %v421 = vld [vmem:[#allocation4 + $0x10] sm:$0xff]
    %v422 = vld [vmem:[#allocation4 + $0x18] sm:$0xff]
    %v423 = vld [vmem:[#allocation4 + $0x20] sm:$0xff]
    %v424 = vld [vmem:[#allocation4 + $0x28] sm:$0xff]
    %v425 = vld [vmem:[#allocation4 + $0x30] sm:$0xff]
    %v426 = vld [vmem:[#allocation4 + $0x38] sm:$0xff]
    %v427 = vld [vmem:[#allocation4 + $0x40] sm:$0xff]
    %v428 = vld [vmem:[#allocation4 + $0x48] sm:$0xff]
    %v429 = vld [vmem:[#allocation4 + $0x50] sm:$0xff]
    %v430 = vld [vmem:[#allocation4 + $0x58] sm:$0xff]
    %v431 = vld [vmem:[#allocation4 + $0x60] sm:$0xff]
    %v432 = vld [vmem:[#allocation4 + $0x68] sm:$0xff]
    %v433 = vld [vmem:[#allocation4 + $0x70] sm:$0xff]
    %v434 = vld [vmem:[#allocation4 + $0x78] sm:$0xff]
    %v435 = vld [vmem:[#allocation4 + $0x80] sm:$0xff]
    %v436 = vld [vmem:[#allocation4 + $0x88] sm:$0xff]
    %v437 = vld [vmem:[#allocation4 + $0x90] sm:$0xff]
    %v438 = vld [vmem:[#allocation4 + $0x98] sm:$0xff]
    %v439 = vld [vmem:[#allocation4 + $0xa0] sm:$0xff]
    %v440 = vld [vmem:[#allocation4 + $0xa8] sm:$0xff]
    %v441 = vld [vmem:[#allocation4 + $0xb0] sm:$0xff]
    %v442 = vld [vmem:[#allocation4 + $0xb8] sm:$0xff]
    %v443 = vld [vmem:[#allocation4 + $0xc0] sm:$0xff]
    %v444 = vld [vmem:[#allocation4 + $0xc8] sm:$0xff]
    %v445 = vld [vmem:[#allocation4 + $0xd0] sm:$0xff]
    %v446 = vld [vmem:[#allocation4 + $0xd8] sm:$0xff]
    %v447 = vld [vmem:[#allocation4 + $0xe0] sm:$0xff]
    %v448 = vld [vmem:[#allocation4 + $0xe8] sm:$0xff]
    %v449 = vld [vmem:[#allocation4 + $0xf0] sm:$0xff]
    %v450 = vld [vmem:[#allocation4 + $0xf8] sm:$0xff]
    %v451 = vld [vmem:[#allocation4 + $0x100] sm:$0xff]
    %v452 = vld [vmem:[#allocation4 + $0x108] sm:$0xff]
    %v453 = vld [vmem:[#allocation4 + $0x110] sm:$0xff]
    %v454 = vld [vmem:[#allocation4 + $0x118] sm:$0xff]
    %v455 = vld [vmem:[#allocation4 + $0x120] sm:$0xff]
    %v456 = vld [vmem:[#allocation4 + $0x128] sm:$0xff]
    %v457 = vld [vmem:[#allocation4 + $0x130] sm:$0xff]
    %v458 = vld [vmem:[#allocation4 + $0x138] sm:$0xff]
    %v459 = vld [vmem:[#allocation4 + $0x140] sm:$0xff]
    %v460 = vld [vmem:[#allocation4 + $0x148] sm:$0xff]
    %v461 = vld [vmem:[#allocation4 + $0x150] sm:$0xff]
    %v462 = vld [vmem:[#allocation4 + $0x158] sm:$0xff]
    %v463 = vld [vmem:[#allocation4 + $0x160] sm:$0xff]
    %v464 = vld [vmem:[#allocation4 + $0x168] sm:$0xff]
    %v465 = vld [vmem:[#allocation4 + $0x170] sm:$0xff]
    %v466 = vld [vmem:[#allocation4 + $0x178] sm:$0xff]
    %v467 = vld [vmem:[#allocation4 + $0x180] sm:$0xff]
    %v468 = vld [vmem:[#allocation4 + $0x188] sm:$0xff]
    %v469 = vld [vmem:[#allocation4 + $0x190] sm:$0xff]
    %v470 = vld [vmem:[#allocation4 + $0x198] sm:$0xff]
    %v471 = vld [vmem:[#allocation4 + $0x1a0] sm:$0xff]
    %v472 = vld [vmem:[#allocation4 + $0x1a8] sm:$0xff]
    %v473 = vld [vmem:[#allocation4 + $0x1b0] sm:$0xff]
    %v474 = vld [vmem:[#allocation4 + $0x1b8] sm:$0xff]
    %v475 = vld [vmem:[#allocation4 + $0x1c0] sm:$0xff]
    %v476 = vld [vmem:[#allocation4 + $0x1c8] sm:$0xff]
    %v477 = vld [vmem:[#allocation4 + $0x1d0] sm:$0xff]
    %v478 = vld [vmem:[#allocation4 + $0x1d8] sm:$0xff]
    %v479 = vld [vmem:[#allocation4 + $0x1e0] sm:$0xff]
    %v480 = vld [vmem:[#allocation4 + $0x1e8] sm:$0xff]
    %v481 = vld [vmem:[#allocation4 + $0x1f0] sm:$0xff]
    %v482 = vld [vmem:[#allocation4 + $0x1f8] sm:$0xff]
    %v483 = vld [vmem:[#allocation4 + $0x200] sm:$0xff]
    %v484 = vld [vmem:[#allocation4 + $0x208] sm:$0xff]
    %v485 = vld [vmem:[#allocation4 + $0x210] sm:$0xff]
    %v486 = vld [vmem:[#allocation4 + $0x218] sm:$0xff]
    %v487 = vld [vmem:[#allocation4 + $0x220] sm:$0xff]
    %v488 = vld [vmem:[#allocation4 + $0x228] sm:$0xff]
    %v489 = vld [vmem:[#allocation4 + $0x230] sm:$0xff]
    %v490 = vld [vmem:[#allocation4 + $0x238] sm:$0xff]
    %v491 = vld [vmem:[#allocation4 + $0x240] sm:$0xff]
    %v492 = vld [vmem:[#allocation4 + $0x248] sm:$0xff]
    %v493 = vld [vmem:[#allocation4 + $0x250] sm:$0xff]
    %v494 = vld [vmem:[#allocation4 + $0x258] sm:$0xff]
    %v495 = vld [vmem:[#allocation4 + $0x260] sm:$0xff]
    %v496 = vld [vmem:[#allocation4 + $0x268] sm:$0xff]
    %v497 = vld [vmem:[#allocation4 + $0x270] sm:$0xff]
    %v498 = vld [vmem:[#allocation4 + $0x278] sm:$0xff]
    %v499 = vld [vmem:[#allocation4 + $0x280] sm:$0xff]
    %v500 = vld [vmem:[#allocation4 + $0x288] sm:$0xff]
    %v501 = vld [vmem:[#allocation4 + $0x290] sm:$0xff]
    %v502 = vld [vmem:[#allocation4 + $0x298] sm:$0xff]
    %v503 = vld [vmem:[#allocation4 + $0x2a0] sm:$0xff]
    %v504 = vld [vmem:[#allocation4 + $0x2a8] sm:$0xff]
    %v505 = vld [vmem:[#allocation4 + $0x2b0] sm:$0xff]
    %v506 = vld [vmem:[#allocation4 + $0x2b8] sm:$0xff]
    %v507 = vld [vmem:[#allocation4 + $0x2c0] sm:$0xff]
    %v508 = vld [vmem:[#allocation4 + $0x2c8] sm:$0xff]
    %v509 = vld [vmem:[#allocation4 + $0x2d0] sm:$0xff]
    %v510 = vld [vmem:[#allocation4 + $0x2d8] sm:$0xff]
    %v511 = vld [vmem:[#allocation4 + $0x2e0] sm:$0xff]
    %v512 = vld [vmem:[#allocation4 + $0x2e8] sm:$0xff]
    %v513 = vld [vmem:[#allocation4 + $0x2f0] sm:$0xff]
    %v514 = vld [vmem:[#allocation4 + $0x2f8] sm:$0xff]
    %v515 = vld [vmem:[#allocation4 + $0x300] sm:$0xff]
    %v516 = vld [vmem:[#allocation4 + $0x308] sm:$0xff]
    %v517 = vld [vmem:[#allocation4 + $0x310] sm:$0xff]
    %v518 = vld [vmem:[#allocation4 + $0x318] sm:$0xff]
    %v519 = vld [vmem:[#allocation4 + $0x320] sm:$0xff]
    %v520 = vld [vmem:[#allocation4 + $0x328] sm:$0xff]
    %v521 = vld [vmem:[#allocation4 + $0x330] sm:$0xff]
    %v522 = vld [vmem:[#allocation4 + $0x338] sm:$0xff]
    %v523 = vld [vmem:[#allocation4 + $0x340] sm:$0xff]
    %v524 = vld [vmem:[#allocation4 + $0x348] sm:$0xff]
    %v525 = vld [vmem:[#allocation4 + $0x350] sm:$0xff]
    %v526 = vld [vmem:[#allocation4 + $0x358] sm:$0xff]
    %v527 = vld [vmem:[#allocation4 + $0x360] sm:$0xff]
    %v528 = vld [vmem:[#allocation4 + $0x368] sm:$0xff]
    %v529 = vld [vmem:[#allocation4 + $0x370] sm:$0xff]
    %v530 = vld [vmem:[#allocation4 + $0x378] sm:$0xff]
    %v531 = vld [vmem:[#allocation4 + $0x380] sm:$0xff]
    %v532 = vld [vmem:[#allocation4 + $0x388] sm:$0xff]
    %v533 = vld [vmem:[#allocation4 + $0x390] sm:$0xff]
    %v534 = vld [vmem:[#allocation4 + $0x398] sm:$0xff]
    %v535 = vld [vmem:[#allocation4 + $0x3a0] sm:$0xff]
    %v536 = vld [vmem:[#allocation4 + $0x3a8] sm:$0xff]
    %v537 = vld [vmem:[#allocation4 + $0x3b0] sm:$0xff]
    %v538 = vld [vmem:[#allocation4 + $0x3b8] sm:$0xff]
    %v539 = vld [vmem:[#allocation4 + $0x3c0] sm:$0xff]
    %v540 = vld [vmem:[#allocation4 + $0x3c8] sm:$0xff]
    %v541 = vld [vmem:[#allocation4 + $0x3d0] sm:$0xff]
    %v542 = vld [vmem:[#allocation4 + $0x3d8] sm:$0xff]
    %v543 = vld [vmem:[#allocation4 + $0x3e0] sm:$0xff]
    %v544 = vld [vmem:[#allocation4 + $0x3e8] sm:$0xff]
    %v545 = vld [vmem:[#allocation4 + $0x3f0] sm:$0xff]
    %v546 = vld [vmem:[#allocation4 + $0x3f8] sm:$0xff]
    %v547 = vld [vmem:[#allocation4 + $0x400] sm:$0xff]
    %v548 = vld [vmem:[#allocation4 + $0x408] sm:$0xff]
    %v549 = vld [vmem:[#allocation4 + $0x410] sm:$0xff]
    %v550 = vld [vmem:[#allocation4 + $0x418] sm:$0xff]
    %v551 = vld [vmem:[#allocation4 + $0x420] sm:$0xff]
    %v552 = vld [vmem:[#allocation4 + $0x428] sm:$0xff]
    %v553 = vld [vmem:[#allocation4 + $0x430] sm:$0xff]
    %v554 = vld [vmem:[#allocation4 + $0x438] sm:$0xff]
    %v555 = vld [vmem:[#allocation4 + $0x440] sm:$0xff]
    %v556 = vld [vmem:[#allocation4 + $0x448] sm:$0xff]
    %v557 = vld [vmem:[#allocation4 + $0x450] sm:$0xff]
    %v558 = vld [vmem:[#allocation4 + $0x458] sm:$0xff]
    %v559 = vld [vmem:[#allocation4 + $0x460] sm:$0xff]
    %v560 = vld [vmem:[#allocation4 + $0x468] sm:$0xff]
    %v561 = vld [vmem:[#allocation4 + $0x470] sm:$0xff]
    %v562 = vld [vmem:[#allocation4 + $0x478] sm:$0xff]
    %v563 = vld [vmem:[#allocation4 + $0x480] sm:$0xff]
    %v564 = vld [vmem:[#allocation4 + $0x488] sm:$0xff]
    %v565 = vld [vmem:[#allocation4 + $0x490] sm:$0xff]
    %v566 = vld [vmem:[#allocation4 + $0x498] sm:$0xff]
    %v567 = vld [vmem:[#allocation4 + $0x4a0] sm:$0xff]
    %v568 = vld [vmem:[#allocation4 + $0x4a8] sm:$0xff]
    %v569 = vld [vmem:[#allocation4 + $0x4b0] sm:$0xff]
    %v570 = vld [vmem:[#allocation4 + $0x4b8] sm:$0xff]
    %v571 = vld [vmem:[#allocation4 + $0x4c0] sm:$0xff]
    %v572 = vld [vmem:[#allocation4 + $0x4c8] sm:$0xff]
    %v573 = vld [vmem:[#allocation4 + $0x4d0] sm:$0xff]
    %v574 = vld [vmem:[#allocation4 + $0x4d8] sm:$0xff]
    %v575 = vld [vmem:[#allocation4 + $0x4e0] sm:$0xff]
    %v576 = vld [vmem:[#allocation4 + $0x4e8] sm:$0xff]
    %v577 = vld [vmem:[#allocation4 + $0x4f0] sm:$0xff]
    %v578 = vld [vmem:[#allocation4 + $0x4f8] sm:$0xff]
    %v579 = vld [vmem:[#allocation4 + $0x500] sm:$0xff]
    %v580 = vld [vmem:[#allocation4 + $0x508] sm:$0xff]
    %v581 = vld [vmem:[#allocation4 + $0x510] sm:$0xff]
    %v582 = vld [vmem:[#allocation4 + $0x518] sm:$0xff]
    %v583 = vld [vmem:[#allocation4 + $0x520] sm:$0xff]
    %v584 = vld [vmem:[#allocation4 + $0x528] sm:$0xff]
    %v585 = vld [vmem:[#allocation4 + $0x530] sm:$0xff]
    %v586 = vld [vmem:[#allocation4 + $0x538] sm:$0xff]
    %v587 = vld [vmem:[#allocation4 + $0x540] sm:$0xff]
    %v588 = vld [vmem:[#allocation4 + $0x548] sm:$0xff]
    %v589 = vld [vmem:[#allocation4 + $0x550] sm:$0xff]
    %v590 = vld [vmem:[#allocation4 + $0x558] sm:$0xff]
    %v591 = vld [vmem:[#allocation4 + $0x560] sm:$0xff]
    %v592 = vld [vmem:[#allocation4 + $0x568] sm:$0xff]
    %v593 = vld [vmem:[#allocation4 + $0x570] sm:$0xff]
    %v594 = vld [vmem:[#allocation4 + $0x578] sm:$0xff]
    %v595 = vld [vmem:[#allocation4 + $0x580] sm:$0xff]
    %v596 = vld [vmem:[#allocation4 + $0x588] sm:$0xff]
    %v597 = vld [vmem:[#allocation4 + $0x590] sm:$0xff]
    %v598 = vld [vmem:[#allocation4 + $0x598] sm:$0xff]
    %v599 = vld [vmem:[#allocation4 + $0x5a0] sm:$0xff]
    %v600 = vld [vmem:[#allocation4 + $0x5a8] sm:$0xff]
    %v601 = vld [vmem:[#allocation4 + $0x5b0] sm:$0xff]
    %v602 = vld [vmem:[#allocation4 + $0x5b8] sm:$0xff]
    %v603 = vld [vmem:[#allocation4 + $0x5c0] sm:$0xff]
    %v604 = vld [vmem:[#allocation4 + $0x5c8] sm:$0xff]
    %v605 = vld [vmem:[#allocation4 + $0x5d0] sm:$0xff]
    %v606 = vld [vmem:[#allocation4 + $0x5d8] sm:$0xff]
    %v607 = vld [vmem:[#allocation4 + $0x5e0] sm:$0xff]
    %v608 = vld [vmem:[#allocation4 + $0x5e8] sm:$0xff]
    %v609 = vld [vmem:[#allocation4 + $0x5f0] sm:$0xff]
    %v610 = vld [vmem:[#allocation4 + $0x5f8] sm:$0xff]
    %v611 = vld [vmem:[#allocation4 + $0x600] sm:$0xff]
    %v612 = vld [vmem:[#allocation4 + $0x608] sm:$0xff]
    %v613 = vld [vmem:[#allocation4 + $0x610] sm:$0xff]
    %v614 = vld [vmem:[#allocation4 + $0x618] sm:$0xff]
    %v615 = vld [vmem:[#allocation4 + $0x620] sm:$0xff]
    %v616 = vld [vmem:[#allocation4 + $0x628] sm:$0xff]
    %v617 = vld [vmem:[#allocation4 + $0x630] sm:$0xff]
    %v618 = vld [vmem:[#allocation4 + $0x638] sm:$0xff]
    %v619 = vld [vmem:[#allocation4 + $0x640] sm:$0xff]
    %v620 = vld [vmem:[#allocation4 + $0x648] sm:$0xff]
    %v621 = vld [vmem:[#allocation4 + $0x650] sm:$0xff]
    %v622 = vld [vmem:[#allocation4 + $0x658] sm:$0xff]
    %v623 = vld [vmem:[#allocation4 + $0x660] sm:$0xff]
    %v624 = vld [vmem:[#allocation4 + $0x668] sm:$0xff]
    %v625 = vld [vmem:[#allocation4 + $0x670] sm:$0xff]
    %v626 = vld [vmem:[#allocation4 + $0x678] sm:$0xff]
    %v627 = vld [vmem:[#allocation4 + $0x680] sm:$0xff]
    %v628 = vld [vmem:[#allocation4 + $0x688] sm:$0xff]
    %v629 = vld [vmem:[#allocation4 + $0x690] sm:$0xff]
    %v630 = vld [vmem:[#allocation4 + $0x698] sm:$0xff]
    %v631 = vld [vmem:[#allocation4 + $0x6a0] sm:$0xff]
    %v632 = vld [vmem:[#allocation4 + $0x6a8] sm:$0xff]
    %v633 = vld [vmem:[#allocation4 + $0x6b0] sm:$0xff]
    %v634 = vld [vmem:[#allocation4 + $0x6b8] sm:$0xff]
    %v635 = vld [vmem:[#allocation4 + $0x6c0] sm:$0xff]
    %v636 = vld [vmem:[#allocation4 + $0x6c8] sm:$0xff]
    %v637 = vld [vmem:[#allocation4 + $0x6d0] sm:$0xff]
    %v638 = vld [vmem:[#allocation4 + $0x6d8] sm:$0xff]
    %v639 = vld [vmem:[#allocation4 + $0x6e0] sm:$0xff]
    %v640 = vld [vmem:[#allocation4 + $0x6e8] sm:$0xff]
    %v641 = vld [vmem:[#allocation4 + $0x6f0] sm:$0xff]
    %v642 = vld [vmem:[#allocation4 + $0x6f8] sm:$0xff]
    %v643 = vld [vmem:[#allocation4 + $0x700] sm:$0xff]
    %v644 = vld [vmem:[#allocation4 + $0x708] sm:$0xff]
    %v645 = vld [vmem:[#allocation4 + $0x710] sm:$0xff]
    %v646 = vld [vmem:[#allocation4 + $0x718] sm:$0xff]
    %v647 = vld [vmem:[#allocation4 + $0x720] sm:$0xff]
    %v648 = vld [vmem:[#allocation4 + $0x728] sm:$0xff]
    %v649 = vld [vmem:[#allocation4 + $0x730] sm:$0xff]
    %v650 = vld [vmem:[#allocation4 + $0x738] sm:$0xff]
    %v651 = vld [vmem:[#allocation4 + $0x740] sm:$0xff]
    %v652 = vld [vmem:[#allocation4 + $0x748] sm:$0xff]
    %v653 = vld [vmem:[#allocation4 + $0x750] sm:$0xff]
    %v654 = vld [vmem:[#allocation4 + $0x758] sm:$0xff]
    %v655 = vld [vmem:[#allocation4 + $0x760] sm:$0xff]
    %v656 = vld [vmem:[#allocation4 + $0x768] sm:$0xff]
    %v657 = vld [vmem:[#allocation4 + $0x770] sm:$0xff]
    %v658 = vld [vmem:[#allocation4 + $0x778] sm:$0xff]
    %v659 = vld [vmem:[#allocation4 + $0x780] sm:$0xff]
    %v660 = vld [vmem:[#allocation4 + $0x788] sm:$0xff]
    %v661 = vld [vmem:[#allocation4 + $0x790] sm:$0xff]
    %v662 = vld [vmem:[#allocation4 + $0x798] sm:$0xff]
    %v663 = vld [vmem:[#allocation4 + $0x7a0] sm:$0xff]
    %v664 = vld [vmem:[#allocation4 + $0x7a8] sm:$0xff]
    %v665 = vld [vmem:[#allocation4 + $0x7b0] sm:$0xff]
    %v666 = vld [vmem:[#allocation4 + $0x7b8] sm:$0xff]
    %v667 = vld [vmem:[#allocation4 + $0x7c0] sm:$0xff]
    %v668 = vld [vmem:[#allocation4 + $0x7c8] sm:$0xff]
    %v669 = vld [vmem:[#allocation4 + $0x7d0] sm:$0xff]
    %v670 = vld [vmem:[#allocation4 + $0x7d8] sm:$0xff]
    %v671 = vld [vmem:[#allocation4 + $0x7e0] sm:$0xff]
    %v672 = vld [vmem:[#allocation4 + $0x7e8] sm:$0xff]
    %v673 = vld [vmem:[#allocation4 + $0x7f0] sm:$0xff]
    %v674 = vld [vmem:[#allocation4 + $0x7f8] sm:$0xff]
    %v675 = vld [vmem:[%s4] sm:$0xff]
    %v677 = vlaneseq
    %v678 = vshrl.u32 %v677, 7
    %v679 = vsub.s32 0, %v678
    %v680 = vrot.slane %v675, %v679
    %v681 = vlaneseq
    %v682 = vshrl.u32 %v681, 7
    %v683 = vsub.s32 1, %v682
    %v684 = vrot.slane %v675, %v683
    %v685 = vlaneseq
    %v686 = vshrl.u32 %v685, 7
    %v687 = vsub.s32 2, %v686
    %v688 = vrot.slane %v675, %v687
    %v689 = vlaneseq
    %v690 = vshrl.u32 %v689, 7
    %v691 = vsub.s32 3, %v690
    %v692 = vrot.slane %v675, %v691
    %v693 = vlaneseq
    %v694 = vshrl.u32 %v693, 7
    %v695 = vsub.s32 4, %v694
    %v696 = vrot.slane %v675, %v695
    %v697 = vlaneseq
    %v698 = vshrl.u32 %v697, 7
    %v699 = vsub.s32 5, %v698
    %v700 = vrot.slane %v675, %v699
    %v701 = vlaneseq
    %v702 = vshrl.u32 %v701, 7
    %v703 = vsub.s32 6, %v702
    %v704 = vrot.slane %v675, %v703
    %v705 = vlaneseq
    %v706 = vshrl.u32 %v705, 7
    %v707 = vsub.s32 7, %v706
    %v708 = vrot.slane %v675, %v707
    %v973 = vunpack.c.l.b16 %v419
    %v974 = vunpack.c.h.b16 %v419
    %v975 = vunpack.c.l.b16 %v420
    %v976 = vunpack.c.h.b16 %v420
    %v977 = vunpack.c.l.b16 %v421
    %v978 = vunpack.c.h.b16 %v421
    %v979 = vunpack.c.l.b16 %v422
    %v980 = vunpack.c.h.b16 %v422
    %v981 = vunpack.c.l.b16 %v423
    %v982 = vunpack.c.h.b16 %v423
    %v983 = vunpack.c.l.b16 %v424
    %v984 = vunpack.c.h.b16 %v424
    %v985 = vunpack.c.l.b16 %v425
    %v986 = vunpack.c.h.b16 %v425
    %v987 = vunpack.c.l.b16 %v426
    %v988 = vunpack.c.h.b16 %v426
    %v989 = vunpack.c.l.b16 %v427
    %v990 = vunpack.c.h.b16 %v427
    %v991 = vunpack.c.l.b16 %v428
    %v992 = vunpack.c.h.b16 %v428
    %v993 = vunpack.c.l.b16 %v429
    %v994 = vunpack.c.h.b16 %v429
    %v995 = vunpack.c.l.b16 %v430
    %v996 = vunpack.c.h.b16 %v430
    %v997 = vunpack.c.l.b16 %v431
    %v998 = vunpack.c.h.b16 %v431
    %v999 = vunpack.c.l.b16 %v432
    %v1000 = vunpack.c.h.b16 %v432
    %v1001 = vunpack.c.l.b16 %v433
    %v1002 = vunpack.c.h.b16 %v433
    %v1003 = vunpack.c.l.b16 %v434
    %v1004 = vunpack.c.h.b16 %v434
    %v1005 = vunpack.c.l.b16 %v435
    %v1006 = vunpack.c.h.b16 %v435
    %v1007 = vunpack.c.l.b16 %v436
    %v1008 = vunpack.c.h.b16 %v436
    %v1009 = vunpack.c.l.b16 %v437
    %v1010 = vunpack.c.h.b16 %v437
    %v1011 = vunpack.c.l.b16 %v438
    %v1012 = vunpack.c.h.b16 %v438
    %v1013 = vunpack.c.l.b16 %v439
    %v1014 = vunpack.c.h.b16 %v439
    %v1015 = vunpack.c.l.b16 %v440
    %v1016 = vunpack.c.h.b16 %v440
    %v1017 = vunpack.c.l.b16 %v441
    %v1018 = vunpack.c.h.b16 %v441
    %v1019 = vunpack.c.l.b16 %v442
    %v1020 = vunpack.c.h.b16 %v442
    %v1021 = vunpack.c.l.b16 %v443
    %v1022 = vunpack.c.h.b16 %v443
    %v1023 = vunpack.c.l.b16 %v444
    %v1024 = vunpack.c.h.b16 %v444
    %v1025 = vunpack.c.l.b16 %v445
    %v1026 = vunpack.c.h.b16 %v445
    %v1027 = vunpack.c.l.b16 %v446
    %v1028 = vunpack.c.h.b16 %v446
    %v1029 = vunpack.c.l.b16 %v447
    %v1030 = vunpack.c.h.b16 %v447
    %v1031 = vunpack.c.l.b16 %v448
    %v1032 = vunpack.c.h.b16 %v448
    %v1033 = vunpack.c.l.b16 %v449
    %v1034 = vunpack.c.h.b16 %v449
    %v1035 = vunpack.c.l.b16 %v450
    %v1036 = vunpack.c.h.b16 %v450
    %v1037 = vunpack.c.l.b16 %v451
    %v1038 = vunpack.c.h.b16 %v451
    %v1039 = vunpack.c.l.b16 %v452
    %v1040 = vunpack.c.h.b16 %v452
    %v1041 = vunpack.c.l.b16 %v453
    %v1042 = vunpack.c.h.b16 %v453
    %v1043 = vunpack.c.l.b16 %v454
    %v1044 = vunpack.c.h.b16 %v454
    %v1045 = vunpack.c.l.b16 %v455
    %v1046 = vunpack.c.h.b16 %v455
    %v1047 = vunpack.c.l.b16 %v456
    %v1048 = vunpack.c.h.b16 %v456
    %v1049 = vunpack.c.l.b16 %v457
    %v1050 = vunpack.c.h.b16 %v457
    %v1051 = vunpack.c.l.b16 %v458
    %v1052 = vunpack.c.h.b16 %v458
    %v1053 = vunpack.c.l.b16 %v459
    %v1054 = vunpack.c.h.b16 %v459
    %v1055 = vunpack.c.l.b16 %v460
    %v1056 = vunpack.c.h.b16 %v460
    %v1057 = vunpack.c.l.b16 %v461
    %v1058 = vunpack.c.h.b16 %v461
    %v1059 = vunpack.c.l.b16 %v462
    %v1060 = vunpack.c.h.b16 %v462
    %v1061 = vunpack.c.l.b16 %v463
    %v1062 = vunpack.c.h.b16 %v463
    %v1063 = vunpack.c.l.b16 %v464
    %v1064 = vunpack.c.h.b16 %v464
    %v1065 = vunpack.c.l.b16 %v465
    %v1066 = vunpack.c.h.b16 %v465
    %v1067 = vunpack.c.l.b16 %v466
    %v1068 = vunpack.c.h.b16 %v466
    %v1069 = vunpack.c.l.b16 %v467
    %v1070 = vunpack.c.h.b16 %v467
    %v1071 = vunpack.c.l.b16 %v468
    %v1072 = vunpack.c.h.b16 %v468
    %v1073 = vunpack.c.l.b16 %v469
    %v1074 = vunpack.c.h.b16 %v469
    %v1075 = vunpack.c.l.b16 %v470
    %v1076 = vunpack.c.h.b16 %v470
    %v1077 = vunpack.c.l.b16 %v471
    %v1078 = vunpack.c.h.b16 %v471
    %v1079 = vunpack.c.l.b16 %v472
    %v1080 = vunpack.c.h.b16 %v472
    %v1081 = vunpack.c.l.b16 %v473
    %v1082 = vunpack.c.h.b16 %v473
    %v1083 = vunpack.c.l.b16 %v474
    %v1084 = vunpack.c.h.b16 %v474
    %v1085 = vunpack.c.l.b16 %v475
    %v1086 = vunpack.c.h.b16 %v475
    %v1087 = vunpack.c.l.b16 %v476
    %v1088 = vunpack.c.h.b16 %v476
    %v1089 = vunpack.c.l.b16 %v477
    %v1090 = vunpack.c.h.b16 %v477
    %v1091 = vunpack.c.l.b16 %v478
    %v1092 = vunpack.c.h.b16 %v478
    %v1093 = vunpack.c.l.b16 %v479
    %v1094 = vunpack.c.h.b16 %v479
    %v1095 = vunpack.c.l.b16 %v480
    %v1096 = vunpack.c.h.b16 %v480
    %v1097 = vunpack.c.l.b16 %v481
    %v1098 = vunpack.c.h.b16 %v481
    %v1099 = vunpack.c.l.b16 %v482
    %v1100 = vunpack.c.h.b16 %v482
    %v1101 = vunpack.c.l.b16 %v483
    %v1102 = vunpack.c.h.b16 %v483
    %v1103 = vunpack.c.l.b16 %v484
    %v1104 = vunpack.c.h.b16 %v484
    %v1105 = vunpack.c.l.b16 %v485
    %v1106 = vunpack.c.h.b16 %v485
    %v1107 = vunpack.c.l.b16 %v486
    %v1108 = vunpack.c.h.b16 %v486
    %v1109 = vunpack.c.l.b16 %v487
    %v1110 = vunpack.c.h.b16 %v487
    %v1111 = vunpack.c.l.b16 %v488
    %v1112 = vunpack.c.h.b16 %v488
    %v1113 = vunpack.c.l.b16 %v489
    %v1114 = vunpack.c.h.b16 %v489
    %v1115 = vunpack.c.l.b16 %v490
    %v1116 = vunpack.c.h.b16 %v490
    %v1117 = vunpack.c.l.b16 %v491
    %v1118 = vunpack.c.h.b16 %v491
    %v1119 = vunpack.c.l.b16 %v492
    %v1120 = vunpack.c.h.b16 %v492
    %v1121 = vunpack.c.l.b16 %v493
    %v1122 = vunpack.c.h.b16 %v493
    %v1123 = vunpack.c.l.b16 %v494
    %v1124 = vunpack.c.h.b16 %v494
    %v1125 = vunpack.c.l.b16 %v495
    %v1126 = vunpack.c.h.b16 %v495
    %v1127 = vunpack.c.l.b16 %v496
    %v1128 = vunpack.c.h.b16 %v496
    %v1129 = vunpack.c.l.b16 %v497
    %v1130 = vunpack.c.h.b16 %v497
    %v1131 = vunpack.c.l.b16 %v498
    %v1132 = vunpack.c.h.b16 %v498
    %v1133 = vunpack.c.l.b16 %v499
    %v1134 = vunpack.c.h.b16 %v499
    %v1135 = vunpack.c.l.b16 %v500
    %v1136 = vunpack.c.h.b16 %v500
    %v1137 = vunpack.c.l.b16 %v501
    %v1138 = vunpack.c.h.b16 %v501
    %v1139 = vunpack.c.l.b16 %v502
    %v1140 = vunpack.c.h.b16 %v502
    %v1141 = vunpack.c.l.b16 %v503
    %v1142 = vunpack.c.h.b16 %v503
    %v1143 = vunpack.c.l.b16 %v504
    %v1144 = vunpack.c.h.b16 %v504
    %v1145 = vunpack.c.l.b16 %v505
    %v1146 = vunpack.c.h.b16 %v505
    %v1147 = vunpack.c.l.b16 %v506
    %v1148 = vunpack.c.h.b16 %v506
    %v1149 = vunpack.c.l.b16 %v507
    %v1150 = vunpack.c.h.b16 %v507
    %v1151 = vunpack.c.l.b16 %v508
    %v1152 = vunpack.c.h.b16 %v508
    %v1153 = vunpack.c.l.b16 %v509
    %v1154 = vunpack.c.h.b16 %v509
    %v1155 = vunpack.c.l.b16 %v510
    %v1156 = vunpack.c.h.b16 %v510
    %v1157 = vunpack.c.l.b16 %v511
    %v1158 = vunpack.c.h.b16 %v511
    %v1159 = vunpack.c.l.b16 %v512
    %v1160 = vunpack.c.h.b16 %v512
    %v1161 = vunpack.c.l.b16 %v513
    %v1162 = vunpack.c.h.b16 %v513
    %v1163 = vunpack.c.l.b16 %v514
    %v1164 = vunpack.c.h.b16 %v514
    %v1165 = vunpack.c.l.b16 %v515
    %v1166 = vunpack.c.h.b16 %v515
    %v1167 = vunpack.c.l.b16 %v516
    %v1168 = vunpack.c.h.b16 %v516
    %v1169 = vunpack.c.l.b16 %v517
    %v1170 = vunpack.c.h.b16 %v517
    %v1171 = vunpack.c.l.b16 %v518
    %v1172 = vunpack.c.h.b16 %v518
    %v1173 = vunpack.c.l.b16 %v519
    %v1174 = vunpack.c.h.b16 %v519
    %v1175 = vunpack.c.l.b16 %v520
    %v1176 = vunpack.c.h.b16 %v520
    %v1177 = vunpack.c.l.b16 %v521
    %v1178 = vunpack.c.h.b16 %v521
    %v1179 = vunpack.c.l.b16 %v522
    %v1180 = vunpack.c.h.b16 %v522
    %v1181 = vunpack.c.l.b16 %v523
    %v1182 = vunpack.c.h.b16 %v523
    %v1183 = vunpack.c.l.b16 %v524
    %v1184 = vunpack.c.h.b16 %v524
    %v1185 = vunpack.c.l.b16 %v525
    %v1186 = vunpack.c.h.b16 %v525
    %v1187 = vunpack.c.l.b16 %v526
    %v1188 = vunpack.c.h.b16 %v526
    %v1189 = vunpack.c.l.b16 %v527
    %v1190 = vunpack.c.h.b16 %v527
    %v1191 = vunpack.c.l.b16 %v528
    %v1192 = vunpack.c.h.b16 %v528
    %v1193 = vunpack.c.l.b16 %v529
    %v1194 = vunpack.c.h.b16 %v529
    %v1195 = vunpack.c.l.b16 %v530
    %v1196 = vunpack.c.h.b16 %v530
    %v1197 = vunpack.c.l.b16 %v531
    %v1198 = vunpack.c.h.b16 %v531
    %v1199 = vunpack.c.l.b16 %v532
    %v1200 = vunpack.c.h.b16 %v532
    %v1201 = vunpack.c.l.b16 %v533
    %v1202 = vunpack.c.h.b16 %v533
    %v1203 = vunpack.c.l.b16 %v534
    %v1204 = vunpack.c.h.b16 %v534
    %v1205 = vunpack.c.l.b16 %v535
    %v1206 = vunpack.c.h.b16 %v535
    %v1207 = vunpack.c.l.b16 %v536
    %v1208 = vunpack.c.h.b16 %v536
    %v1209 = vunpack.c.l.b16 %v537
    %v1210 = vunpack.c.h.b16 %v537
    %v1211 = vunpack.c.l.b16 %v538
    %v1212 = vunpack.c.h.b16 %v538
    %v1213 = vunpack.c.l.b16 %v539
    %v1214 = vunpack.c.h.b16 %v539
    %v1215 = vunpack.c.l.b16 %v540
    %v1216 = vunpack.c.h.b16 %v540
    %v1217 = vunpack.c.l.b16 %v541
    %v1218 = vunpack.c.h.b16 %v541
    %v1219 = vunpack.c.l.b16 %v542
    %v1220 = vunpack.c.h.b16 %v542
    %v1221 = vunpack.c.l.b16 %v543
    %v1222 = vunpack.c.h.b16 %v543
    %v1223 = vunpack.c.l.b16 %v544
    %v1224 = vunpack.c.h.b16 %v544
    %v1225 = vunpack.c.l.b16 %v545
    %v1226 = vunpack.c.h.b16 %v545
    %v1227 = vunpack.c.l.b16 %v546
    %v1228 = vunpack.c.h.b16 %v546
    %v1229 = vunpack.c.l.b16 %v547
    %v1230 = vunpack.c.h.b16 %v547
    %v1231 = vunpack.c.l.b16 %v548
    %v1232 = vunpack.c.h.b16 %v548
    %v1233 = vunpack.c.l.b16 %v549
    %v1234 = vunpack.c.h.b16 %v549
    %v1235 = vunpack.c.l.b16 %v550
    %v1236 = vunpack.c.h.b16 %v550
    %v1237 = vunpack.c.l.b16 %v551
    %v1238 = vunpack.c.h.b16 %v551
    %v1239 = vunpack.c.l.b16 %v552
    %v1240 = vunpack.c.h.b16 %v552
    %v1241 = vunpack.c.l.b16 %v553
    %v1242 = vunpack.c.h.b16 %v553
    %v1243 = vunpack.c.l.b16 %v554
    %v1244 = vunpack.c.h.b16 %v554
    %v1245 = vunpack.c.l.b16 %v555
    %v1246 = vunpack.c.h.b16 %v555
    %v1247 = vunpack.c.l.b16 %v556
    %v1248 = vunpack.c.h.b16 %v556
    %v1249 = vunpack.c.l.b16 %v557
    %v1250 = vunpack.c.h.b16 %v557
    %v1251 = vunpack.c.l.b16 %v558
    %v1252 = vunpack.c.h.b16 %v558
    %v1253 = vunpack.c.l.b16 %v559
    %v1254 = vunpack.c.h.b16 %v559
    %v1255 = vunpack.c.l.b16 %v560
    %v1256 = vunpack.c.h.b16 %v560
    %v1257 = vunpack.c.l.b16 %v561
    %v1258 = vunpack.c.h.b16 %v561
    %v1259 = vunpack.c.l.b16 %v562
    %v1260 = vunpack.c.h.b16 %v562
    %v1261 = vunpack.c.l.b16 %v563
    %v1262 = vunpack.c.h.b16 %v563
    %v1263 = vunpack.c.l.b16 %v564
    %v1264 = vunpack.c.h.b16 %v564
    %v1265 = vunpack.c.l.b16 %v565
    %v1266 = vunpack.c.h.b16 %v565
    %v1267 = vunpack.c.l.b16 %v566
    %v1268 = vunpack.c.h.b16 %v566
    %v1269 = vunpack.c.l.b16 %v567
    %v1270 = vunpack.c.h.b16 %v567
    %v1271 = vunpack.c.l.b16 %v568
    %v1272 = vunpack.c.h.b16 %v568
    %v1273 = vunpack.c.l.b16 %v569
    %v1274 = vunpack.c.h.b16 %v569
    %v1275 = vunpack.c.l.b16 %v570
    %v1276 = vunpack.c.h.b16 %v570
    %v1277 = vunpack.c.l.b16 %v571
    %v1278 = vunpack.c.h.b16 %v571
    %v1279 = vunpack.c.l.b16 %v572
    %v1280 = vunpack.c.h.b16 %v572
    %v1281 = vunpack.c.l.b16 %v573
    %v1282 = vunpack.c.h.b16 %v573
    %v1283 = vunpack.c.l.b16 %v574
    %v1284 = vunpack.c.h.b16 %v574
    %v1285 = vunpack.c.l.b16 %v575
    %v1286 = vunpack.c.h.b16 %v575
    %v1287 = vunpack.c.l.b16 %v576
    %v1288 = vunpack.c.h.b16 %v576
    %v1289 = vunpack.c.l.b16 %v577
    %v1290 = vunpack.c.h.b16 %v577
    %v1291 = vunpack.c.l.b16 %v578
    %v1292 = vunpack.c.h.b16 %v578
    %v1293 = vunpack.c.l.b16 %v579
    %v1294 = vunpack.c.h.b16 %v579
    %v1295 = vunpack.c.l.b16 %v580
    %v1296 = vunpack.c.h.b16 %v580
    %v1297 = vunpack.c.l.b16 %v581
    %v1298 = vunpack.c.h.b16 %v581
    %v1299 = vunpack.c.l.b16 %v582
    %v1300 = vunpack.c.h.b16 %v582
    %v1301 = vunpack.c.l.b16 %v583
    %v1302 = vunpack.c.h.b16 %v583
    %v1303 = vunpack.c.l.b16 %v584
    %v1304 = vunpack.c.h.b16 %v584
    %v1305 = vunpack.c.l.b16 %v585
    %v1306 = vunpack.c.h.b16 %v585
    %v1307 = vunpack.c.l.b16 %v586
    %v1308 = vunpack.c.h.b16 %v586
    %v1309 = vunpack.c.l.b16 %v587
    %v1310 = vunpack.c.h.b16 %v587
    %v1311 = vunpack.c.l.b16 %v588
    %v1312 = vunpack.c.h.b16 %v588
    %v1313 = vunpack.c.l.b16 %v589
    %v1314 = vunpack.c.h.b16 %v589
    %v1315 = vunpack.c.l.b16 %v590
    %v1316 = vunpack.c.h.b16 %v590
    %v1317 = vunpack.c.l.b16 %v591
    %v1318 = vunpack.c.h.b16 %v591
    %v1319 = vunpack.c.l.b16 %v592
    %v1320 = vunpack.c.h.b16 %v592
    %v1321 = vunpack.c.l.b16 %v593
    %v1322 = vunpack.c.h.b16 %v593
    %v1323 = vunpack.c.l.b16 %v594
    %v1324 = vunpack.c.h.b16 %v594
    %v1325 = vunpack.c.l.b16 %v595
    %v1326 = vunpack.c.h.b16 %v595
    %v1327 = vunpack.c.l.b16 %v596
    %v1328 = vunpack.c.h.b16 %v596
    %v1329 = vunpack.c.l.b16 %v597
    %v1330 = vunpack.c.h.b16 %v597
    %v1331 = vunpack.c.l.b16 %v598
    %v1332 = vunpack.c.h.b16 %v598
    %v1333 = vunpack.c.l.b16 %v599
    %v1334 = vunpack.c.h.b16 %v599
    %v1335 = vunpack.c.l.b16 %v600
    %v1336 = vunpack.c.h.b16 %v600
    %v1337 = vunpack.c.l.b16 %v601
    %v1338 = vunpack.c.h.b16 %v601
    %v1339 = vunpack.c.l.b16 %v602
    %v1340 = vunpack.c.h.b16 %v602
    %v1341 = vunpack.c.l.b16 %v603
    %v1342 = vunpack.c.h.b16 %v603
    %v1343 = vunpack.c.l.b16 %v604
    %v1344 = vunpack.c.h.b16 %v604
    %v1345 = vunpack.c.l.b16 %v605
    %v1346 = vunpack.c.h.b16 %v605
    %v1347 = vunpack.c.l.b16 %v606
    %v1348 = vunpack.c.h.b16 %v606
    %v1349 = vunpack.c.l.b16 %v607
    %v1350 = vunpack.c.h.b16 %v607
    %v1351 = vunpack.c.l.b16 %v608
    %v1352 = vunpack.c.h.b16 %v608
    %v1353 = vunpack.c.l.b16 %v609
    %v1354 = vunpack.c.h.b16 %v609
    %v1355 = vunpack.c.l.b16 %v610
    %v1356 = vunpack.c.h.b16 %v610
    %v1357 = vunpack.c.l.b16 %v611
    %v1358 = vunpack.c.h.b16 %v611
    %v1359 = vunpack.c.l.b16 %v612
    %v1360 = vunpack.c.h.b16 %v612
    %v1361 = vunpack.c.l.b16 %v613
    %v1362 = vunpack.c.h.b16 %v613
    %v1363 = vunpack.c.l.b16 %v614
    %v1364 = vunpack.c.h.b16 %v614
    %v1365 = vunpack.c.l.b16 %v615
    %v1366 = vunpack.c.h.b16 %v615
    %v1367 = vunpack.c.l.b16 %v616
    %v1368 = vunpack.c.h.b16 %v616
    %v1369 = vunpack.c.l.b16 %v617
    %v1370 = vunpack.c.h.b16 %v617
    %v1371 = vunpack.c.l.b16 %v618
    %v1372 = vunpack.c.h.b16 %v618
    %v1373 = vunpack.c.l.b16 %v619
    %v1374 = vunpack.c.h.b16 %v619
    %v1375 = vunpack.c.l.b16 %v620
    %v1376 = vunpack.c.h.b16 %v620
    %v1377 = vunpack.c.l.b16 %v621
    %v1378 = vunpack.c.h.b16 %v621
    %v1379 = vunpack.c.l.b16 %v622
    %v1380 = vunpack.c.h.b16 %v622
    %v1381 = vunpack.c.l.b16 %v623
    %v1382 = vunpack.c.h.b16 %v623
    %v1383 = vunpack.c.l.b16 %v624
    %v1384 = vunpack.c.h.b16 %v624
    %v1385 = vunpack.c.l.b16 %v625
    %v1386 = vunpack.c.h.b16 %v625
    %v1387 = vunpack.c.l.b16 %v626
    %v1388 = vunpack.c.h.b16 %v626
    %v1389 = vunpack.c.l.b16 %v627
    %v1390 = vunpack.c.h.b16 %v627
    %v1391 = vunpack.c.l.b16 %v628
    %v1392 = vunpack.c.h.b16 %v628
    %v1393 = vunpack.c.l.b16 %v629
    %v1394 = vunpack.c.h.b16 %v629
    %v1395 = vunpack.c.l.b16 %v630
    %v1396 = vunpack.c.h.b16 %v630
    %v1397 = vunpack.c.l.b16 %v631
    %v1398 = vunpack.c.h.b16 %v631
    %v1399 = vunpack.c.l.b16 %v632
    %v1400 = vunpack.c.h.b16 %v632
    %v1401 = vunpack.c.l.b16 %v633
    %v1402 = vunpack.c.h.b16 %v633
    %v1403 = vunpack.c.l.b16 %v634
    %v1404 = vunpack.c.h.b16 %v634
    %v1405 = vunpack.c.l.b16 %v635
    %v1406 = vunpack.c.h.b16 %v635
    %v1407 = vunpack.c.l.b16 %v636
    %v1408 = vunpack.c.h.b16 %v636
    %v1409 = vunpack.c.l.b16 %v637
    %v1410 = vunpack.c.h.b16 %v637
    %v1411 = vunpack.c.l.b16 %v638
    %v1412 = vunpack.c.h.b16 %v638
    %v1413 = vunpack.c.l.b16 %v639
    %v1414 = vunpack.c.h.b16 %v639
    %v1415 = vunpack.c.l.b16 %v640
    %v1416 = vunpack.c.h.b16 %v640
    %v1417 = vunpack.c.l.b16 %v641
    %v1418 = vunpack.c.h.b16 %v641
    %v1419 = vunpack.c.l.b16 %v642
    %v1420 = vunpack.c.h.b16 %v642
    %v1421 = vunpack.c.l.b16 %v643
    %v1422 = vunpack.c.h.b16 %v643
    %v1423 = vunpack.c.l.b16 %v644
    %v1424 = vunpack.c.h.b16 %v644
    %v1425 = vunpack.c.l.b16 %v645
    %v1426 = vunpack.c.h.b16 %v645
    %v1427 = vunpack.c.l.b16 %v646
    %v1428 = vunpack.c.h.b16 %v646
    %v1429 = vunpack.c.l.b16 %v647
    %v1430 = vunpack.c.h.b16 %v647
    %v1431 = vunpack.c.l.b16 %v648
    %v1432 = vunpack.c.h.b16 %v648
    %v1433 = vunpack.c.l.b16 %v649
    %v1434 = vunpack.c.h.b16 %v649
    %v1435 = vunpack.c.l.b16 %v650
    %v1436 = vunpack.c.h.b16 %v650
    %v1437 = vunpack.c.l.b16 %v651
    %v1438 = vunpack.c.h.b16 %v651
    %v1439 = vunpack.c.l.b16 %v652
    %v1440 = vunpack.c.h.b16 %v652
    %v1441 = vunpack.c.l.b16 %v653
    %v1442 = vunpack.c.h.b16 %v653
    %v1443 = vunpack.c.l.b16 %v654
    %v1444 = vunpack.c.h.b16 %v654
    %v1445 = vunpack.c.l.b16 %v655
    %v1446 = vunpack.c.h.b16 %v655
    %v1447 = vunpack.c.l.b16 %v656
    %v1448 = vunpack.c.h.b16 %v656
    %v1449 = vunpack.c.l.b16 %v657
    %v1450 = vunpack.c.h.b16 %v657
    %v1451 = vunpack.c.l.b16 %v658
    %v1452 = vunpack.c.h.b16 %v658
    %v1453 = vunpack.c.l.b16 %v659
    %v1454 = vunpack.c.h.b16 %v659
    %v1455 = vunpack.c.l.b16 %v660
    %v1456 = vunpack.c.h.b16 %v660
    %v1457 = vunpack.c.l.b16 %v661
    %v1458 = vunpack.c.h.b16 %v661
    %v1459 = vunpack.c.l.b16 %v662
    %v1460 = vunpack.c.h.b16 %v662
    %v1461 = vunpack.c.l.b16 %v663
    %v1462 = vunpack.c.h.b16 %v663
    %v1463 = vunpack.c.l.b16 %v664
    %v1464 = vunpack.c.h.b16 %v664
    %v1465 = vunpack.c.l.b16 %v665
    %v1466 = vunpack.c.h.b16 %v665
    %v1467 = vunpack.c.l.b16 %v666
    %v1468 = vunpack.c.h.b16 %v666
    %v1469 = vunpack.c.l.b16 %v667
    %v1470 = vunpack.c.h.b16 %v667
    %v1471 = vunpack.c.l.b16 %v668
    %v1472 = vunpack.c.h.b16 %v668
    %v1473 = vunpack.c.l.b16 %v669
    %v1474 = vunpack.c.h.b16 %v669
    %v1475 = vunpack.c.l.b16 %v670
    %v1476 = vunpack.c.h.b16 %v670
    %v1477 = vunpack.c.l.b16 %v671
    %v1478 = vunpack.c.h.b16 %v671
    %v1479 = vunpack.c.l.b16 %v672
    %v1480 = vunpack.c.h.b16 %v672
    %v1481 = vunpack.c.l.b16 %v673
    %v1482 = vunpack.c.h.b16 %v673
    %v1483 = vunpack.c.l.b16 %v674
    %v1484 = vunpack.c.h.b16 %v674
    %v1485 = vpack.c.b16 %v981, %v973
    %v1486 = vpack.c.b16 %v982, %v974
    %v1487 = vpack.c.b16 %v983, %v975
    %v1488 = vpack.c.b16 %v984, %v976
    %v1489 = vpack.c.b16 %v985, %v977
    %v1490 = vpack.c.b16 %v986, %v978
    %v1491 = vpack.c.b16 %v987, %v979
    %v1492 = vpack.c.b16 %v988, %v980
    %v1493 = vpack.c.b16 %v997, %v989
    %v1494 = vpack.c.b16 %v998, %v990
    %v1495 = vpack.c.b16 %v999, %v991
    %v1496 = vpack.c.b16 %v1000, %v992
    %v1497 = vpack.c.b16 %v1001, %v993
    %v1498 = vpack.c.b16 %v1002, %v994
    %v1499 = vpack.c.b16 %v1003, %v995
    %v1500 = vpack.c.b16 %v1004, %v996
    %v1501 = vpack.c.b16 %v1013, %v1005
    %v1502 = vpack.c.b16 %v1014, %v1006
    %v1503 = vpack.c.b16 %v1015, %v1007
    %v1504 = vpack.c.b16 %v1016, %v1008
    %v1505 = vpack.c.b16 %v1017, %v1009
    %v1506 = vpack.c.b16 %v1018, %v1010
    %v1507 = vpack.c.b16 %v1019, %v1011
    %v1508 = vpack.c.b16 %v1020, %v1012
    %v1509 = vpack.c.b16 %v1029, %v1021
    %v1510 = vpack.c.b16 %v1030, %v1022
    %v1511 = vpack.c.b16 %v1031, %v1023
    %v1512 = vpack.c.b16 %v1032, %v1024
    %v1513 = vpack.c.b16 %v1033, %v1025
    %v1514 = vpack.c.b16 %v1034, %v1026
    %v1515 = vpack.c.b16 %v1035, %v1027
    %v1516 = vpack.c.b16 %v1036, %v1028
    %v1517 = vpack.c.b16 %v1045, %v1037
    %v1518 = vpack.c.b16 %v1046, %v1038
    %v1519 = vpack.c.b16 %v1047, %v1039
    %v1520 = vpack.c.b16 %v1048, %v1040
    %v1521 = vpack.c.b16 %v1049, %v1041
    %v1522 = vpack.c.b16 %v1050, %v1042
    %v1523 = vpack.c.b16 %v1051, %v1043
    %v1524 = vpack.c.b16 %v1052, %v1044
    %v1525 = vpack.c.b16 %v1061, %v1053
    %v1526 = vpack.c.b16 %v1062, %v1054
    %v1527 = vpack.c.b16 %v1063, %v1055
    %v1528 = vpack.c.b16 %v1064, %v1056
    %v1529 = vpack.c.b16 %v1065, %v1057
    %v1530 = vpack.c.b16 %v1066, %v1058
    %v1531 = vpack.c.b16 %v1067, %v1059
    %v1532 = vpack.c.b16 %v1068, %v1060
    %v1533 = vpack.c.b16 %v1077, %v1069
    %v1534 = vpack.c.b16 %v1078, %v1070
    %v1535 = vpack.c.b16 %v1079, %v1071
    %v1536 = vpack.c.b16 %v1080, %v1072
    %v1537 = vpack.c.b16 %v1081, %v1073
    %v1538 = vpack.c.b16 %v1082, %v1074
    %v1539 = vpack.c.b16 %v1083, %v1075
    %v1540 = vpack.c.b16 %v1084, %v1076
    %v1541 = vpack.c.b16 %v1093, %v1085
    %v1542 = vpack.c.b16 %v1094, %v1086
    %v1543 = vpack.c.b16 %v1095, %v1087
    %v1544 = vpack.c.b16 %v1096, %v1088
    %v1545 = vpack.c.b16 %v1097, %v1089
    %v1546 = vpack.c.b16 %v1098, %v1090
    %v1547 = vpack.c.b16 %v1099, %v1091
    %v1548 = vpack.c.b16 %v1100, %v1092
    %v1549 = vpack.c.b16 %v1109, %v1101
    %v1550 = vpack.c.b16 %v1110, %v1102
    %v1551 = vpack.c.b16 %v1111, %v1103
    %v1552 = vpack.c.b16 %v1112, %v1104
    %v1553 = vpack.c.b16 %v1113, %v1105
    %v1554 = vpack.c.b16 %v1114, %v1106
    %v1555 = vpack.c.b16 %v1115, %v1107
    %v1556 = vpack.c.b16 %v1116, %v1108
    %v1557 = vpack.c.b16 %v1125, %v1117
    %v1558 = vpack.c.b16 %v1126, %v1118
    %v1559 = vpack.c.b16 %v1127, %v1119
    %v1560 = vpack.c.b16 %v1128, %v1120
    %v1561 = vpack.c.b16 %v1129, %v1121
    %v1562 = vpack.c.b16 %v1130, %v1122
    %v1563 = vpack.c.b16 %v1131, %v1123
    %v1564 = vpack.c.b16 %v1132, %v1124
    %v1565 = vpack.c.b16 %v1141, %v1133
    %v1566 = vpack.c.b16 %v1142, %v1134
    %v1567 = vpack.c.b16 %v1143, %v1135
    %v1568 = vpack.c.b16 %v1144, %v1136
    %v1569 = vpack.c.b16 %v1145, %v1137
    %v1570 = vpack.c.b16 %v1146, %v1138
    %v1571 = vpack.c.b16 %v1147, %v1139
    %v1572 = vpack.c.b16 %v1148, %v1140
    %v1573 = vpack.c.b16 %v1157, %v1149
    %v1574 = vpack.c.b16 %v1158, %v1150
    %v1575 = vpack.c.b16 %v1159, %v1151
    %v1576 = vpack.c.b16 %v1160, %v1152
    %v1577 = vpack.c.b16 %v1161, %v1153
    %v1578 = vpack.c.b16 %v1162, %v1154
    %v1579 = vpack.c.b16 %v1163, %v1155
    %v1580 = vpack.c.b16 %v1164, %v1156
    %v1581 = vpack.c.b16 %v1173, %v1165
    %v1582 = vpack.c.b16 %v1174, %v1166
    %v1583 = vpack.c.b16 %v1175, %v1167
    %v1584 = vpack.c.b16 %v1176, %v1168
    %v1585 = vpack.c.b16 %v1177, %v1169
    %v1586 = vpack.c.b16 %v1178, %v1170
    %v1587 = vpack.c.b16 %v1179, %v1171
    %v1588 = vpack.c.b16 %v1180, %v1172
    %v1589 = vpack.c.b16 %v1189, %v1181
    %v1590 = vpack.c.b16 %v1190, %v1182
    %v1591 = vpack.c.b16 %v1191, %v1183
    %v1592 = vpack.c.b16 %v1192, %v1184
    %v1593 = vpack.c.b16 %v1193, %v1185
    %v1594 = vpack.c.b16 %v1194, %v1186
    %v1595 = vpack.c.b16 %v1195, %v1187
    %v1596 = vpack.c.b16 %v1196, %v1188
    %v1597 = vpack.c.b16 %v1205, %v1197
    %v1598 = vpack.c.b16 %v1206, %v1198
    %v1599 = vpack.c.b16 %v1207, %v1199
    %v1600 = vpack.c.b16 %v1208, %v1200
    %v1601 = vpack.c.b16 %v1209, %v1201
    %v1602 = vpack.c.b16 %v1210, %v1202
    %v1603 = vpack.c.b16 %v1211, %v1203
    %v1604 = vpack.c.b16 %v1212, %v1204
    %v1605 = vpack.c.b16 %v1221, %v1213
    %v1606 = vpack.c.b16 %v1222, %v1214
    %v1607 = vpack.c.b16 %v1223, %v1215
    %v1608 = vpack.c.b16 %v1224, %v1216
    %v1609 = vpack.c.b16 %v1225, %v1217
    %v1610 = vpack.c.b16 %v1226, %v1218
    %v1611 = vpack.c.b16 %v1227, %v1219
    %v1612 = vpack.c.b16 %v1228, %v1220
    %v1613 = vpack.c.b16 %v1237, %v1229
    %v1614 = vpack.c.b16 %v1238, %v1230
    %v1615 = vpack.c.b16 %v1239, %v1231
    %v1616 = vpack.c.b16 %v1240, %v1232
    %v1617 = vpack.c.b16 %v1241, %v1233
    %v1618 = vpack.c.b16 %v1242, %v1234
    %v1619 = vpack.c.b16 %v1243, %v1235
    %v1620 = vpack.c.b16 %v1244, %v1236
    %v1621 = vpack.c.b16 %v1253, %v1245
    %v1622 = vpack.c.b16 %v1254, %v1246
    %v1623 = vpack.c.b16 %v1255, %v1247
    %v1624 = vpack.c.b16 %v1256, %v1248
    %v1625 = vpack.c.b16 %v1257, %v1249
    %v1626 = vpack.c.b16 %v1258, %v1250
    %v1627 = vpack.c.b16 %v1259, %v1251
    %v1628 = vpack.c.b16 %v1260, %v1252
    %v1629 = vpack.c.b16 %v1269, %v1261
    %v1630 = vpack.c.b16 %v1270, %v1262
    %v1631 = vpack.c.b16 %v1271, %v1263
    %v1632 = vpack.c.b16 %v1272, %v1264
    %v1633 = vpack.c.b16 %v1273, %v1265
    %v1634 = vpack.c.b16 %v1274, %v1266
    %v1635 = vpack.c.b16 %v1275, %v1267
    %v1636 = vpack.c.b16 %v1276, %v1268
    %v1637 = vpack.c.b16 %v1285, %v1277
    %v1638 = vpack.c.b16 %v1286, %v1278
    %v1639 = vpack.c.b16 %v1287, %v1279
    %v1640 = vpack.c.b16 %v1288, %v1280
    %v1641 = vpack.c.b16 %v1289, %v1281
    %v1642 = vpack.c.b16 %v1290, %v1282
    %v1643 = vpack.c.b16 %v1291, %v1283
    %v1644 = vpack.c.b16 %v1292, %v1284
    %v1645 = vpack.c.b16 %v1301, %v1293
    %v1646 = vpack.c.b16 %v1302, %v1294
    %v1647 = vpack.c.b16 %v1303, %v1295
    %v1648 = vpack.c.b16 %v1304, %v1296
    %v1649 = vpack.c.b16 %v1305, %v1297
    %v1650 = vpack.c.b16 %v1306, %v1298
    %v1651 = vpack.c.b16 %v1307, %v1299
    %v1652 = vpack.c.b16 %v1308, %v1300
    %v1653 = vpack.c.b16 %v1317, %v1309
    %v1654 = vpack.c.b16 %v1318, %v1310
    %v1655 = vpack.c.b16 %v1319, %v1311
    %v1656 = vpack.c.b16 %v1320, %v1312
    %v1657 = vpack.c.b16 %v1321, %v1313
    %v1658 = vpack.c.b16 %v1322, %v1314
    %v1659 = vpack.c.b16 %v1323, %v1315
    %v1660 = vpack.c.b16 %v1324, %v1316
    %v1661 = vpack.c.b16 %v1333, %v1325
    %v1662 = vpack.c.b16 %v1334, %v1326
    %v1663 = vpack.c.b16 %v1335, %v1327
    %v1664 = vpack.c.b16 %v1336, %v1328
    %v1665 = vpack.c.b16 %v1337, %v1329
    %v1666 = vpack.c.b16 %v1338, %v1330
    %v1667 = vpack.c.b16 %v1339, %v1331
    %v1668 = vpack.c.b16 %v1340, %v1332
    %v1669 = vpack.c.b16 %v1349, %v1341
    %v1670 = vpack.c.b16 %v1350, %v1342
    %v1671 = vpack.c.b16 %v1351, %v1343
    %v1672 = vpack.c.b16 %v1352, %v1344
    %v1673 = vpack.c.b16 %v1353, %v1345
    %v1674 = vpack.c.b16 %v1354, %v1346
    %v1675 = vpack.c.b16 %v1355, %v1347
    %v1676 = vpack.c.b16 %v1356, %v1348
    %v1677 = vpack.c.b16 %v1365, %v1357
    %v1678 = vpack.c.b16 %v1366, %v1358
    %v1679 = vpack.c.b16 %v1367, %v1359
    %v1680 = vpack.c.b16 %v1368, %v1360
    %v1681 = vpack.c.b16 %v1369, %v1361
    %v1682 = vpack.c.b16 %v1370, %v1362
    %v1683 = vpack.c.b16 %v1371, %v1363
    %v1684 = vpack.c.b16 %v1372, %v1364
    %v1685 = vpack.c.b16 %v1381, %v1373
    %v1686 = vpack.c.b16 %v1382, %v1374
    %v1687 = vpack.c.b16 %v1383, %v1375
    %v1688 = vpack.c.b16 %v1384, %v1376
    %v1689 = vpack.c.b16 %v1385, %v1377
    %v1690 = vpack.c.b16 %v1386, %v1378
    %v1691 = vpack.c.b16 %v1387, %v1379
    %v1692 = vpack.c.b16 %v1388, %v1380
    %v1693 = vpack.c.b16 %v1397, %v1389
    %v1694 = vpack.c.b16 %v1398, %v1390
    %v1695 = vpack.c.b16 %v1399, %v1391
    %v1696 = vpack.c.b16 %v1400, %v1392
    %v1697 = vpack.c.b16 %v1401, %v1393
    %v1698 = vpack.c.b16 %v1402, %v1394
    %v1699 = vpack.c.b16 %v1403, %v1395
    %v1700 = vpack.c.b16 %v1404, %v1396
    %v1701 = vpack.c.b16 %v1413, %v1405
    %v1702 = vpack.c.b16 %v1414, %v1406
    %v1703 = vpack.c.b16 %v1415, %v1407
    %v1704 = vpack.c.b16 %v1416, %v1408
    %v1705 = vpack.c.b16 %v1417, %v1409
    %v1706 = vpack.c.b16 %v1418, %v1410
    %v1707 = vpack.c.b16 %v1419, %v1411
    %v1708 = vpack.c.b16 %v1420, %v1412
    %v1709 = vpack.c.b16 %v1429, %v1421
    %v1710 = vpack.c.b16 %v1430, %v1422
    %v1711 = vpack.c.b16 %v1431, %v1423
    %v1712 = vpack.c.b16 %v1432, %v1424
    %v1713 = vpack.c.b16 %v1433, %v1425
    %v1714 = vpack.c.b16 %v1434, %v1426
    %v1715 = vpack.c.b16 %v1435, %v1427
    %v1716 = vpack.c.b16 %v1436, %v1428
    %v1717 = vpack.c.b16 %v1445, %v1437
    %v1718 = vpack.c.b16 %v1446, %v1438
    %v1719 = vpack.c.b16 %v1447, %v1439
    %v1720 = vpack.c.b16 %v1448, %v1440
    %v1721 = vpack.c.b16 %v1449, %v1441
    %v1722 = vpack.c.b16 %v1450, %v1442
    %v1723 = vpack.c.b16 %v1451, %v1443
    %v1724 = vpack.c.b16 %v1452, %v1444
    %v1725 = vpack.c.b16 %v1461, %v1453
    %v1726 = vpack.c.b16 %v1462, %v1454
    %v1727 = vpack.c.b16 %v1463, %v1455
    %v1728 = vpack.c.b16 %v1464, %v1456
    %v1729 = vpack.c.b16 %v1465, %v1457
    %v1730 = vpack.c.b16 %v1466, %v1458
    %v1731 = vpack.c.b16 %v1467, %v1459
    %v1732 = vpack.c.b16 %v1468, %v1460
    %v1733 = vpack.c.b16 %v1477, %v1469
    %v1734 = vpack.c.b16 %v1478, %v1470
    %v1735 = vpack.c.b16 %v1479, %v1471
    %v1736 = vpack.c.b16 %v1480, %v1472
    %v1737 = vpack.c.b16 %v1481, %v1473
    %v1738 = vpack.c.b16 %v1482, %v1474
    %v1739 = vpack.c.b16 %v1483, %v1475
    %v1740 = vpack.c.b16 %v1484, %v1476
    %1997 = vmatprep.subr.bf16.mxu0 %v1486
    %1998 = vmatpush1.bf16.msra.mxu0 %v1485
    %1999 = vmatprep.subr.bf16.mxu0 %v1494
    %2000 = vmatpush1.bf16.msra.mxu0 %v1493
    %2001 = vmatprep.subr.bf16.mxu0 %v1502
    %2002 = vmatpush1.bf16.msra.mxu0 %v1501
    %2003 = vmatprep.subr.bf16.mxu0 %v1510
    %2004 = vmatpush1.bf16.msra.mxu0 %v1509
    %2005 = vmatprep.subr.bf16.mxu0 %v1518
    %2006 = vmatpush1.bf16.msra.mxu0 %v1517
    %2007 = vmatprep.subr.bf16.mxu0 %v1526
    %2008 = vmatpush1.bf16.msra.mxu0 %v1525
    %2009 = vmatprep.subr.bf16.mxu0 %v1534
    %2010 = vmatpush1.bf16.msra.mxu0 %v1533
    %2011 = vmatprep.subr.bf16.mxu0 %v1542
    %2012 = vmatpush1.bf16.msra.mxu0 %v1541
    %2013 = vmatprep.subr.bf16.mxu0 %v1550
    %2014 = vmatpush1.bf16.msra.mxu0 %v1549
    %2015 = vmatprep.subr.bf16.mxu0 %v1558
    %2016 = vmatpush1.bf16.msra.mxu0 %v1557
    %2017 = vmatprep.subr.bf16.mxu0 %v1566
    %2018 = vmatpush1.bf16.msra.mxu0 %v1565
    %2019 = vmatprep.subr.bf16.mxu0 %v1574
    %2020 = vmatpush1.bf16.msra.mxu0 %v1573
    %2021 = vmatprep.subr.bf16.mxu0 %v1582
    %2022 = vmatpush1.bf16.msra.mxu0 %v1581
    %2023 = vmatprep.subr.bf16.mxu0 %v1590
    %2024 = vmatpush1.bf16.msra.mxu0 %v1589
    %2025 = vmatprep.subr.bf16.mxu0 %v1598
    %2026 = vmatpush1.bf16.msra.mxu0 %v1597
    %2027 = vmatprep.subr.bf16.mxu0 %v1606
    %2028 = vmatpush1.bf16.msra.mxu0 %v1605
    %2029 = vmatprep.mubr.bf16.mxu0 %v416
    %2030 = vmatmul.mubr.bf16.gmra.mrb[0].mxu0 %v415
    %v2031 = vpop.f32.mrb[0].mxu0
    %v2032 = vadd.f32 %v680, %v2031
    %v2033 = vpop.f32.mrb[0].mxu0
    %v2034 = vadd.f32 %v684, %v2033
    %v2035 = vpop.f32.mrb[0].mxu0
    %v2036 = vadd.f32 %v680, %v2035
    %v2037 = vpop.f32.mrb[0].mxu0
    %v2038 = vadd.f32 %v684, %v2037
    %2039 = vdwg.mxu0
    %2040 = vmatprep.subr.bf16.mxu0 %v1614
    %2041 = vmatpush1.bf16.msra.mxu0 %v1613
    %2042 = vmatprep.subr.bf16.mxu0 %v1622
    %2043 = vmatpush1.bf16.msra.mxu0 %v1621
    %2044 = vmatprep.subr.bf16.mxu0 %v1630
    %2045 = vmatpush1.bf16.msra.mxu0 %v1629
    %2046 = vmatprep.subr.bf16.mxu0 %v1638
    %2047 = vmatpush1.bf16.msra.mxu0 %v1637
    %2048 = vmatprep.subr.bf16.mxu0 %v1646
    %2049 = vmatpush1.bf16.msra.mxu0 %v1645
    %2050 = vmatprep.subr.bf16.mxu0 %v1654
    %2051 = vmatpush1.bf16.msra.mxu0 %v1653
    %2052 = vmatprep.subr.bf16.mxu0 %v1662
    %2053 = vmatpush1.bf16.msra.mxu0 %v1661
    %2054 = vmatprep.subr.bf16.mxu0 %v1670
    %2055 = vmatpush1.bf16.msra.mxu0 %v1669
    %2056 = vmatprep.subr.bf16.mxu0 %v1678
    %2057 = vmatpush1.bf16.msra.mxu0 %v1677
    %2058 = vmatprep.subr.bf16.mxu0 %v1686
    %2059 = vmatpush1.bf16.msra.mxu0 %v1685
    %2060 = vmatprep.subr.bf16.mxu0 %v1694
    %2061 = vmatpush1.bf16.msra.mxu0 %v1693
    %2062 = vmatprep.subr.bf16.mxu0 %v1702
    %2063 = vmatpush1.bf16.msra.mxu0 %v1701
    %2064 = vmatprep.subr.bf16.mxu0 %v1710
    %2065 = vmatpush1.bf16.msra.mxu0 %v1709
    %2066 = vmatprep.subr.bf16.mxu0 %v1718
    %2067 = vmatpush1.bf16.msra.mxu0 %v1717
    %2068 = vmatprep.subr.bf16.mxu0 %v1726
    %2069 = vmatpush1.bf16.msra.mxu0 %v1725
    %2070 = vmatprep.subr.bf16.mxu0 %v1734
    %2071 = vmatpush1.bf16.msra.mxu0 %v1733
    %2072 = vmatprep.mubr.bf16.mxu0 %v418
    %2073 = vmatmul.mubr.bf16.gmra.mrb[0].mxu0 %v417
    %v2074 = vpop.f32.mrb[0].mxu0
    %v2075 = vadd.f32 %v2032, %v2074
    %v2076 = vpop.f32.mrb[0].mxu0
    %v2077 = vadd.f32 %v2034, %v2076
    %v2078 = vpop.f32.mrb[0].mxu0
    %v2079 = vadd.f32 %v2036, %v2078
    %v2080 = vpop.f32.mrb[0].mxu0
    %v2081 = vadd.f32 %v2038, %v2080
    %2082 = vdwg.mxu0
    %2083 = vmatprep.subr.bf16.mxu0 %v1488
    %2084 = vmatpush1.bf16.msra.mxu0 %v1487
    %2085 = vmatprep.subr.bf16.mxu0 %v1496
    %2086 = vmatpush1.bf16.msra.mxu0 %v1495
    %2087 = vmatprep.subr.bf16.mxu0 %v1504
    %2088 = vmatpush1.bf16.msra.mxu0 %v1503
    %2089 = vmatprep.subr.bf16.mxu0 %v1512
    %2090 = vmatpush1.bf16.msra.mxu0 %v1511
    %2091 = vmatprep.subr.bf16.mxu0 %v1520
    %2092 = vmatpush1.bf16.msra.mxu0 %v1519
    %2093 = vmatprep.subr.bf16.mxu0 %v1528
    %2094 = vmatpush1.bf16.msra.mxu0 %v1527
    %2095 = vmatprep.subr.bf16.mxu0 %v1536
    %2096 = vmatpush1.bf16.msra.mxu0 %v1535
    %2097 = vmatprep.subr.bf16.mxu0 %v1544
    %2098 = vmatpush1.bf16.msra.mxu0 %v1543
    %2099 = vmatprep.subr.bf16.mxu0 %v1552
    %2100 = vmatpush1.bf16.msra.mxu0 %v1551
    %2101 = vmatprep.subr.bf16.mxu0 %v1560
    %2102 = vmatpush1.bf16.msra.mxu0 %v1559
    %2103 = vmatprep.subr.bf16.mxu0 %v1568
    %2104 = vmatpush1.bf16.msra.mxu0 %v1567
    %2105 = vmatprep.subr.bf16.mxu0 %v1576
    %2106 = vmatpush1.bf16.msra.mxu0 %v1575
    %2107 = vmatprep.subr.bf16.mxu0 %v1584
    %2108 = vmatpush1.bf16.msra.mxu0 %v1583
    %2109 = vmatprep.subr.bf16.mxu0 %v1592
    %2110 = vmatpush1.bf16.msra.mxu0 %v1591
    %2111 = vmatprep.subr.bf16.mxu0 %v1600
    %2112 = vmatpush1.bf16.msra.mxu0 %v1599
    %2113 = vmatprep.subr.bf16.mxu0 %v1608
    %2114 = vmatpush1.bf16.msra.mxu0 %v1607
    %2115 = vmatprep.mubr.bf16.mxu0 %v416
    %2116 = vmatmul.mubr.bf16.gmra.mrb[0].mxu0 %v415
    %v2117 = vpop.f32.mrb[0].mxu0
    %v2118 = vadd.f32 %v688, %v2117
    %v2119 = vpop.f32.mrb[0].mxu0
    %v2120 = vadd.f32 %v692, %v2119
    %v2121 = vpop.f32.mrb[0].mxu0
    %v2122 = vadd.f32 %v688, %v2121
    %v2123 = vpop.f32.mrb[0].mxu0
    %v2124 = vadd.f32 %v692, %v2123
    %2125 = vdwg.mxu0
    %2126 = vmatprep.subr.bf16.mxu0 %v1616
    %2127 = vmatpush1.bf16.msra.mxu0 %v1615
    %2128 = vmatprep.subr.bf16.mxu0 %v1624
    %2129 = vmatpush1.bf16.msra.mxu0 %v1623
    %2130 = vmatprep.subr.bf16.mxu0 %v1632
    %2131 = vmatpush1.bf16.msra.mxu0 %v1631
    %2132 = vmatprep.subr.bf16.mxu0 %v1640
    %2133 = vmatpush1.bf16.msra.mxu0 %v1639
    %2134 = vmatprep.subr.bf16.mxu0 %v1648
    %2135 = vmatpush1.bf16.msra.mxu0 %v1647
    %2136 = vmatprep.subr.bf16.mxu0 %v1656
    %2137 = vmatpush1.bf16.msra.mxu0 %v1655
    %2138 = vmatprep.subr.bf16.mxu0 %v1664
    %2139 = vmatpush1.bf16.msra.mxu0 %v1663
    %2140 = vmatprep.subr.bf16.mxu0 %v1672
    %2141 = vmatpush1.bf16.msra.mxu0 %v1671
    %2142 = vmatprep.subr.bf16.mxu0 %v1680
    %2143 = vmatpush1.bf16.msra.mxu0 %v1679
    %2144 = vmatprep.subr.bf16.mxu0 %v1688
    %2145 = vmatpush1.bf16.msra.mxu0 %v1687
    %2146 = vmatprep.subr.bf16.mxu0 %v1696
    %2147 = vmatpush1.bf16.msra.mxu0 %v1695
    %2148 = vmatprep.subr.bf16.mxu0 %v1704
    %2149 = vmatpush1.bf16.msra.mxu0 %v1703
    %2150 = vmatprep.subr.bf16.mxu0 %v1712
    %2151 = vmatpush1.bf16.msra.mxu0 %v1711
    %2152 = vmatprep.subr.bf16.mxu0 %v1720
    %2153 = vmatpush1.bf16.msra.mxu0 %v1719
    %2154 = vmatprep.subr.bf16.mxu0 %v1728
    %2155 = vmatpush1.bf16.msra.mxu0 %v1727
    %2156 = vmatprep.subr.bf16.mxu0 %v1736
    %2157 = vmatpush1.bf16.msra.mxu0 %v1735
    %2158 = vmatprep.mubr.bf16.mxu0 %v418
    %2159 = vmatmul.mubr.bf16.gmra.mrb[0].mxu0 %v417
    %v2160 = vpop.f32.mrb[0].mxu0
    %v2161 = vadd.f32 %v2118, %v2160
    %v2162 = vpop.f32.mrb[0].mxu0
    %v2163 = vadd.f32 %v2120, %v2162
    %v2164 = vpop.f32.mrb[0].mxu0
    %v2165 = vadd.f32 %v2122, %v2164
    %v2166 = vpop.f32.mrb[0].mxu0
    %v2167 = vadd.f32 %v2124, %v2166
    %2168 = vdwg.mxu0
    %2169 = vmatprep.subr.bf16.mxu0 %v1490
    %2170 = vmatpush1.bf16.msra.mxu0 %v1489
    %2171 = vmatprep.subr.bf16.mxu0 %v1498
    %2172 = vmatpush1.bf16.msra.mxu0 %v1497
    %2173 = vmatprep.subr.bf16.mxu0 %v1506
    %2174 = vmatpush1.bf16.msra.mxu0 %v1505
    %2175 = vmatprep.subr.bf16.mxu0 %v1514
    %2176 = vmatpush1.bf16.msra.mxu0 %v1513
    %2177 = vmatprep.subr.bf16.mxu0 %v1522
    %2178 = vmatpush1.bf16.msra.mxu0 %v1521
    %2179 = vmatprep.subr.bf16.mxu0 %v1530
    %2180 = vmatpush1.bf16.msra.mxu0 %v1529
    %2181 = vmatprep.subr.bf16.mxu0 %v1538
    %2182 = vmatpush1.bf16.msra.mxu0 %v1537
    %2183 = vmatprep.subr.bf16.mxu0 %v1546
    %2184 = vmatpush1.bf16.msra.mxu0 %v1545
    %2185 = vmatprep.subr.bf16.mxu0 %v1554
    %2186 = vmatpush1.bf16.msra.mxu0 %v1553
    %2187 = vmatprep.subr.bf16.mxu0 %v1562
    %2188 = vmatpush1.bf16.msra.mxu0 %v1561
    %2189 = vmatprep.subr.bf16.mxu0 %v1570
    %2190 = vmatpush1.bf16.msra.mxu0 %v1569
    %2191 = vmatprep.subr.bf16.mxu0 %v1578
    %2192 = vmatpush1.bf16.msra.mxu0 %v1577
    %2193 = vmatprep.subr.bf16.mxu0 %v1586
    %2194 = vmatpush1.bf16.msra.mxu0 %v1585
    %2195 = vmatprep.subr.bf16.mxu0 %v1594
    %2196 = vmatpush1.bf16.msra.mxu0 %v1593
    %2197 = vmatprep.subr.bf16.mxu0 %v1602
    %2198 = vmatpush1.bf16.msra.mxu0 %v1601
    %2199 = vmatprep.subr.bf16.mxu0 %v1610
    %2200 = vmatpush1.bf16.msra.mxu0 %v1609
    %2201 = vmatprep.mubr.bf16.mxu0 %v416
    %2202 = vmatmul.mubr.bf16.gmra.mrb[0].mxu0 %v415
    %v2203 = vpop.f32.mrb[0].mxu0
    %v2204 = vadd.f32 %v696, %v2203
    %v2205 = vpop.f32.mrb[0].mxu0
    %v2206 = vadd.f32 %v700, %v2205
    %v2207 = vpop.f32.mrb[0].mxu0
    %v2208 = vadd.f32 %v696, %v2207
    %v2209 = vpop.f32.mrb[0].mxu0
    %v2210 = vadd.f32 %v700, %v2209
    %2211 = vdwg.mxu0
    %2212 = vmatprep.subr.bf16.mxu0 %v1618
    %2213 = vmatpush1.bf16.msra.mxu0 %v1617
    %2214 = vmatprep.subr.bf16.mxu0 %v1626
    %2215 = vmatpush1.bf16.msra.mxu0 %v1625
    %2216 = vmatprep.subr.bf16.mxu0 %v1634
    %2217 = vmatpush1.bf16.msra.mxu0 %v1633
    %2218 = vmatprep.subr.bf16.mxu0 %v1642
    %2219 = vmatpush1.bf16.msra.mxu0 %v1641
    %2220 = vmatprep.subr.bf16.mxu0 %v1650
    %2221 = vmatpush1.bf16.msra.mxu0 %v1649
    %2222 = vmatprep.subr.bf16.mxu0 %v1658
    %2223 = vmatpush1.bf16.msra.mxu0 %v1657
    %2224 = vmatprep.subr.bf16.mxu0 %v1666
    %2225 = vmatpush1.bf16.msra.mxu0 %v1665
    %2226 = vmatprep.subr.bf16.mxu0 %v1674
    %2227 = vmatpush1.bf16.msra.mxu0 %v1673
    %2228 = vmatprep.subr.bf16.mxu0 %v1682
    %2229 = vmatpush1.bf16.msra.mxu0 %v1681
    %2230 = vmatprep.subr.bf16.mxu0 %v1690
    %2231 = vmatpush1.bf16.msra.mxu0 %v1689
    %2232 = vmatprep.subr.bf16.mxu0 %v1698
    %2233 = vmatpush1.bf16.msra.mxu0 %v1697
    %2234 = vmatprep.subr.bf16.mxu0 %v1706
    %2235 = vmatpush1.bf16.msra.mxu0 %v1705
    %2236 = vmatprep.subr.bf16.mxu0 %v1714
    %2237 = vmatpush1.bf16.msra.mxu0 %v1713
    %2238 = vmatprep.subr.bf16.mxu0 %v1722
    %2239 = vmatpush1.bf16.msra.mxu0 %v1721
    %2240 = vmatprep.subr.bf16.mxu0 %v1730
    %2241 = vmatpush1.bf16.msra.mxu0 %v1729
    %2242 = vmatprep.subr.bf16.mxu0 %v1738
    %2243 = vmatpush1.bf16.msra.mxu0 %v1737
    %2244 = vmatprep.mubr.bf16.mxu0 %v418
    %2245 = vmatmul.mubr.bf16.gmra.mrb[0].mxu0 %v417
    %v2246 = vpop.f32.mrb[0].mxu0
    %v2247 = vadd.f32 %v2204, %v2246
    %v2248 = vpop.f32.mrb[0].mxu0
    %v2249 = vadd.f32 %v2206, %v2248
    %v2250 = vpop.f32.mrb[0].mxu0
    %v2251 = vadd.f32 %v2208, %v2250
    %v2252 = vpop.f32.mrb[0].mxu0
    %v2253 = vadd.f32 %v2210, %v2252
    %2254 = vdwg.mxu0
    %2255 = vmatprep.subr.bf16.mxu0 %v1492
    %2256 = vmatpush1.bf16.msra.mxu0 %v1491
    %2257 = vmatprep.subr.bf16.mxu0 %v1500
    %2258 = vmatpush1.bf16.msra.mxu0 %v1499
    %2259 = vmatprep.subr.bf16.mxu0 %v1508
    %2260 = vmatpush1.bf16.msra.mxu0 %v1507
    %2261 = vmatprep.subr.bf16.mxu0 %v1516
    %2262 = vmatpush1.bf16.msra.mxu0 %v1515
    %2263 = vmatprep.subr.bf16.mxu0 %v1524
    %2264 = vmatpush1.bf16.msra.mxu0 %v1523
    %2265 = vmatprep.subr.bf16.mxu0 %v1532
    %2266 = vmatpush1.bf16.msra.mxu0 %v1531
    %2267 = vmatprep.subr.bf16.mxu0 %v1540
    %2268 = vmatpush1.bf16.msra.mxu0 %v1539
    %2269 = vmatprep.subr.bf16.mxu0 %v1548
    %2270 = vmatpush1.bf16.msra.mxu0 %v1547
    %2271 = vmatprep.subr.bf16.mxu0 %v1556
    %2272 = vmatpush1.bf16.msra.mxu0 %v1555
    %2273 = vmatprep.subr.bf16.mxu0 %v1564
    %2274 = vmatpush1.bf16.msra.mxu0 %v1563
    %2275 = vmatprep.subr.bf16.mxu0 %v1572
    %2276 = vmatpush1.bf16.msra.mxu0 %v1571
    %2277 = vmatprep.subr.bf16.mxu0 %v1580
    %2278 = vmatpush1.bf16.msra.mxu0 %v1579
    %2279 = vmatprep.subr.bf16.mxu0 %v1588
    %2280 = vmatpush1.bf16.msra.mxu0 %v1587
    %2281 = vmatprep.subr.bf16.mxu0 %v1596
    %2282 = vmatpush1.bf16.msra.mxu0 %v1595
    %2283 = vmatprep.subr.bf16.mxu0 %v1604
    %2284 = vmatpush1.bf16.msra.mxu0 %v1603
    %2285 = vmatprep.subr.bf16.mxu0 %v1612
    %2286 = vmatpush1.bf16.msra.mxu0 %v1611
    %2287 = vmatprep.mubr.bf16.mxu0 %v416
    %2288 = vmatmul.mubr.bf16.gmra.mrb[0].mxu0 %v415
    %v2289 = vpop.f32.mrb[0].mxu0
    %v2290 = vadd.f32 %v704, %v2289
    %v2291 = vpop.f32.mrb[0].mxu0
    %v2292 = vadd.f32 %v708, %v2291
    %v2293 = vpop.f32.mrb[0].mxu0
    %v2294 = vadd.f32 %v704, %v2293
    %v2295 = vpop.f32.mrb[0].mxu0
    %v2296 = vadd.f32 %v708, %v2295
    %2297 = vdwg.mxu0
    %2298 = vmatprep.subr.bf16.mxu0 %v1620
    %2299 = vmatpush1.bf16.msra.mxu0 %v1619
    %2300 = vmatprep.subr.bf16.mxu0 %v1628
    %2301 = vmatpush1.bf16.msra.mxu0 %v1627
    %2302 = vmatprep.subr.bf16.mxu0 %v1636
    %2303 = vmatpush1.bf16.msra.mxu0 %v1635
    %2304 = vmatprep.subr.bf16.mxu0 %v1644
    %2305 = vmatpush1.bf16.msra.mxu0 %v1643
    %2306 = vmatprep.subr.bf16.mxu0 %v1652
    %2307 = vmatpush1.bf16.msra.mxu0 %v1651
    %2308 = vmatprep.subr.bf16.mxu0 %v1660
    %2309 = vmatpush1.bf16.msra.mxu0 %v1659
    %2310 = vmatprep.subr.bf16.mxu0 %v1668
    %2311 = vmatpush1.bf16.msra.mxu0 %v1667
    %2312 = vmatprep.subr.bf16.mxu0 %v1676
    %2313 = vmatpush1.bf16.msra.mxu0 %v1675
    %2314 = vmatprep.subr.bf16.mxu0 %v1684
    %2315 = vmatpush1.bf16.msra.mxu0 %v1683
    %2316 = vmatprep.subr.bf16.mxu0 %v1692
    %2317 = vmatpush1.bf16.msra.mxu0 %v1691
    %2318 = vmatprep.subr.bf16.mxu0 %v1700
    %2319 = vmatpush1.bf16.msra.mxu0 %v1699
    %2320 = vmatprep.subr.bf16.mxu0 %v1708
    %2321 = vmatpush1.bf16.msra.mxu0 %v1707
    %2322 = vmatprep.subr.bf16.mxu0 %v1716
    %2323 = vmatpush1.bf16.msra.mxu0 %v1715
    %2324 = vmatprep.subr.bf16.mxu0 %v1724
    %2325 = vmatpush1.bf16.msra.mxu0 %v1723
    %2326 = vmatprep.subr.bf16.mxu0 %v1732
    %2327 = vmatpush1.bf16.msra.mxu0 %v1731
    %2328 = vmatprep.subr.bf16.mxu0 %v1740
    %2329 = vmatpush1.bf16.msra.mxu0 %v1739
    %2330 = vmatprep.mubr.bf16.mxu0 %v418
    %2331 = vmatmul.mubr.bf16.gmra.mrb[0].mxu0 %v417
    %v2332 = vpop.f32.mrb[0].mxu0
    %v2333 = vadd.f32 %v2290, %v2332
    %v2334 = vpop.f32.mrb[0].mxu0
    %v2335 = vadd.f32 %v2292, %v2334
    %v2336 = vpop.f32.mrb[0].mxu0
    %v2337 = vadd.f32 %v2294, %v2336
    %v2338 = vpop.f32.mrb[0].mxu0
    %v2339 = vadd.f32 %v2296, %v2338
    %2340 = vdwg.mxu0
    %v2341 = vmax.f32 %v2075, 0.0
    %v2342 = vmax.f32 %v2077, 0.0
    %v2343 = vmax.f32 %v2161, 0.0
    %v2344 = vmax.f32 %v2163, 0.0
    %v2345 = vmax.f32 %v2247, 0.0
    %v2346 = vmax.f32 %v2249, 0.0
    %v2347 = vmax.f32 %v2333, 0.0
    %v2348 = vmax.f32 %v2335, 0.0
    %v2349 = vmax.f32 %v2079, 0.0
    %v2350 = vmax.f32 %v2081, 0.0
    %v2351 = vmax.f32 %v2165, 0.0
    %v2352 = vmax.f32 %v2167, 0.0
    %v2353 = vmax.f32 %v2251, 0.0
    %v2354 = vmax.f32 %v2253, 0.0
    %v2355 = vmax.f32 %v2337, 0.0
    %v2356 = vmax.f32 %v2339, 0.0
    %v2357 = vpack.c.bf16 %v2349, %v2341
    %v2358 = vpack.c.bf16 %v2350, %v2342
    %v2359 = vpack.c.bf16 %v2351, %v2343
    %v2360 = vpack.c.bf16 %v2352, %v2344
    %v2361 = vpack.c.bf16 %v2353, %v2345
    %v2362 = vpack.c.bf16 %v2354, %v2346
    %v2363 = vpack.c.bf16 %v2355, %v2347
    %v2364 = vpack.c.bf16 %v2356, %v2348
    %v2365 = vld [vmem:[#allocation6] sm:$0xff]
    %v2366 = vld [vmem:[#allocation6 + $0x8] sm:$0xff]
    %v2367 = vld [vmem:[#allocation6 + $0x10] sm:$0xff]
    %v2368 = vld [vmem:[#allocation6 + $0x18] sm:$0xff]
    %v2369 = vld [vmem:[#allocation6 + $0x20] sm:$0xff]
    %v2370 = vld [vmem:[#allocation6 + $0x28] sm:$0xff]
    %v2371 = vld [vmem:[#allocation6 + $0x30] sm:$0xff]
    %v2372 = vld [vmem:[#allocation6 + $0x38] sm:$0xff]
    %v2373 = vld [vmem:[#allocation6 + $0x40] sm:$0xff]
    %v2374 = vld [vmem:[#allocation6 + $0x48] sm:$0xff]
    %v2375 = vld [vmem:[#allocation6 + $0x50] sm:$0xff]
    %v2376 = vld [vmem:[#allocation6 + $0x58] sm:$0xff]
    %v2377 = vld [vmem:[#allocation6 + $0x60] sm:$0xff]
    %v2378 = vld [vmem:[#allocation6 + $0x68] sm:$0xff]
    %v2379 = vld [vmem:[#allocation6 + $0x70] sm:$0xff]
    %v2380 = vld [vmem:[#allocation6 + $0x78] sm:$0xff]
    %v2381 = vld [vmem:[#allocation6 + $0x80] sm:$0xff]
    %v2382 = vld [vmem:[#allocation6 + $0x88] sm:$0xff]
    %v2383 = vld [vmem:[#allocation6 + $0x90] sm:$0xff]
    %v2384 = vld [vmem:[#allocation6 + $0x98] sm:$0xff]
    %v2385 = vld [vmem:[#allocation6 + $0xa0] sm:$0xff]
    %v2386 = vld [vmem:[#allocation6 + $0xa8] sm:$0xff]
    %v2387 = vld [vmem:[#allocation6 + $0xb0] sm:$0xff]
    %v2388 = vld [vmem:[#allocation6 + $0xb8] sm:$0xff]
    %v2389 = vld [vmem:[#allocation6 + $0xc0] sm:$0xff]
    %v2390 = vld [vmem:[#allocation6 + $0xc8] sm:$0xff]
    %v2391 = vld [vmem:[#allocation6 + $0xd0] sm:$0xff]
    %v2392 = vld [vmem:[#allocation6 + $0xd8] sm:$0xff]
    %v2393 = vld [vmem:[#allocation6 + $0xe0] sm:$0xff]
    %v2394 = vld [vmem:[#allocation6 + $0xe8] sm:$0xff]
    %v2395 = vld [vmem:[#allocation6 + $0xf0] sm:$0xff]
    %v2396 = vld [vmem:[#allocation6 + $0xf8] sm:$0xff]
    %v2397 = vld [vmem:[#allocation6 + $0x100] sm:$0xff]
    %v2398 = vld [vmem:[#allocation6 + $0x108] sm:$0xff]
    %v2399 = vld [vmem:[#allocation6 + $0x110] sm:$0xff]
    %v2400 = vld [vmem:[#allocation6 + $0x118] sm:$0xff]
    %v2401 = vld [vmem:[#allocation6 + $0x120] sm:$0xff]
    %v2402 = vld [vmem:[#allocation6 + $0x128] sm:$0xff]
    %v2403 = vld [vmem:[#allocation6 + $0x130] sm:$0xff]
    %v2404 = vld [vmem:[#allocation6 + $0x138] sm:$0xff]
    %v2405 = vld [vmem:[#allocation6 + $0x140] sm:$0xff]
    %v2406 = vld [vmem:[#allocation6 + $0x148] sm:$0xff]
    %v2407 = vld [vmem:[#allocation6 + $0x150] sm:$0xff]
    %v2408 = vld [vmem:[#allocation6 + $0x158] sm:$0xff]
    %v2409 = vld [vmem:[#allocation6 + $0x160] sm:$0xff]
    %v2410 = vld [vmem:[#allocation6 + $0x168] sm:$0xff]
    %v2411 = vld [vmem:[#allocation6 + $0x170] sm:$0xff]
    %v2412 = vld [vmem:[#allocation6 + $0x178] sm:$0xff]
    %v2413 = vld [vmem:[#allocation6 + $0x180] sm:$0xff]
    %v2414 = vld [vmem:[#allocation6 + $0x188] sm:$0xff]
    %v2415 = vld [vmem:[#allocation6 + $0x190] sm:$0xff]
    %v2416 = vld [vmem:[#allocation6 + $0x198] sm:$0xff]
    %v2417 = vld [vmem:[#allocation6 + $0x1a0] sm:$0xff]
    %v2418 = vld [vmem:[#allocation6 + $0x1a8] sm:$0xff]
    %v2419 = vld [vmem:[#allocation6 + $0x1b0] sm:$0xff]
    %v2420 = vld [vmem:[#allocation6 + $0x1b8] sm:$0xff]
    %v2421 = vld [vmem:[#allocation6 + $0x1c0] sm:$0xff]
    %v2422 = vld [vmem:[#allocation6 + $0x1c8] sm:$0xff]
    %v2423 = vld [vmem:[#allocation6 + $0x1d0] sm:$0xff]
    %v2424 = vld [vmem:[#allocation6 + $0x1d8] sm:$0xff]
    %v2425 = vld [vmem:[#allocation6 + $0x1e0] sm:$0xff]
    %v2426 = vld [vmem:[#allocation6 + $0x1e8] sm:$0xff]
    %v2427 = vld [vmem:[#allocation6 + $0x1f0] sm:$0xff]
    %v2428 = vld [vmem:[#allocation6 + $0x1f8] sm:$0xff]
    %v2429 = vld [vmem:[#allocation6 + $0x200] sm:$0xff]
    %v2430 = vld [vmem:[#allocation6 + $0x208] sm:$0xff]
    %v2431 = vld [vmem:[#allocation6 + $0x210] sm:$0xff]
    %v2432 = vld [vmem:[#allocation6 + $0x218] sm:$0xff]
    %v2433 = vld [vmem:[#allocation6 + $0x220] sm:$0xff]
    %v2434 = vld [vmem:[#allocation6 + $0x228] sm:$0xff]
    %v2435 = vld [vmem:[#allocation6 + $0x230] sm:$0xff]
    %v2436 = vld [vmem:[#allocation6 + $0x238] sm:$0xff]
    %v2437 = vld [vmem:[#allocation6 + $0x240] sm:$0xff]
    %v2438 = vld [vmem:[#allocation6 + $0x248] sm:$0xff]
    %v2439 = vld [vmem:[#allocation6 + $0x250] sm:$0xff]
    %v2440 = vld [vmem:[#allocation6 + $0x258] sm:$0xff]
    %v2441 = vld [vmem:[#allocation6 + $0x260] sm:$0xff]
    %v2442 = vld [vmem:[#allocation6 + $0x268] sm:$0xff]
    %v2443 = vld [vmem:[#allocation6 + $0x270] sm:$0xff]
    %v2444 = vld [vmem:[#allocation6 + $0x278] sm:$0xff]
    %v2445 = vld [vmem:[#allocation6 + $0x280] sm:$0xff]
    %v2446 = vld [vmem:[#allocation6 + $0x288] sm:$0xff]
    %v2447 = vld [vmem:[#allocation6 + $0x290] sm:$0xff]
    %v2448 = vld [vmem:[#allocation6 + $0x298] sm:$0xff]
    %v2449 = vld [vmem:[#allocation6 + $0x2a0] sm:$0xff]
    %v2450 = vld [vmem:[#allocation6 + $0x2a8] sm:$0xff]
    %v2451 = vld [vmem:[#allocation6 + $0x2b0] sm:$0xff]
    %v2452 = vld [vmem:[#allocation6 + $0x2b8] sm:$0xff]
    %v2453 = vld [vmem:[#allocation6 + $0x2c0] sm:$0xff]
    %v2454 = vld [vmem:[#allocation6 + $0x2c8] sm:$0xff]
    %v2455 = vld [vmem:[#allocation6 + $0x2d0] sm:$0xff]
    %v2456 = vld [vmem:[#allocation6 + $0x2d8] sm:$0xff]
    %v2457 = vld [vmem:[#allocation6 + $0x2e0] sm:$0xff]
    %v2458 = vld [vmem:[#allocation6 + $0x2e8] sm:$0xff]
    %v2459 = vld [vmem:[#allocation6 + $0x2f0] sm:$0xff]
    %v2460 = vld [vmem:[#allocation6 + $0x2f8] sm:$0xff]
    %v2461 = vld [vmem:[#allocation6 + $0x300] sm:$0xff]
    %v2462 = vld [vmem:[#allocation6 + $0x308] sm:$0xff]
    %v2463 = vld [vmem:[#allocation6 + $0x310] sm:$0xff]
    %v2464 = vld [vmem:[#allocation6 + $0x318] sm:$0xff]
    %v2465 = vld [vmem:[#allocation6 + $0x320] sm:$0xff]
    %v2466 = vld [vmem:[#allocation6 + $0x328] sm:$0xff]
    %v2467 = vld [vmem:[#allocation6 + $0x330] sm:$0xff]
    %v2468 = vld [vmem:[#allocation6 + $0x338] sm:$0xff]
    %v2469 = vld [vmem:[#allocation6 + $0x340] sm:$0xff]
    %v2470 = vld [vmem:[#allocation6 + $0x348] sm:$0xff]
    %v2471 = vld [vmem:[#allocation6 + $0x350] sm:$0xff]
    %v2472 = vld [vmem:[#allocation6 + $0x358] sm:$0xff]
    %v2473 = vld [vmem:[#allocation6 + $0x360] sm:$0xff]
    %v2474 = vld [vmem:[#allocation6 + $0x368] sm:$0xff]
    %v2475 = vld [vmem:[#allocation6 + $0x370] sm:$0xff]
    %v2476 = vld [vmem:[#allocation6 + $0x378] sm:$0xff]
    %v2477 = vld [vmem:[#allocation6 + $0x380] sm:$0xff]
    %v2478 = vld [vmem:[#allocation6 + $0x388] sm:$0xff]
    %v2479 = vld [vmem:[#allocation6 + $0x390] sm:$0xff]
    %v2480 = vld [vmem:[#allocation6 + $0x398] sm:$0xff]
    %v2481 = vld [vmem:[#allocation6 + $0x3a0] sm:$0xff]
    %v2482 = vld [vmem:[#allocation6 + $0x3a8] sm:$0xff]
    %v2483 = vld [vmem:[#allocation6 + $0x3b0] sm:$0xff]
    %v2484 = vld [vmem:[#allocation6 + $0x3b8] sm:$0xff]
    %v2485 = vld [vmem:[#allocation6 + $0x3c0] sm:$0xff]
    %v2486 = vld [vmem:[#allocation6 + $0x3c8] sm:$0xff]
    %v2487 = vld [vmem:[#allocation6 + $0x3d0] sm:$0xff]
    %v2488 = vld [vmem:[#allocation6 + $0x3d8] sm:$0xff]
    %v2489 = vld [vmem:[#allocation6 + $0x3e0] sm:$0xff]
    %v2490 = vld [vmem:[#allocation6 + $0x3e8] sm:$0xff]
    %v2491 = vld [vmem:[#allocation6 + $0x3f0] sm:$0xff]
    %v2492 = vld [vmem:[#allocation6 + $0x3f8] sm:$0xff]
    %v2493 = vld [vmem:[%s6] sm:$0xf]
    %v2495 = vlaneseq
    %v2496 = vshrl.u32 %v2495, 7
    %v2497 = vsub.s32 0, %v2496
    %v2498 = vrot.slane %v2493, %v2497
    %v2499 = vlaneseq
    %v2500 = vshrl.u32 %v2499, 7
    %v2501 = vsub.s32 1, %v2500
    %v2502 = vrot.slane %v2493, %v2501
    %v2503 = vlaneseq
    %v2504 = vshrl.u32 %v2503, 7
    %v2505 = vsub.s32 2, %v2504
    %v2506 = vrot.slane %v2493, %v2505
    %v2507 = vlaneseq
    %v2508 = vshrl.u32 %v2507, 7
    %v2509 = vsub.s32 3, %v2508
    %v2510 = vrot.slane %v2493, %v2509
    %v2643 = vunpack.c.l.b16 %v2365
    %v2644 = vunpack.c.h.b16 %v2365
    %v2645 = vunpack.c.l.b16 %v2366
    %v2646 = vunpack.c.h.b16 %v2366
    %v2647 = vunpack.c.l.b16 %v2367
    %v2648 = vunpack.c.h.b16 %v2367
    %v2649 = vunpack.c.l.b16 %v2368
    %v2650 = vunpack.c.h.b16 %v2368
    %v2651 = vunpack.c.l.b16 %v2369
    %v2652 = vunpack.c.h.b16 %v2369
    %v2653 = vunpack.c.l.b16 %v2370
    %v2654 = vunpack.c.h.b16 %v2370
    %v2655 = vunpack.c.l.b16 %v2371
    %v2656 = vunpack.c.h.b16 %v2371
    %v2657 = vunpack.c.l.b16 %v2372
    %v2658 = vunpack.c.h.b16 %v2372
    %v2659 = vunpack.c.l.b16 %v2373
    %v2660 = vunpack.c.h.b16 %v2373
    %v2661 = vunpack.c.l.b16 %v2374
    %v2662 = vunpack.c.h.b16 %v2374
    %v2663 = vunpack.c.l.b16 %v2375
    %v2664 = vunpack.c.h.b16 %v2375
    %v2665 = vunpack.c.l.b16 %v2376
    %v2666 = vunpack.c.h.b16 %v2376
    %v2667 = vunpack.c.l.b16 %v2377
    %v2668 = vunpack.c.h.b16 %v2377
    %v2669 = vunpack.c.l.b16 %v2378
    %v2670 = vunpack.c.h.b16 %v2378
    %v2671 = vunpack.c.l.b16 %v2379
    %v2672 = vunpack.c.h.b16 %v2379
    %v2673 = vunpack.c.l.b16 %v2380
    %v2674 = vunpack.c.h.b16 %v2380
    %v2675 = vunpack.c.l.b16 %v2381
    %v2676 = vunpack.c.h.b16 %v2381
    %v2677 = vunpack.c.l.b16 %v2382
    %v2678 = vunpack.c.h.b16 %v2382
    %v2679 = vunpack.c.l.b16 %v2383
    %v2680 = vunpack.c.h.b16 %v2383
    %v2681 = vunpack.c.l.b16 %v2384
    %v2682 = vunpack.c.h.b16 %v2384
    %v2683 = vunpack.c.l.b16 %v2385
    %v2684 = vunpack.c.h.b16 %v2385
    %v2685 = vunpack.c.l.b16 %v2386
    %v2686 = vunpack.c.h.b16 %v2386
    %v2687 = vunpack.c.l.b16 %v2387
    %v2688 = vunpack.c.h.b16 %v2387
    %v2689 = vunpack.c.l.b16 %v2388
    %v2690 = vunpack.c.h.b16 %v2388
    %v2691 = vunpack.c.l.b16 %v2389
    %v2692 = vunpack.c.h.b16 %v2389
    %v2693 = vunpack.c.l.b16 %v2390
    %v2694 = vunpack.c.h.b16 %v2390
    %v2695 = vunpack.c.l.b16 %v2391
    %v2696 = vunpack.c.h.b16 %v2391
    %v2697 = vunpack.c.l.b16 %v2392
    %v2698 = vunpack.c.h.b16 %v2392
    %v2699 = vunpack.c.l.b16 %v2393
    %v2700 = vunpack.c.h.b16 %v2393
    %v2701 = vunpack.c.l.b16 %v2394
    %v2702 = vunpack.c.h.b16 %v2394
    %v2703 = vunpack.c.l.b16 %v2395
    %v2704 = vunpack.c.h.b16 %v2395
    %v2705 = vunpack.c.l.b16 %v2396
    %v2706 = vunpack.c.h.b16 %v2396
    %v2707 = vunpack.c.l.b16 %v2397
    %v2708 = vunpack.c.h.b16 %v2397
    %v2709 = vunpack.c.l.b16 %v2398
    %v2710 = vunpack.c.h.b16 %v2398
    %v2711 = vunpack.c.l.b16 %v2399
    %v2712 = vunpack.c.h.b16 %v2399
    %v2713 = vunpack.c.l.b16 %v2400
    %v2714 = vunpack.c.h.b16 %v2400
    %v2715 = vunpack.c.l.b16 %v2401
    %v2716 = vunpack.c.h.b16 %v2401
    %v2717 = vunpack.c.l.b16 %v2402
    %v2718 = vunpack.c.h.b16 %v2402
    %v2719 = vunpack.c.l.b16 %v2403
    %v2720 = vunpack.c.h.b16 %v2403
    %v2721 = vunpack.c.l.b16 %v2404
    %v2722 = vunpack.c.h.b16 %v2404
    %v2723 = vunpack.c.l.b16 %v2405
    %v2724 = vunpack.c.h.b16 %v2405
    %v2725 = vunpack.c.l.b16 %v2406
    %v2726 = vunpack.c.h.b16 %v2406
    %v2727 = vunpack.c.l.b16 %v2407
    %v2728 = vunpack.c.h.b16 %v2407
    %v2729 = vunpack.c.l.b16 %v2408
    %v2730 = vunpack.c.h.b16 %v2408
    %v2731 = vunpack.c.l.b16 %v2409
    %v2732 = vunpack.c.h.b16 %v2409
    %v2733 = vunpack.c.l.b16 %v2410
    %v2734 = vunpack.c.h.b16 %v2410
    %v2735 = vunpack.c.l.b16 %v2411
    %v2736 = vunpack.c.h.b16 %v2411
    %v2737 = vunpack.c.l.b16 %v2412
    %v2738 = vunpack.c.h.b16 %v2412
    %v2739 = vunpack.c.l.b16 %v2413
    %v2740 = vunpack.c.h.b16 %v2413
    %v2741 = vunpack.c.l.b16 %v2414
    %v2742 = vunpack.c.h.b16 %v2414
    %v2743 = vunpack.c.l.b16 %v2415
    %v2744 = vunpack.c.h.b16 %v2415
    %v2745 = vunpack.c.l.b16 %v2416
    %v2746 = vunpack.c.h.b16 %v2416
    %v2747 = vunpack.c.l.b16 %v2417
    %v2748 = vunpack.c.h.b16 %v2417
    %v2749 = vunpack.c.l.b16 %v2418
    %v2750 = vunpack.c.h.b16 %v2418
    %v2751 = vunpack.c.l.b16 %v2419
    %v2752 = vunpack.c.h.b16 %v2419
    %v2753 = vunpack.c.l.b16 %v2420
    %v2754 = vunpack.c.h.b16 %v2420
    %v2755 = vunpack.c.l.b16 %v2421
    %v2756 = vunpack.c.h.b16 %v2421
    %v2757 = vunpack.c.l.b16 %v2422
    %v2758 = vunpack.c.h.b16 %v2422
    %v2759 = vunpack.c.l.b16 %v2423
    %v2760 = vunpack.c.h.b16 %v2423
    %v2761 = vunpack.c.l.b16 %v2424
    %v2762 = vunpack.c.h.b16 %v2424
    %v2763 = vunpack.c.l.b16 %v2425
    %v2764 = vunpack.c.h.b16 %v2425
    %v2765 = vunpack.c.l.b16 %v2426
    %v2766 = vunpack.c.h.b16 %v2426
    %v2767 = vunpack.c.l.b16 %v2427
    %v2768 = vunpack.c.h.b16 %v2427
    %v2769 = vunpack.c.l.b16 %v2428
    %v2770 = vunpack.c.h.b16 %v2428
    %v2771 = vunpack.c.l.b16 %v2429
    %v2772 = vunpack.c.h.b16 %v2429
    %v2773 = vunpack.c.l.b16 %v2430
    %v2774 = vunpack.c.h.b16 %v2430
    %v2775 = vunpack.c.l.b16 %v2431
    %v2776 = vunpack.c.h.b16 %v2431
    %v2777 = vunpack.c.l.b16 %v2432
    %v2778 = vunpack.c.h.b16 %v2432
    %v2779 = vunpack.c.l.b16 %v2433
    %v2780 = vunpack.c.h.b16 %v2433
    %v2781 = vunpack.c.l.b16 %v2434
    %v2782 = vunpack.c.h.b16 %v2434
    %v2783 = vunpack.c.l.b16 %v2435
    %v2784 = vunpack.c.h.b16 %v2435
    %v2785 = vunpack.c.l.b16 %v2436
    %v2786 = vunpack.c.h.b16 %v2436
    %v2787 = vunpack.c.l.b16 %v2437
    %v2788 = vunpack.c.h.b16 %v2437
    %v2789 = vunpack.c.l.b16 %v2438
    %v2790 = vunpack.c.h.b16 %v2438
    %v2791 = vunpack.c.l.b16 %v2439
    %v2792 = vunpack.c.h.b16 %v2439
    %v2793 = vunpack.c.l.b16 %v2440
    %v2794 = vunpack.c.h.b16 %v2440
    %v2795 = vunpack.c.l.b16 %v2441
    %v2796 = vunpack.c.h.b16 %v2441
    %v2797 = vunpack.c.l.b16 %v2442
    %v2798 = vunpack.c.h.b16 %v2442
    %v2799 = vunpack.c.l.b16 %v2443
    %v2800 = vunpack.c.h.b16 %v2443
    %v2801 = vunpack.c.l.b16 %v2444
    %v2802 = vunpack.c.h.b16 %v2444
    %v2803 = vunpack.c.l.b16 %v2445
    %v2804 = vunpack.c.h.b16 %v2445
    %v2805 = vunpack.c.l.b16 %v2446
    %v2806 = vunpack.c.h.b16 %v2446
    %v2807 = vunpack.c.l.b16 %v2447
    %v2808 = vunpack.c.h.b16 %v2447
    %v2809 = vunpack.c.l.b16 %v2448
    %v2810 = vunpack.c.h.b16 %v2448
    %v2811 = vunpack.c.l.b16 %v2449
    %v2812 = vunpack.c.h.b16 %v2449
    %v2813 = vunpack.c.l.b16 %v2450
    %v2814 = vunpack.c.h.b16 %v2450
    %v2815 = vunpack.c.l.b16 %v2451
    %v2816 = vunpack.c.h.b16 %v2451
    %v2817 = vunpack.c.l.b16 %v2452
    %v2818 = vunpack.c.h.b16 %v2452
    %v2819 = vunpack.c.l.b16 %v2453
    %v2820 = vunpack.c.h.b16 %v2453
    %v2821 = vunpack.c.l.b16 %v2454
    %v2822 = vunpack.c.h.b16 %v2454
    %v2823 = vunpack.c.l.b16 %v2455
    %v2824 = vunpack.c.h.b16 %v2455
    %v2825 = vunpack.c.l.b16 %v2456
    %v2826 = vunpack.c.h.b16 %v2456
    %v2827 = vunpack.c.l.b16 %v2457
    %v2828 = vunpack.c.h.b16 %v2457
    %v2829 = vunpack.c.l.b16 %v2458
    %v2830 = vunpack.c.h.b16 %v2458
    %v2831 = vunpack.c.l.b16 %v2459
    %v2832 = vunpack.c.h.b16 %v2459
    %v2833 = vunpack.c.l.b16 %v2460
    %v2834 = vunpack.c.h.b16 %v2460
    %v2835 = vunpack.c.l.b16 %v2461
    %v2836 = vunpack.c.h.b16 %v2461
    %v2837 = vunpack.c.l.b16 %v2462
    %v2838 = vunpack.c.h.b16 %v2462
    %v2839 = vunpack.c.l.b16 %v2463
    %v2840 = vunpack.c.h.b16 %v2463
    %v2841 = vunpack.c.l.b16 %v2464
    %v2842 = vunpack.c.h.b16 %v2464
    %v2843 = vunpack.c.l.b16 %v2465
    %v2844 = vunpack.c.h.b16 %v2465
    %v2845 = vunpack.c.l.b16 %v2466
    %v2846 = vunpack.c.h.b16 %v2466
    %v2847 = vunpack.c.l.b16 %v2467
    %v2848 = vunpack.c.h.b16 %v2467
    %v2849 = vunpack.c.l.b16 %v2468
    %v2850 = vunpack.c.h.b16 %v2468
    %v2851 = vunpack.c.l.b16 %v2469
    %v2852 = vunpack.c.h.b16 %v2469
    %v2853 = vunpack.c.l.b16 %v2470
    %v2854 = vunpack.c.h.b16 %v2470
    %v2855 = vunpack.c.l.b16 %v2471
    %v2856 = vunpack.c.h.b16 %v2471
    %v2857 = vunpack.c.l.b16 %v2472
    %v2858 = vunpack.c.h.b16 %v2472
    %v2859 = vunpack.c.l.b16 %v2473
    %v2860 = vunpack.c.h.b16 %v2473
    %v2861 = vunpack.c.l.b16 %v2474
    %v2862 = vunpack.c.h.b16 %v2474
    %v2863 = vunpack.c.l.b16 %v2475
    %v2864 = vunpack.c.h.b16 %v2475
    %v2865 = vunpack.c.l.b16 %v2476
    %v2866 = vunpack.c.h.b16 %v2476
    %v2867 = vunpack.c.l.b16 %v2477
    %v2868 = vunpack.c.h.b16 %v2477
    %v2869 = vunpack.c.l.b16 %v2478
    %v2870 = vunpack.c.h.b16 %v2478
    %v2871 = vunpack.c.l.b16 %v2479
    %v2872 = vunpack.c.h.b16 %v2479
    %v2873 = vunpack.c.l.b16 %v2480
    %v2874 = vunpack.c.h.b16 %v2480
    %v2875 = vunpack.c.l.b16 %v2481
    %v2876 = vunpack.c.h.b16 %v2481
    %v2877 = vunpack.c.l.b16 %v2482
    %v2878 = vunpack.c.h.b16 %v2482
    %v2879 = vunpack.c.l.b16 %v2483
    %v2880 = vunpack.c.h.b16 %v2483
    %v2881 = vunpack.c.l.b16 %v2484
    %v2882 = vunpack.c.h.b16 %v2484
    %v2883 = vunpack.c.l.b16 %v2485
    %v2884 = vunpack.c.h.b16 %v2485
    %v2885 = vunpack.c.l.b16 %v2486
    %v2886 = vunpack.c.h.b16 %v2486
    %v2887 = vunpack.c.l.b16 %v2487
    %v2888 = vunpack.c.h.b16 %v2487
    %v2889 = vunpack.c.l.b16 %v2488
    %v2890 = vunpack.c.h.b16 %v2488
    %v2891 = vunpack.c.l.b16 %v2489
    %v2892 = vunpack.c.h.b16 %v2489
    %v2893 = vunpack.c.l.b16 %v2490
    %v2894 = vunpack.c.h.b16 %v2490
    %v2895 = vunpack.c.l.b16 %v2491
    %v2896 = vunpack.c.h.b16 %v2491
    %v2897 = vunpack.c.l.b16 %v2492
    %v2898 = vunpack.c.h.b16 %v2492
    %v2899 = vpack.c.b16 %v2647, %v2643
    %v2900 = vpack.c.b16 %v2648, %v2644
    %v2901 = vpack.c.b16 %v2649, %v2645
    %v2902 = vpack.c.b16 %v2650, %v2646
    %v2903 = vpack.c.b16 %v2655, %v2651
    %v2904 = vpack.c.b16 %v2656, %v2652
    %v2905 = vpack.c.b16 %v2657, %v2653
    %v2906 = vpack.c.b16 %v2658, %v2654
    %v2907 = vpack.c.b16 %v2663, %v2659
    %v2908 = vpack.c.b16 %v2664, %v2660
    %v2909 = vpack.c.b16 %v2665, %v2661
    %v2910 = vpack.c.b16 %v2666, %v2662
    %v2911 = vpack.c.b16 %v2671, %v2667
    %v2912 = vpack.c.b16 %v2672, %v2668
    %v2913 = vpack.c.b16 %v2673, %v2669
    %v2914 = vpack.c.b16 %v2674, %v2670
    %v2915 = vpack.c.b16 %v2679, %v2675
    %v2916 = vpack.c.b16 %v2680, %v2676
    %v2917 = vpack.c.b16 %v2681, %v2677
    %v2918 = vpack.c.b16 %v2682, %v2678
    %v2919 = vpack.c.b16 %v2687, %v2683
    %v2920 = vpack.c.b16 %v2688, %v2684
    %v2921 = vpack.c.b16 %v2689, %v2685
    %v2922 = vpack.c.b16 %v2690, %v2686
    %v2923 = vpack.c.b16 %v2695, %v2691
    %v2924 = vpack.c.b16 %v2696, %v2692
    %v2925 = vpack.c.b16 %v2697, %v2693
    %v2926 = vpack.c.b16 %v2698, %v2694
    %v2927 = vpack.c.b16 %v2703, %v2699
    %v2928 = vpack.c.b16 %v2704, %v2700
    %v2929 = vpack.c.b16 %v2705, %v2701
    %v2930 = vpack.c.b16 %v2706, %v2702
    %v2931 = vpack.c.b16 %v2711, %v2707
    %v2932 = vpack.c.b16 %v2712, %v2708
    %v2933 = vpack.c.b16 %v2713, %v2709
    %v2934 = vpack.c.b16 %v2714, %v2710
    %v2935 = vpack.c.b16 %v2719, %v2715
    %v2936 = vpack.c.b16 %v2720, %v2716
    %v2937 = vpack.c.b16 %v2721, %v2717
    %v2938 = vpack.c.b16 %v2722, %v2718
    %v2939 = vpack.c.b16 %v2727, %v2723
    %v2940 = vpack.c.b16 %v2728, %v2724
    %v2941 = vpack.c.b16 %v2729, %v2725
    %v2942 = vpack.c.b16 %v2730, %v2726
    %v2943 = vpack.c.b16 %v2735, %v2731
    %v2944 = vpack.c.b16 %v2736, %v2732
    %v2945 = vpack.c.b16 %v2737, %v2733
    %v2946 = vpack.c.b16 %v2738, %v2734
    %v2947 = vpack.c.b16 %v2743, %v2739
    %v2948 = vpack.c.b16 %v2744, %v2740
    %v2949 = vpack.c.b16 %v2745, %v2741
    %v2950 = vpack.c.b16 %v2746, %v2742
    %v2951 = vpack.c.b16 %v2751, %v2747
    %v2952 = vpack.c.b16 %v2752, %v2748
    %v2953 = vpack.c.b16 %v2753, %v2749
    %v2954 = vpack.c.b16 %v2754, %v2750
    %v2955 = vpack.c.b16 %v2759, %v2755
    %v2956 = vpack.c.b16 %v2760, %v2756
    %v2957 = vpack.c.b16 %v2761, %v2757
    %v2958 = vpack.c.b16 %v2762, %v2758
    %v2959 = vpack.c.b16 %v2767, %v2763
    %v2960 = vpack.c.b16 %v2768, %v2764
    %v2961 = vpack.c.b16 %v2769, %v2765
    %v2962 = vpack.c.b16 %v2770, %v2766
    %v2963 = vpack.c.b16 %v2775, %v2771
    %v2964 = vpack.c.b16 %v2776, %v2772
    %v2965 = vpack.c.b16 %v2777, %v2773
    %v2966 = vpack.c.b16 %v2778, %v2774
    %v2967 = vpack.c.b16 %v2783, %v2779
    %v2968 = vpack.c.b16 %v2784, %v2780
    %v2969 = vpack.c.b16 %v2785, %v2781
    %v2970 = vpack.c.b16 %v2786, %v2782
    %v2971 = vpack.c.b16 %v2791, %v2787
    %v2972 = vpack.c.b16 %v2792, %v2788
    %v2973 = vpack.c.b16 %v2793, %v2789
    %v2974 = vpack.c.b16 %v2794, %v2790
    %v2975 = vpack.c.b16 %v2799, %v2795
    %v2976 = vpack.c.b16 %v2800, %v2796
    %v2977 = vpack.c.b16 %v2801, %v2797
    %v2978 = vpack.c.b16 %v2802, %v2798
    %v2979 = vpack.c.b16 %v2807, %v2803
    %v2980 = vpack.c.b16 %v2808, %v2804
    %v2981 = vpack.c.b16 %v2809, %v2805
    %v2982 = vpack.c.b16 %v2810, %v2806
    %v2983 = vpack.c.b16 %v2815, %v2811
    %v2984 = vpack.c.b16 %v2816, %v2812
    %v2985 = vpack.c.b16 %v2817, %v2813
    %v2986 = vpack.c.b16 %v2818, %v2814
    %v2987 = vpack.c.b16 %v2823, %v2819
    %v2988 = vpack.c.b16 %v2824, %v2820
    %v2989 = vpack.c.b16 %v2825, %v2821
    %v2990 = vpack.c.b16 %v2826, %v2822
    %v2991 = vpack.c.b16 %v2831, %v2827
    %v2992 = vpack.c.b16 %v2832, %v2828
    %v2993 = vpack.c.b16 %v2833, %v2829
    %v2994 = vpack.c.b16 %v2834, %v2830
    %v2995 = vpack.c.b16 %v2839, %v2835
    %v2996 = vpack.c.b16 %v2840, %v2836
    %v2997 = vpack.c.b16 %v2841, %v2837
    %v2998 = vpack.c.b16 %v2842, %v2838
    %v2999 = vpack.c.b16 %v2847, %v2843
    %v3000 = vpack.c.b16 %v2848, %v2844
    %v3001 = vpack.c.b16 %v2849, %v2845
    %v3002 = vpack.c.b16 %v2850, %v2846
    %v3003 = vpack.c.b16 %v2855, %v2851
    %v3004 = vpack.c.b16 %v2856, %v2852
    %v3005 = vpack.c.b16 %v2857, %v2853
    %v3006 = vpack.c.b16 %v2858, %v2854
    %v3007 = vpack.c.b16 %v2863, %v2859
    %v3008 = vpack.c.b16 %v2864, %v2860
    %v3009 = vpack.c.b16 %v2865, %v2861
    %v3010 = vpack.c.b16 %v2866, %v2862
    %v3011 = vpack.c.b16 %v2871, %v2867
    %v3012 = vpack.c.b16 %v2872, %v2868
    %v3013 = vpack.c.b16 %v2873, %v2869
    %v3014 = vpack.c.b16 %v2874, %v2870
    %v3015 = vpack.c.b16 %v2879, %v2875
    %v3016 = vpack.c.b16 %v2880, %v2876
    %v3017 = vpack.c.b16 %v2881, %v2877
    %v3018 = vpack.c.b16 %v2882, %v2878
    %v3019 = vpack.c.b16 %v2887, %v2883
    %v3020 = vpack.c.b16 %v2888, %v2884
    %v3021 = vpack.c.b16 %v2889, %v2885
    %v3022 = vpack.c.b16 %v2890, %v2886
    %v3023 = vpack.c.b16 %v2895, %v2891
    %v3024 = vpack.c.b16 %v2896, %v2892
    %v3025 = vpack.c.b16 %v2897, %v2893
    %v3026 = vpack.c.b16 %v2898, %v2894
    %3155 = vmatprep.subr.bf16.mxu0 %v2900
    %3156 = vmatpush1.bf16.msra.mxu0 %v2899
    %3157 = vmatprep.subr.bf16.mxu0 %v2904
    %3158 = vmatpush1.bf16.msra.mxu0 %v2903
    %3159 = vmatprep.subr.bf16.mxu0 %v2908
    %3160 = vmatpush1.bf16.msra.mxu0 %v2907
    %3161 = vmatprep.subr.bf16.mxu0 %v2912
    %3162 = vmatpush1.bf16.msra.mxu0 %v2911
    %3163 = vmatprep.subr.bf16.mxu0 %v2916
    %3164 = vmatpush1.bf16.msra.mxu0 %v2915
    %3165 = vmatprep.subr.bf16.mxu0 %v2920
    %3166 = vmatpush1.bf16.msra.mxu0 %v2919
    %3167 = vmatprep.subr.bf16.mxu0 %v2924
    %3168 = vmatpush1.bf16.msra.mxu0 %v2923
    %3169 = vmatprep.subr.bf16.mxu0 %v2928
    %3170 = vmatpush1.bf16.msra.mxu0 %v2927
    %3171 = vmatprep.subr.bf16.mxu0 %v2932
    %3172 = vmatpush1.bf16.msra.mxu0 %v2931
    %3173 = vmatprep.subr.bf16.mxu0 %v2936
    %3174 = vmatpush1.bf16.msra.mxu0 %v2935
    %3175 = vmatprep.subr.bf16.mxu0 %v2940
    %3176 = vmatpush1.bf16.msra.mxu0 %v2939
    %3177 = vmatprep.subr.bf16.mxu0 %v2944
    %3178 = vmatpush1.bf16.msra.mxu0 %v2943
    %3179 = vmatprep.subr.bf16.mxu0 %v2948
    %3180 = vmatpush1.bf16.msra.mxu0 %v2947
    %3181 = vmatprep.subr.bf16.mxu0 %v2952
    %3182 = vmatpush1.bf16.msra.mxu0 %v2951
    %3183 = vmatprep.subr.bf16.mxu0 %v2956
    %3184 = vmatpush1.bf16.msra.mxu0 %v2955
    %3185 = vmatprep.subr.bf16.mxu0 %v2960
    %3186 = vmatpush1.bf16.msra.mxu0 %v2959
    %3187 = vmatprep.mubr.bf16.mxu0 %v2358
    %3188 = vmatmul.mubr.bf16.gmra.mrb[0].mxu0 %v2357
    %v3189 = vpop.f32.mrb[0].mxu0
    %v3190 = vadd.f32 %v2498, %v3189
    %v3191 = vpop.f32.mrb[0].mxu0
    %v3192 = vadd.f32 %v2502, %v3191
    %v3193 = vpop.f32.mrb[0].mxu0
    %v3194 = vadd.f32 %v2498, %v3193
    %v3195 = vpop.f32.mrb[0].mxu0
    %v3196 = vadd.f32 %v2502, %v3195
    %3197 = vdwg.mxu0
    %3198 = vmatprep.subr.bf16.mxu0 %v2964
    %3199 = vmatpush1.bf16.msra.mxu0 %v2963
    %3200 = vmatprep.subr.bf16.mxu0 %v2968
    %3201 = vmatpush1.bf16.msra.mxu0 %v2967
    %3202 = vmatprep.subr.bf16.mxu0 %v2972
    %3203 = vmatpush1.bf16.msra.mxu0 %v2971
    %3204 = vmatprep.subr.bf16.mxu0 %v2976
    %3205 = vmatpush1.bf16.msra.mxu0 %v2975
    %3206 = vmatprep.subr.bf16.mxu0 %v2980
    %3207 = vmatpush1.bf16.msra.mxu0 %v2979
    %3208 = vmatprep.subr.bf16.mxu0 %v2984
    %3209 = vmatpush1.bf16.msra.mxu0 %v2983
    %3210 = vmatprep.subr.bf16.mxu0 %v2988
    %3211 = vmatpush1.bf16.msra.mxu0 %v2987
    %3212 = vmatprep.subr.bf16.mxu0 %v2992
    %3213 = vmatpush1.bf16.msra.mxu0 %v2991
    %3214 = vmatprep.subr.bf16.mxu0 %v2996
    %3215 = vmatpush1.bf16.msra.mxu0 %v2995
    %3216 = vmatprep.subr.bf16.mxu0 %v3000
    %3217 = vmatpush1.bf16.msra.mxu0 %v2999
    %3218 = vmatprep.subr.bf16.mxu0 %v3004
    %3219 = vmatpush1.bf16.msra.mxu0 %v3003
    %3220 = vmatprep.subr.bf16.mxu0 %v3008
    %3221 = vmatpush1.bf16.msra.mxu0 %v3007
    %3222 = vmatprep.subr.bf16.mxu0 %v3012
    %3223 = vmatpush1.bf16.msra.mxu0 %v3011
    %3224 = vmatprep.subr.bf16.mxu0 %v3016
    %3225 = vmatpush1.bf16.msra.mxu0 %v3015
    %3226 = vmatprep.subr.bf16.mxu0 %v3020
    %3227 = vmatpush1.bf16.msra.mxu0 %v3019
    %3228 = vmatprep.subr.bf16.mxu0 %v3024
    %3229 = vmatpush1.bf16.msra.mxu0 %v3023
    %3230 = vmatprep.mubr.bf16.mxu0 %v2360
    %3231 = vmatmul.mubr.bf16.gmra.mrb[0].mxu0 %v2359
    %v3232 = vpop.f32.mrb[0].mxu0
    %v3233 = vadd.f32 %v3190, %v3232
    %v3234 = vpop.f32.mrb[0].mxu0
    %v3235 = vadd.f32 %v3192, %v3234
    %v3236 = vpop.f32.mrb[0].mxu0
    %v3237 = vadd.f32 %v3194, %v3236
    %v3238 = vpop.f32.mrb[0].mxu0
    %v3239 = vadd.f32 %v3196, %v3238
    %3240 = vdwg.mxu0
    %3241 = vmatprep.subr.bf16.mxu0 %v2902
    %3242 = vmatpush1.bf16.msra.mxu0 %v2901
    %3243 = vmatprep.subr.bf16.mxu0 %v2906
    %3244 = vmatpush1.bf16.msra.mxu0 %v2905
    %3245 = vmatprep.subr.bf16.mxu0 %v2910
    %3246 = vmatpush1.bf16.msra.mxu0 %v2909
    %3247 = vmatprep.subr.bf16.mxu0 %v2914
    %3248 = vmatpush1.bf16.msra.mxu0 %v2913
    %3249 = vmatprep.subr.bf16.mxu0 %v2918
    %3250 = vmatpush1.bf16.msra.mxu0 %v2917
    %3251 = vmatprep.subr.bf16.mxu0 %v2922
    %3252 = vmatpush1.bf16.msra.mxu0 %v2921
    %3253 = vmatprep.subr.bf16.mxu0 %v2926
    %3254 = vmatpush1.bf16.msra.mxu0 %v2925
    %3255 = vmatprep.subr.bf16.mxu0 %v2930
    %3256 = vmatpush1.bf16.msra.mxu0 %v2929
    %3257 = vmatprep.subr.bf16.mxu0 %v2934
    %3258 = vmatpush1.bf16.msra.mxu0 %v2933
    %3259 = vmatprep.subr.bf16.mxu0 %v2938
    %3260 = vmatpush1.bf16.msra.mxu0 %v2937
    %3261 = vmatprep.subr.bf16.mxu0 %v2942
    %3262 = vmatpush1.bf16.msra.mxu0 %v2941
    %3263 = vmatprep.subr.bf16.mxu0 %v2946
    %3264 = vmatpush1.bf16.msra.mxu0 %v2945
    %3265 = vmatprep.subr.bf16.mxu0 %v2950
    %3266 = vmatpush1.bf16.msra.mxu0 %v2949
    %3267 = vmatprep.subr.bf16.mxu0 %v2954
    %3268 = vmatpush1.bf16.msra.mxu0 %v2953
    %3269 = vmatprep.subr.bf16.mxu0 %v2958
    %3270 = vmatpush1.bf16.msra.mxu0 %v2957
    %3271 = vmatprep.subr.bf16.mxu0 %v2962
    %3272 = vmatpush1.bf16.msra.mxu0 %v2961
    %3273 = vmatprep.mubr.bf16.mxu0 %v2358
    %3274 = vmatmul.mubr.bf16.gmra.mrb[0].mxu0 %v2357
    %v3275 = vpop.f32.mrb[0].mxu0
    %v3276 = vadd.f32 %v2506, %v3275
    %v3277 = vpop.f32.mrb[0].mxu0
    %v3278 = vadd.f32 %v2510, %v3277
    %v3279 = vpop.f32.mrb[0].mxu0
    %v3280 = vadd.f32 %v2506, %v3279
    %v3281 = vpop.f32.mrb[0].mxu0
    %v3282 = vadd.f32 %v2510, %v3281
    %3283 = vdwg.mxu0
    %3284 = vmatprep.subr.bf16.mxu0 %v2966
    %3285 = vmatpush1.bf16.msra.mxu0 %v2965
    %3286 = vmatprep.subr.bf16.mxu0 %v2970
    %3287 = vmatpush1.bf16.msra.mxu0 %v2969
    %3288 = vmatprep.subr.bf16.mxu0 %v2974
    %3289 = vmatpush1.bf16.msra.mxu0 %v2973
    %3290 = vmatprep.subr.bf16.mxu0 %v2978
    %3291 = vmatpush1.bf16.msra.mxu0 %v2977
    %3292 = vmatprep.subr.bf16.mxu0 %v2982
    %3293 = vmatpush1.bf16.msra.mxu0 %v2981
    %3294 = vmatprep.subr.bf16.mxu0 %v2986
    %3295 = vmatpush1.bf16.msra.mxu0 %v2985
    %3296 = vmatprep.subr.bf16.mxu0 %v2990
    %3297 = vmatpush1.bf16.msra.mxu0 %v2989
    %3298 = vmatprep.subr.bf16.mxu0 %v2994
    %3299 = vmatpush1.bf16.msra.mxu0 %v2993
    %3300 = vmatprep.subr.bf16.mxu0 %v2998
    %3301 = vmatpush1.bf16.msra.mxu0 %v2997
    %3302 = vmatprep.subr.bf16.mxu0 %v3002
    %3303 = vmatpush1.bf16.msra.mxu0 %v3001
    %3304 = vmatprep.subr.bf16.mxu0 %v3006
    %3305 = vmatpush1.bf16.msra.mxu0 %v3005
    %3306 = vmatprep.subr.bf16.mxu0 %v3010
    %3307 = vmatpush1.bf16.msra.mxu0 %v3009
    %3308 = vmatprep.subr.bf16.mxu0 %v3014
    %3309 = vmatpush1.bf16.msra.mxu0 %v3013
    %3310 = vmatprep.subr.bf16.mxu0 %v3018
    %3311 = vmatpush1.bf16.msra.mxu0 %v3017
    %3312 = vmatprep.subr.bf16.mxu0 %v3022
    %3313 = vmatpush1.bf16.msra.mxu0 %v3021
    %3314 = vmatprep.subr.bf16.mxu0 %v3026
    %3315 = vmatpush1.bf16.msra.mxu0 %v3025
    %3316 = vmatprep.mubr.bf16.mxu0 %v2360
    %3317 = vmatmul.mubr.bf16.gmra.mrb[0].mxu0 %v2359
    %v3318 = vpop.f32.mrb[0].mxu0
    %v3319 = vadd.f32 %v3276, %v3318
    %v3320 = vpop.f32.mrb[0].mxu0
    %v3321 = vadd.f32 %v3278, %v3320
    %v3322 = vpop.f32.mrb[0].mxu0
    %v3323 = vadd.f32 %v3280, %v3322
    %v3324 = vpop.f32.mrb[0].mxu0
    %v3325 = vadd.f32 %v3282, %v3324
    %3326 = vdwg.mxu0
    %v3327 = vmax.f32 %v3233, 0.0
    %v3328 = vmax.f32 %v3235, 0.0
    %v3329 = vmax.f32 %v3319, 0.0
    %v3330 = vmax.f32 %v3321, 0.0
    %v3331 = vmax.f32 %v3237, 0.0
    %v3332 = vmax.f32 %v3239, 0.0
    %v3333 = vmax.f32 %v3323, 0.0
    %v3334 = vmax.f32 %v3325, 0.0
    %v3335 = vpack.c.bf16 %v3331, %v3327
    %v3336 = vpack.c.bf16 %v3332, %v3328
    %v3337 = vpack.c.bf16 %v3333, %v3329
    %v3338 = vpack.c.bf16 %v3334, %v3330
    %v3339 = vld [vmem:[#allocation7] sm:$0xff]
    %v3340 = vld [vmem:[#allocation7 + $0x8] sm:$0xff]
    %v3341 = vld [vmem:[#allocation7 + $0x10] sm:$0xff]
    %v3342 = vld [vmem:[#allocation7 + $0x18] sm:$0xff]
    %v3343 = vld [vmem:[#allocation7 + $0x20] sm:$0xff]
    %v3344 = vld [vmem:[#allocation7 + $0x28] sm:$0xff]
    %v3345 = vld [vmem:[#allocation7 + $0x30] sm:$0xff]
    %v3346 = vld [vmem:[#allocation7 + $0x38] sm:$0xff]
    %v3347 = vld [vmem:[#allocation7 + $0x40] sm:$0xff]
    %v3348 = vld [vmem:[#allocation7 + $0x48] sm:$0xff]
    %v3349 = vld [vmem:[#allocation7 + $0x50] sm:$0xff]
    %v3350 = vld [vmem:[#allocation7 + $0x58] sm:$0xff]
    %v3351 = vld [vmem:[#allocation7 + $0x60] sm:$0xff]
    %v3352 = vld [vmem:[#allocation7 + $0x68] sm:$0xff]
    %v3353 = vld [vmem:[#allocation7 + $0x70] sm:$0xff]
    %v3354 = vld [vmem:[#allocation7 + $0x78] sm:$0xff]
    %v3355 = vld [vmem:[#allocation7 + $0x80] sm:$0xff]
    %v3356 = vld [vmem:[#allocation7 + $0x88] sm:$0xff]
    %v3357 = vld [vmem:[#allocation7 + $0x90] sm:$0xff]
    %v3358 = vld [vmem:[#allocation7 + $0x98] sm:$0xff]
    %v3359 = vld [vmem:[#allocation7 + $0xa0] sm:$0xff]
    %v3360 = vld [vmem:[#allocation7 + $0xa8] sm:$0xff]
    %v3361 = vld [vmem:[#allocation7 + $0xb0] sm:$0xff]
    %v3362 = vld [vmem:[#allocation7 + $0xb8] sm:$0xff]
    %v3363 = vld [vmem:[#allocation7 + $0xc0] sm:$0xff]
    %v3364 = vld [vmem:[#allocation7 + $0xc8] sm:$0xff]
    %v3365 = vld [vmem:[#allocation7 + $0xd0] sm:$0xff]
    %v3366 = vld [vmem:[#allocation7 + $0xd8] sm:$0xff]
    %v3367 = vld [vmem:[#allocation7 + $0xe0] sm:$0xff]
    %v3368 = vld [vmem:[#allocation7 + $0xe8] sm:$0xff]
    %v3369 = vld [vmem:[#allocation7 + $0xf0] sm:$0xff]
    %v3370 = vld [vmem:[#allocation7 + $0xf8] sm:$0xff]
    %v3371 = vld [vmem:[#allocation7 + $0x100] sm:$0xff]
    %v3372 = vld [vmem:[#allocation7 + $0x108] sm:$0xff]
    %v3373 = vld [vmem:[#allocation7 + $0x110] sm:$0xff]
    %v3374 = vld [vmem:[#allocation7 + $0x118] sm:$0xff]
    %v3375 = vld [vmem:[#allocation7 + $0x120] sm:$0xff]
    %v3376 = vld [vmem:[#allocation7 + $0x128] sm:$0xff]
    %v3377 = vld [vmem:[#allocation7 + $0x130] sm:$0xff]
    %v3378 = vld [vmem:[#allocation7 + $0x138] sm:$0xff]
    %v3379 = vld [vmem:[#allocation7 + $0x140] sm:$0xff]
    %v3380 = vld [vmem:[#allocation7 + $0x148] sm:$0xff]
    %v3381 = vld [vmem:[#allocation7 + $0x150] sm:$0xff]
    %v3382 = vld [vmem:[#allocation7 + $0x158] sm:$0xff]
    %v3383 = vld [vmem:[#allocation7 + $0x160] sm:$0xff]
    %v3384 = vld [vmem:[#allocation7 + $0x168] sm:$0xff]
    %v3385 = vld [vmem:[#allocation7 + $0x170] sm:$0xff]
    %v3386 = vld [vmem:[#allocation7 + $0x178] sm:$0xff]
    %v3387 = vld [vmem:[#allocation7 + $0x180] sm:$0xff]
    %v3388 = vld [vmem:[#allocation7 + $0x188] sm:$0xff]
    %v3389 = vld [vmem:[#allocation7 + $0x190] sm:$0xff]
    %v3390 = vld [vmem:[#allocation7 + $0x198] sm:$0xff]
    %v3391 = vld [vmem:[#allocation7 + $0x1a0] sm:$0xff]
    %v3392 = vld [vmem:[#allocation7 + $0x1a8] sm:$0xff]
    %v3393 = vld [vmem:[#allocation7 + $0x1b0] sm:$0xff]
    %v3394 = vld [vmem:[#allocation7 + $0x1b8] sm:$0xff]
    %v3395 = vld [vmem:[#allocation7 + $0x1c0] sm:$0xff]
    %v3396 = vld [vmem:[#allocation7 + $0x1c8] sm:$0xff]
    %v3397 = vld [vmem:[#allocation7 + $0x1d0] sm:$0xff]
    %v3398 = vld [vmem:[#allocation7 + $0x1d8] sm:$0xff]
    %v3399 = vld [vmem:[#allocation7 + $0x1e0] sm:$0xff]
    %v3400 = vld [vmem:[#allocation7 + $0x1e8] sm:$0xff]
    %v3401 = vld [vmem:[#allocation7 + $0x1f0] sm:$0xff]
    %v3402 = vld [vmem:[#allocation7 + $0x1f8] sm:$0xff]
    %v3403 = vld [vmem:[#allocation7 + $0x200] sm:$0xff]
    %v3404 = vld [vmem:[#allocation7 + $0x208] sm:$0xff]
    %v3405 = vld [vmem:[#allocation7 + $0x210] sm:$0xff]
    %v3406 = vld [vmem:[#allocation7 + $0x218] sm:$0xff]
    %v3407 = vld [vmem:[#allocation7 + $0x220] sm:$0xff]
    %v3408 = vld [vmem:[#allocation7 + $0x228] sm:$0xff]
    %v3409 = vld [vmem:[#allocation7 + $0x230] sm:$0xff]
    %v3410 = vld [vmem:[#allocation7 + $0x238] sm:$0xff]
    %v3411 = vld [vmem:[#allocation7 + $0x240] sm:$0xff]
    %v3412 = vld [vmem:[#allocation7 + $0x248] sm:$0xff]
    %v3413 = vld [vmem:[#allocation7 + $0x250] sm:$0xff]
    %v3414 = vld [vmem:[#allocation7 + $0x258] sm:$0xff]
    %v3415 = vld [vmem:[#allocation7 + $0x260] sm:$0xff]
    %v3416 = vld [vmem:[#allocation7 + $0x268] sm:$0xff]
    %v3417 = vld [vmem:[#allocation7 + $0x270] sm:$0xff]
    %v3418 = vld [vmem:[#allocation7 + $0x278] sm:$0xff]
    %v3419 = vld [vmem:[#allocation7 + $0x280] sm:$0xff]
    %v3420 = vld [vmem:[#allocation7 + $0x288] sm:$0xff]
    %v3421 = vld [vmem:[#allocation7 + $0x290] sm:$0xff]
    %v3422 = vld [vmem:[#allocation7 + $0x298] sm:$0xff]
    %v3423 = vld [vmem:[#allocation7 + $0x2a0] sm:$0xff]
    %v3424 = vld [vmem:[#allocation7 + $0x2a8] sm:$0xff]
    %v3425 = vld [vmem:[#allocation7 + $0x2b0] sm:$0xff]
    %v3426 = vld [vmem:[#allocation7 + $0x2b8] sm:$0xff]
    %v3427 = vld [vmem:[#allocation7 + $0x2c0] sm:$0xff]
    %v3428 = vld [vmem:[#allocation7 + $0x2c8] sm:$0xff]
    %v3429 = vld [vmem:[#allocation7 + $0x2d0] sm:$0xff]
    %v3430 = vld [vmem:[#allocation7 + $0x2d8] sm:$0xff]
    %v3431 = vld [vmem:[#allocation7 + $0x2e0] sm:$0xff]
    %v3432 = vld [vmem:[#allocation7 + $0x2e8] sm:$0xff]
    %v3433 = vld [vmem:[#allocation7 + $0x2f0] sm:$0xff]
    %v3434 = vld [vmem:[#allocation7 + $0x2f8] sm:$0xff]
    %v3435 = vld [vmem:[#allocation7 + $0x300] sm:$0xff]
    %v3436 = vld [vmem:[#allocation7 + $0x308] sm:$0xff]
    %v3437 = vld [vmem:[#allocation7 + $0x310] sm:$0xff]
    %v3438 = vld [vmem:[#allocation7 + $0x318] sm:$0xff]
    %v3439 = vld [vmem:[#allocation7 + $0x320] sm:$0xff]
    %v3440 = vld [vmem:[#allocation7 + $0x328] sm:$0xff]
    %v3441 = vld [vmem:[#allocation7 + $0x330] sm:$0xff]
    %v3442 = vld [vmem:[#allocation7 + $0x338] sm:$0xff]
    %v3443 = vld [vmem:[#allocation7 + $0x340] sm:$0xff]
    %v3444 = vld [vmem:[#allocation7 + $0x348] sm:$0xff]
    %v3445 = vld [vmem:[#allocation7 + $0x350] sm:$0xff]
    %v3446 = vld [vmem:[#allocation7 + $0x358] sm:$0xff]
    %v3447 = vld [vmem:[#allocation7 + $0x360] sm:$0xff]
    %v3448 = vld [vmem:[#allocation7 + $0x368] sm:$0xff]
    %v3449 = vld [vmem:[#allocation7 + $0x370] sm:$0xff]
    %v3450 = vld [vmem:[#allocation7 + $0x378] sm:$0xff]
    %v3451 = vld [vmem:[#allocation7 + $0x380] sm:$0xff]
    %v3452 = vld [vmem:[#allocation7 + $0x388] sm:$0xff]
    %v3453 = vld [vmem:[#allocation7 + $0x390] sm:$0xff]
    %v3454 = vld [vmem:[#allocation7 + $0x398] sm:$0xff]
    %v3455 = vld [vmem:[#allocation7 + $0x3a0] sm:$0xff]
    %v3456 = vld [vmem:[#allocation7 + $0x3a8] sm:$0xff]
    %v3457 = vld [vmem:[#allocation7 + $0x3b0] sm:$0xff]
    %v3458 = vld [vmem:[#allocation7 + $0x3b8] sm:$0xff]
    %v3459 = vld [vmem:[#allocation7 + $0x3c0] sm:$0xff]
    %v3460 = vld [vmem:[#allocation7 + $0x3c8] sm:$0xff]
    %v3461 = vld [vmem:[#allocation7 + $0x3d0] sm:$0xff]
    %v3462 = vld [vmem:[#allocation7 + $0x3d8] sm:$0xff]
    %v3463 = vld [vmem:[#allocation7 + $0x3e0] sm:$0xff]
    %v3464 = vld [vmem:[#allocation7 + $0x3e8] sm:$0xff]
    %v3465 = vld [vmem:[#allocation7 + $0x3f0] sm:$0xff]
    %v3466 = vld [vmem:[#allocation7 + $0x3f8] sm:$0xff]
    %v3467 = vld [vmem:[%s8] sm:$0xf]
    %v3469 = vlaneseq
    %v3470 = vshrl.u32 %v3469, 7
    %v3471 = vsub.s32 0, %v3470
    %v3472 = vrot.slane %v3467, %v3471
    %v3473 = vlaneseq
    %v3474 = vshrl.u32 %v3473, 7
    %v3475 = vsub.s32 1, %v3474
    %v3476 = vrot.slane %v3467, %v3475
    %v3477 = vlaneseq
    %v3478 = vshrl.u32 %v3477, 7
    %v3479 = vsub.s32 2, %v3478
    %v3480 = vrot.slane %v3467, %v3479
    %v3481 = vlaneseq
    %v3482 = vshrl.u32 %v3481, 7
    %v3483 = vsub.s32 3, %v3482
    %v3484 = vrot.slane %v3467, %v3483
    %v3617 = vunpack.c.l.b16 %v3339
    %v3618 = vunpack.c.h.b16 %v3339
    %v3619 = vunpack.c.l.b16 %v3340
    %v3620 = vunpack.c.h.b16 %v3340
    %v3621 = vunpack.c.l.b16 %v3341
    %v3622 = vunpack.c.h.b16 %v3341
    %v3623 = vunpack.c.l.b16 %v3342
    %v3624 = vunpack.c.h.b16 %v3342
    %v3625 = vunpack.c.l.b16 %v3343
    %v3626 = vunpack.c.h.b16 %v3343
    %v3627 = vunpack.c.l.b16 %v3344
    %v3628 = vunpack.c.h.b16 %v3344
    %v3629 = vunpack.c.l.b16 %v3345
    %v3630 = vunpack.c.h.b16 %v3345
    %v3631 = vunpack.c.l.b16 %v3346
    %v3632 = vunpack.c.h.b16 %v3346
    %v3633 = vunpack.c.l.b16 %v3347
    %v3634 = vunpack.c.h.b16 %v3347
    %v3635 = vunpack.c.l.b16 %v3348
    %v3636 = vunpack.c.h.b16 %v3348
    %v3637 = vunpack.c.l.b16 %v3349
    %v3638 = vunpack.c.h.b16 %v3349
    %v3639 = vunpack.c.l.b16 %v3350
    %v3640 = vunpack.c.h.b16 %v3350
    %v3641 = vunpack.c.l.b16 %v3351
    %v3642 = vunpack.c.h.b16 %v3351
    %v3643 = vunpack.c.l.b16 %v3352
    %v3644 = vunpack.c.h.b16 %v3352
    %v3645 = vunpack.c.l.b16 %v3353
    %v3646 = vunpack.c.h.b16 %v3353
    %v3647 = vunpack.c.l.b16 %v3354
    %v3648 = vunpack.c.h.b16 %v3354
    %v3649 = vunpack.c.l.b16 %v3355
    %v3650 = vunpack.c.h.b16 %v3355
    %v3651 = vunpack.c.l.b16 %v3356
    %v3652 = vunpack.c.h.b16 %v3356
    %v3653 = vunpack.c.l.b16 %v3357
    %v3654 = vunpack.c.h.b16 %v3357
    %v3655 = vunpack.c.l.b16 %v3358
    %v3656 = vunpack.c.h.b16 %v3358
    %v3657 = vunpack.c.l.b16 %v3359
    %v3658 = vunpack.c.h.b16 %v3359
    %v3659 = vunpack.c.l.b16 %v3360
    %v3660 = vunpack.c.h.b16 %v3360
    %v3661 = vunpack.c.l.b16 %v3361
    %v3662 = vunpack.c.h.b16 %v3361
    %v3663 = vunpack.c.l.b16 %v3362
    %v3664 = vunpack.c.h.b16 %v3362
    %v3665 = vunpack.c.l.b16 %v3363
    %v3666 = vunpack.c.h.b16 %v3363
    %v3667 = vunpack.c.l.b16 %v3364
    %v3668 = vunpack.c.h.b16 %v3364
    %v3669 = vunpack.c.l.b16 %v3365
    %v3670 = vunpack.c.h.b16 %v3365
    %v3671 = vunpack.c.l.b16 %v3366
    %v3672 = vunpack.c.h.b16 %v3366
    %v3673 = vunpack.c.l.b16 %v3367
    %v3674 = vunpack.c.h.b16 %v3367
    %v3675 = vunpack.c.l.b16 %v3368
    %v3676 = vunpack.c.h.b16 %v3368
    %v3677 = vunpack.c.l.b16 %v3369
    %v3678 = vunpack.c.h.b16 %v3369
    %v3679 = vunpack.c.l.b16 %v3370
    %v3680 = vunpack.c.h.b16 %v3370
    %v3681 = vunpack.c.l.b16 %v3371
    %v3682 = vunpack.c.h.b16 %v3371
    %v3683 = vunpack.c.l.b16 %v3372
    %v3684 = vunpack.c.h.b16 %v3372
    %v3685 = vunpack.c.l.b16 %v3373
    %v3686 = vunpack.c.h.b16 %v3373
    %v3687 = vunpack.c.l.b16 %v3374
    %v3688 = vunpack.c.h.b16 %v3374
    %v3689 = vunpack.c.l.b16 %v3375
    %v3690 = vunpack.c.h.b16 %v3375
    %v3691 = vunpack.c.l.b16 %v3376
    %v3692 = vunpack.c.h.b16 %v3376
    %v3693 = vunpack.c.l.b16 %v3377
    %v3694 = vunpack.c.h.b16 %v3377
    %v3695 = vunpack.c.l.b16 %v3378
    %v3696 = vunpack.c.h.b16 %v3378
    %v3697 = vunpack.c.l.b16 %v3379
    %v3698 = vunpack.c.h.b16 %v3379
    %v3699 = vunpack.c.l.b16 %v3380
    %v3700 = vunpack.c.h.b16 %v3380
    %v3701 = vunpack.c.l.b16 %v3381
    %v3702 = vunpack.c.h.b16 %v3381
    %v3703 = vunpack.c.l.b16 %v3382
    %v3704 = vunpack.c.h.b16 %v3382
    %v3705 = vunpack.c.l.b16 %v3383
    %v3706 = vunpack.c.h.b16 %v3383
    %v3707 = vunpack.c.l.b16 %v3384
    %v3708 = vunpack.c.h.b16 %v3384
    %v3709 = vunpack.c.l.b16 %v3385
    %v3710 = vunpack.c.h.b16 %v3385
    %v3711 = vunpack.c.l.b16 %v3386
    %v3712 = vunpack.c.h.b16 %v3386
    %v3713 = vunpack.c.l.b16 %v3387
    %v3714 = vunpack.c.h.b16 %v3387
    %v3715 = vunpack.c.l.b16 %v3388
    %v3716 = vunpack.c.h.b16 %v3388
    %v3717 = vunpack.c.l.b16 %v3389
    %v3718 = vunpack.c.h.b16 %v3389
    %v3719 = vunpack.c.l.b16 %v3390
    %v3720 = vunpack.c.h.b16 %v3390
    %v3721 = vunpack.c.l.b16 %v3391
    %v3722 = vunpack.c.h.b16 %v3391
    %v3723 = vunpack.c.l.b16 %v3392
    %v3724 = vunpack.c.h.b16 %v3392
    %v3725 = vunpack.c.l.b16 %v3393
    %v3726 = vunpack.c.h.b16 %v3393
    %v3727 = vunpack.c.l.b16 %v3394
    %v3728 = vunpack.c.h.b16 %v3394
    %v3729 = vunpack.c.l.b16 %v3395
    %v3730 = vunpack.c.h.b16 %v3395
    %v3731 = vunpack.c.l.b16 %v3396
    %v3732 = vunpack.c.h.b16 %v3396
    %v3733 = vunpack.c.l.b16 %v3397
    %v3734 = vunpack.c.h.b16 %v3397
    %v3735 = vunpack.c.l.b16 %v3398
    %v3736 = vunpack.c.h.b16 %v3398
    %v3737 = vunpack.c.l.b16 %v3399
    %v3738 = vunpack.c.h.b16 %v3399
    %v3739 = vunpack.c.l.b16 %v3400
    %v3740 = vunpack.c.h.b16 %v3400
    %v3741 = vunpack.c.l.b16 %v3401
    %v3742 = vunpack.c.h.b16 %v3401
    %v3743 = vunpack.c.l.b16 %v3402
    %v3744 = vunpack.c.h.b16 %v3402
    %v3745 = vunpack.c.l.b16 %v3403
    %v3746 = vunpack.c.h.b16 %v3403
    %v3747 = vunpack.c.l.b16 %v3404
    %v3748 = vunpack.c.h.b16 %v3404
    %v3749 = vunpack.c.l.b16 %v3405
    %v3750 = vunpack.c.h.b16 %v3405
    %v3751 = vunpack.c.l.b16 %v3406
    %v3752 = vunpack.c.h.b16 %v3406
    %v3753 = vunpack.c.l.b16 %v3407
    %v3754 = vunpack.c.h.b16 %v3407
    %v3755 = vunpack.c.l.b16 %v3408
    %v3756 = vunpack.c.h.b16 %v3408
    %v3757 = vunpack.c.l.b16 %v3409
    %v3758 = vunpack.c.h.b16 %v3409
    %v3759 = vunpack.c.l.b16 %v3410
    %v3760 = vunpack.c.h.b16 %v3410
    %v3761 = vunpack.c.l.b16 %v3411
    %v3762 = vunpack.c.h.b16 %v3411
    %v3763 = vunpack.c.l.b16 %v3412
    %v3764 = vunpack.c.h.b16 %v3412
    %v3765 = vunpack.c.l.b16 %v3413
    %v3766 = vunpack.c.h.b16 %v3413
    %v3767 = vunpack.c.l.b16 %v3414
    %v3768 = vunpack.c.h.b16 %v3414
    %v3769 = vunpack.c.l.b16 %v3415
    %v3770 = vunpack.c.h.b16 %v3415
    %v3771 = vunpack.c.l.b16 %v3416
    %v3772 = vunpack.c.h.b16 %v3416
    %v3773 = vunpack.c.l.b16 %v3417
    %v3774 = vunpack.c.h.b16 %v3417
    %v3775 = vunpack.c.l.b16 %v3418
    %v3776 = vunpack.c.h.b16 %v3418
    %v3777 = vunpack.c.l.b16 %v3419
    %v3778 = vunpack.c.h.b16 %v3419
    %v3779 = vunpack.c.l.b16 %v3420
    %v3780 = vunpack.c.h.b16 %v3420
    %v3781 = vunpack.c.l.b16 %v3421
    %v3782 = vunpack.c.h.b16 %v3421
    %v3783 = vunpack.c.l.b16 %v3422
    %v3784 = vunpack.c.h.b16 %v3422
    %v3785 = vunpack.c.l.b16 %v3423
    %v3786 = vunpack.c.h.b16 %v3423
    %v3787 = vunpack.c.l.b16 %v3424
    %v3788 = vunpack.c.h.b16 %v3424
    %v3789 = vunpack.c.l.b16 %v3425
    %v3790 = vunpack.c.h.b16 %v3425
    %v3791 = vunpack.c.l.b16 %v3426
    %v3792 = vunpack.c.h.b16 %v3426
    %v3793 = vunpack.c.l.b16 %v3427
    %v3794 = vunpack.c.h.b16 %v3427
    %v3795 = vunpack.c.l.b16 %v3428
    %v3796 = vunpack.c.h.b16 %v3428
    %v3797 = vunpack.c.l.b16 %v3429
    %v3798 = vunpack.c.h.b16 %v3429
    %v3799 = vunpack.c.l.b16 %v3430
    %v3800 = vunpack.c.h.b16 %v3430
    %v3801 = vunpack.c.l.b16 %v3431
    %v3802 = vunpack.c.h.b16 %v3431
    %v3803 = vunpack.c.l.b16 %v3432
    %v3804 = vunpack.c.h.b16 %v3432
    %v3805 = vunpack.c.l.b16 %v3433
    %v3806 = vunpack.c.h.b16 %v3433
    %v3807 = vunpack.c.l.b16 %v3434
    %v3808 = vunpack.c.h.b16 %v3434
    %v3809 = vunpack.c.l.b16 %v3435
    %v3810 = vunpack.c.h.b16 %v3435
    %v3811 = vunpack.c.l.b16 %v3436
    %v3812 = vunpack.c.h.b16 %v3436
    %v3813 = vunpack.c.l.b16 %v3437
    %v3814 = vunpack.c.h.b16 %v3437
    %v3815 = vunpack.c.l.b16 %v3438
    %v3816 = vunpack.c.h.b16 %v3438
    %v3817 = vunpack.c.l.b16 %v3439
    %v3818 = vunpack.c.h.b16 %v3439
    %v3819 = vunpack.c.l.b16 %v3440
    %v3820 = vunpack.c.h.b16 %v3440
    %v3821 = vunpack.c.l.b16 %v3441
    %v3822 = vunpack.c.h.b16 %v3441
    %v3823 = vunpack.c.l.b16 %v3442
    %v3824 = vunpack.c.h.b16 %v3442
    %v3825 = vunpack.c.l.b16 %v3443
    %v3826 = vunpack.c.h.b16 %v3443
    %v3827 = vunpack.c.l.b16 %v3444
    %v3828 = vunpack.c.h.b16 %v3444
    %v3829 = vunpack.c.l.b16 %v3445
    %v3830 = vunpack.c.h.b16 %v3445
    %v3831 = vunpack.c.l.b16 %v3446
    %v3832 = vunpack.c.h.b16 %v3446
    %v3833 = vunpack.c.l.b16 %v3447
    %v3834 = vunpack.c.h.b16 %v3447
    %v3835 = vunpack.c.l.b16 %v3448
    %v3836 = vunpack.c.h.b16 %v3448
    %v3837 = vunpack.c.l.b16 %v3449
    %v3838 = vunpack.c.h.b16 %v3449
    %v3839 = vunpack.c.l.b16 %v3450
    %v3840 = vunpack.c.h.b16 %v3450
    %v3841 = vunpack.c.l.b16 %v3451
    %v3842 = vunpack.c.h.b16 %v3451
    %v3843 = vunpack.c.l.b16 %v3452
    %v3844 = vunpack.c.h.b16 %v3452
    %v3845 = vunpack.c.l.b16 %v3453
    %v3846 = vunpack.c.h.b16 %v3453
    %v3847 = vunpack.c.l.b16 %v3454
    %v3848 = vunpack.c.h.b16 %v3454
    %v3849 = vunpack.c.l.b16 %v3455
    %v3850 = vunpack.c.h.b16 %v3455
    %v3851 = vunpack.c.l.b16 %v3456
    %v3852 = vunpack.c.h.b16 %v3456
    %v3853 = vunpack.c.l.b16 %v3457
    %v3854 = vunpack.c.h.b16 %v3457
    %v3855 = vunpack.c.l.b16 %v3458
    %v3856 = vunpack.c.h.b16 %v3458
    %v3857 = vunpack.c.l.b16 %v3459
    %v3858 = vunpack.c.h.b16 %v3459
    %v3859 = vunpack.c.l.b16 %v3460
    %v3860 = vunpack.c.h.b16 %v3460
    %v3861 = vunpack.c.l.b16 %v3461
    %v3862 = vunpack.c.h.b16 %v3461
    %v3863 = vunpack.c.l.b16 %v3462
    %v3864 = vunpack.c.h.b16 %v3462
    %v3865 = vunpack.c.l.b16 %v3463
    %v3866 = vunpack.c.h.b16 %v3463
    %v3867 = vunpack.c.l.b16 %v3464
    %v3868 = vunpack.c.h.b16 %v3464
    %v3869 = vunpack.c.l.b16 %v3465
    %v3870 = vunpack.c.h.b16 %v3465
    %v3871 = vunpack.c.l.b16 %v3466
    %v3872 = vunpack.c.h.b16 %v3466
    %v3873 = vpack.c.b16 %v3621, %v3617
    %v3874 = vpack.c.b16 %v3622, %v3618
    %v3875 = vpack.c.b16 %v3623, %v3619
    %v3876 = vpack.c.b16 %v3624, %v3620
    %v3877 = vpack.c.b16 %v3629, %v3625
    %v3878 = vpack.c.b16 %v3630, %v3626
    %v3879 = vpack.c.b16 %v3631, %v3627
    %v3880 = vpack.c.b16 %v3632, %v3628
    %v3881 = vpack.c.b16 %v3637, %v3633
    %v3882 = vpack.c.b16 %v3638, %v3634
    %v3883 = vpack.c.b16 %v3639, %v3635
    %v3884 = vpack.c.b16 %v3640, %v3636
    %v3885 = vpack.c.b16 %v3645, %v3641
    %v3886 = vpack.c.b16 %v3646, %v3642
    %v3887 = vpack.c.b16 %v3647, %v3643
    %v3888 = vpack.c.b16 %v3648, %v3644
    %v3889 = vpack.c.b16 %v3653, %v3649
    %v3890 = vpack.c.b16 %v3654, %v3650
    %v3891 = vpack.c.b16 %v3655, %v3651
    %v3892 = vpack.c.b16 %v3656, %v3652
    %v3893 = vpack.c.b16 %v3661, %v3657
    %v3894 = vpack.c.b16 %v3662, %v3658
    %v3895 = vpack.c.b16 %v3663, %v3659
    %v3896 = vpack.c.b16 %v3664, %v3660
    %v3897 = vpack.c.b16 %v3669, %v3665
    %v3898 = vpack.c.b16 %v3670, %v3666
    %v3899 = vpack.c.b16 %v3671, %v3667
    %v3900 = vpack.c.b16 %v3672, %v3668
    %v3901 = vpack.c.b16 %v3677, %v3673
    %v3902 = vpack.c.b16 %v3678, %v3674
    %v3903 = vpack.c.b16 %v3679, %v3675
    %v3904 = vpack.c.b16 %v3680, %v3676
    %v3905 = vpack.c.b16 %v3685, %v3681
    %v3906 = vpack.c.b16 %v3686, %v3682
    %v3907 = vpack.c.b16 %v3687, %v3683
    %v3908 = vpack.c.b16 %v3688, %v3684
    %v3909 = vpack.c.b16 %v3693, %v3689
    %v3910 = vpack.c.b16 %v3694, %v3690
    %v3911 = vpack.c.b16 %v3695, %v3691
    %v3912 = vpack.c.b16 %v3696, %v3692
    %v3913 = vpack.c.b16 %v3701, %v3697
    %v3914 = vpack.c.b16 %v3702, %v3698
    %v3915 = vpack.c.b16 %v3703, %v3699
    %v3916 = vpack.c.b16 %v3704, %v3700
    %v3917 = vpack.c.b16 %v3709, %v3705
    %v3918 = vpack.c.b16 %v3710, %v3706
    %v3919 = vpack.c.b16 %v3711, %v3707
    %v3920 = vpack.c.b16 %v3712, %v3708
    %v3921 = vpack.c.b16 %v3717, %v3713
    %v3922 = vpack.c.b16 %v3718, %v3714
    %v3923 = vpack.c.b16 %v3719, %v3715
    %v3924 = vpack.c.b16 %v3720, %v3716
    %v3925 = vpack.c.b16 %v3725, %v3721
    %v3926 = vpack.c.b16 %v3726, %v3722
    %v3927 = vpack.c.b16 %v3727, %v3723
    %v3928 = vpack.c.b16 %v3728, %v3724
    %v3929 = vpack.c.b16 %v3733, %v3729
    %v3930 = vpack.c.b16 %v3734, %v3730
    %v3931 = vpack.c.b16 %v3735, %v3731
    %v3932 = vpack.c.b16 %v3736, %v3732
    %v3933 = vpack.c.b16 %v3741, %v3737
    %v3934 = vpack.c.b16 %v3742, %v3738
    %v3935 = vpack.c.b16 %v3743, %v3739
    %v3936 = vpack.c.b16 %v3744, %v3740
    %v3937 = vpack.c.b16 %v3749, %v3745
    %v3938 = vpack.c.b16 %v3750, %v3746
    %v3939 = vpack.c.b16 %v3751, %v3747
    %v3940 = vpack.c.b16 %v3752, %v3748
    %v3941 = vpack.c.b16 %v3757, %v3753
    %v3942 = vpack.c.b16 %v3758, %v3754
    %v3943 = vpack.c.b16 %v3759, %v3755
    %v3944 = vpack.c.b16 %v3760, %v3756
    %v3945 = vpack.c.b16 %v3765, %v3761
    %v3946 = vpack.c.b16 %v3766, %v3762
    %v3947 = vpack.c.b16 %v3767, %v3763
    %v3948 = vpack.c.b16 %v3768, %v3764
    %v3949 = vpack.c.b16 %v3773, %v3769
    %v3950 = vpack.c.b16 %v3774, %v3770
    %v3951 = vpack.c.b16 %v3775, %v3771
    %v3952 = vpack.c.b16 %v3776, %v3772
    %v3953 = vpack.c.b16 %v3781, %v3777
    %v3954 = vpack.c.b16 %v3782, %v3778
    %v3955 = vpack.c.b16 %v3783, %v3779
    %v3956 = vpack.c.b16 %v3784, %v3780
    %v3957 = vpack.c.b16 %v3789, %v3785
    %v3958 = vpack.c.b16 %v3790, %v3786
    %v3959 = vpack.c.b16 %v3791, %v3787
    %v3960 = vpack.c.b16 %v3792, %v3788
    %v3961 = vpack.c.b16 %v3797, %v3793
    %v3962 = vpack.c.b16 %v3798, %v3794
    %v3963 = vpack.c.b16 %v3799, %v3795
    %v3964 = vpack.c.b16 %v3800, %v3796
    %v3965 = vpack.c.b16 %v3805, %v3801
    %v3966 = vpack.c.b16 %v3806, %v3802
    %v3967 = vpack.c.b16 %v3807, %v3803
    %v3968 = vpack.c.b16 %v3808, %v3804
    %v3969 = vpack.c.b16 %v3813, %v3809
    %v3970 = vpack.c.b16 %v3814, %v3810
    %v3971 = vpack.c.b16 %v3815, %v3811
    %v3972 = vpack.c.b16 %v3816, %v3812
    %v3973 = vpack.c.b16 %v3821, %v3817
    %v3974 = vpack.c.b16 %v3822, %v3818
    %v3975 = vpack.c.b16 %v3823, %v3819
    %v3976 = vpack.c.b16 %v3824, %v3820
    %v3977 = vpack.c.b16 %v3829, %v3825
    %v3978 = vpack.c.b16 %v3830, %v3826
    %v3979 = vpack.c.b16 %v3831, %v3827
    %v3980 = vpack.c.b16 %v3832, %v3828
    %v3981 = vpack.c.b16 %v3837, %v3833
    %v3982 = vpack.c.b16 %v3838, %v3834
    %v3983 = vpack.c.b16 %v3839, %v3835
    %v3984 = vpack.c.b16 %v3840, %v3836
    %v3985 = vpack.c.b16 %v3845, %v3841
    %v3986 = vpack.c.b16 %v3846, %v3842
    %v3987 = vpack.c.b16 %v3847, %v3843
    %v3988 = vpack.c.b16 %v3848, %v3844
    %v3989 = vpack.c.b16 %v3853, %v3849
    %v3990 = vpack.c.b16 %v3854, %v3850
    %v3991 = vpack.c.b16 %v3855, %v3851
    %v3992 = vpack.c.b16 %v3856, %v3852
    %v3993 = vpack.c.b16 %v3861, %v3857
    %v3994 = vpack.c.b16 %v3862, %v3858
    %v3995 = vpack.c.b16 %v3863, %v3859
    %v3996 = vpack.c.b16 %v3864, %v3860
    %v3997 = vpack.c.b16 %v3869, %v3865
    %v3998 = vpack.c.b16 %v3870, %v3866
    %v3999 = vpack.c.b16 %v3871, %v3867
    %v4000 = vpack.c.b16 %v3872, %v3868
    %4129 = vmatprep.subr.bf16.mxu0 %v3874
    %4130 = vmatpush1.bf16.msra.mxu0 %v3873
    %4131 = vmatprep.subr.bf16.mxu0 %v3878
    %4132 = vmatpush1.bf16.msra.mxu0 %v3877
    %4133 = vmatprep.subr.bf16.mxu0 %v3882
    %4134 = vmatpush1.bf16.msra.mxu0 %v3881
    %4135 = vmatprep.subr.bf16.mxu0 %v3886
    %4136 = vmatpush1.bf16.msra.mxu0 %v3885
    %4137 = vmatprep.subr.bf16.mxu0 %v3890
    %4138 = vmatpush1.bf16.msra.mxu0 %v3889
    %4139 = vmatprep.subr.bf16.mxu0 %v3894
    %4140 = vmatpush1.bf16.msra.mxu0 %v3893
    %4141 = vmatprep.subr.bf16.mxu0 %v3898
    %4142 = vmatpush1.bf16.msra.mxu0 %v3897
    %4143 = vmatprep.subr.bf16.mxu0 %v3902
    %4144 = vmatpush1.bf16.msra.mxu0 %v3901
    %4145 = vmatprep.subr.bf16.mxu0 %v3906
    %4146 = vmatpush1.bf16.msra.mxu0 %v3905
    %4147 = vmatprep.subr.bf16.mxu0 %v3910
    %4148 = vmatpush1.bf16.msra.mxu0 %v3909
    %4149 = vmatprep.subr.bf16.mxu0 %v3914
    %4150 = vmatpush1.bf16.msra.mxu0 %v3913
    %4151 = vmatprep.subr.bf16.mxu0 %v3918
    %4152 = vmatpush1.bf16.msra.mxu0 %v3917
    %4153 = vmatprep.subr.bf16.mxu0 %v3922
    %4154 = vmatpush1.bf16.msra.mxu0 %v3921
    %4155 = vmatprep.subr.bf16.mxu0 %v3926
    %4156 = vmatpush1.bf16.msra.mxu0 %v3925
    %4157 = vmatprep.subr.bf16.mxu0 %v3930
    %4158 = vmatpush1.bf16.msra.mxu0 %v3929
    %4159 = vmatprep.subr.bf16.mxu0 %v3934
    %4160 = vmatpush1.bf16.msra.mxu0 %v3933
    %4161 = vmatprep.mubr.bf16.mxu0 %v2362
    %4162 = vmatmul.mubr.bf16.gmra.mrb[0].mxu0 %v2361
    %v4163 = vpop.f32.mrb[0].mxu0
    %v4164 = vadd.f32 %v3472, %v4163
    %v4165 = vpop.f32.mrb[0].mxu0
    %v4166 = vadd.f32 %v3476, %v4165
    %v4167 = vpop.f32.mrb[0].mxu0
    %v4168 = vadd.f32 %v3472, %v4167
    %v4169 = vpop.f32.mrb[0].mxu0
    %v4170 = vadd.f32 %v3476, %v4169
    %4171 = vdwg.mxu0
    %4172 = vmatprep.subr.bf16.mxu0 %v3938
    %4173 = vmatpush1.bf16.msra.mxu0 %v3937
    %4174 = vmatprep.subr.bf16.mxu0 %v3942
    %4175 = vmatpush1.bf16.msra.mxu0 %v3941
    %4176 = vmatprep.subr.bf16.mxu0 %v3946
    %4177 = vmatpush1.bf16.msra.mxu0 %v3945
    %4178 = vmatprep.subr.bf16.mxu0 %v3950
    %4179 = vmatpush1.bf16.msra.mxu0 %v3949
    %4180 = vmatprep.subr.bf16.mxu0 %v3954
    %4181 = vmatpush1.bf16.msra.mxu0 %v3953
    %4182 = vmatprep.subr.bf16.mxu0 %v3958
    %4183 = vmatpush1.bf16.msra.mxu0 %v3957
    %4184 = vmatprep.subr.bf16.mxu0 %v3962
    %4185 = vmatpush1.bf16.msra.mxu0 %v3961
    %4186 = vmatprep.subr.bf16.mxu0 %v3966
    %4187 = vmatpush1.bf16.msra.mxu0 %v3965
    %4188 = vmatprep.subr.bf16.mxu0 %v3970
    %4189 = vmatpush1.bf16.msra.mxu0 %v3969
    %4190 = vmatprep.subr.bf16.mxu0 %v3974
    %4191 = vmatpush1.bf16.msra.mxu0 %v3973
    %4192 = vmatprep.subr.bf16.mxu0 %v3978
    %4193 = vmatpush1.bf16.msra.mxu0 %v3977
    %4194 = vmatprep.subr.bf16.mxu0 %v3982
    %4195 = vmatpush1.bf16.msra.mxu0 %v3981
    %4196 = vmatprep.subr.bf16.mxu0 %v3986
    %4197 = vmatpush1.bf16.msra.mxu0 %v3985
    %4198 = vmatprep.subr.bf16.mxu0 %v3990
    %4199 = vmatpush1.bf16.msra.mxu0 %v3989
    %4200 = vmatprep.subr.bf16.mxu0 %v3994
    %4201 = vmatpush1.bf16.msra.mxu0 %v3993
    %4202 = vmatprep.subr.bf16.mxu0 %v3998
    %4203 = vmatpush1.bf16.msra.mxu0 %v3997
    %4204 = vmatprep.mubr.bf16.mxu0 %v2364
    %4205 = vmatmul.mubr.bf16.gmra.mrb[0].mxu0 %v2363
    %v4206 = vpop.f32.mrb[0].mxu0
    %v4207 = vadd.f32 %v4164, %v4206
    %v4208 = vpop.f32.mrb[0].mxu0
    %v4209 = vadd.f32 %v4166, %v4208
    %v4210 = vpop.f32.mrb[0].mxu0
    %v4211 = vadd.f32 %v4168, %v4210
    %v4212 = vpop.f32.mrb[0].mxu0
    %v4213 = vadd.f32 %v4170, %v4212
    %4214 = vdwg.mxu0
    %4215 = vmatprep.subr.bf16.mxu0 %v3876
    %4216 = vmatpush1.bf16.msra.mxu0 %v3875
    %4217 = vmatprep.subr.bf16.mxu0 %v3880
    %4218 = vmatpush1.bf16.msra.mxu0 %v3879
    %4219 = vmatprep.subr.bf16.mxu0 %v3884
    %4220 = vmatpush1.bf16.msra.mxu0 %v3883
    %4221 = vmatprep.subr.bf16.mxu0 %v3888
    %4222 = vmatpush1.bf16.msra.mxu0 %v3887
    %4223 = vmatprep.subr.bf16.mxu0 %v3892
    %4224 = vmatpush1.bf16.msra.mxu0 %v3891
    %4225 = vmatprep.subr.bf16.mxu0 %v3896
    %4226 = vmatpush1.bf16.msra.mxu0 %v3895
    %4227 = vmatprep.subr.bf16.mxu0 %v3900
    %4228 = vmatpush1.bf16.msra.mxu0 %v3899
    %4229 = vmatprep.subr.bf16.mxu0 %v3904
    %4230 = vmatpush1.bf16.msra.mxu0 %v3903
    %4231 = vmatprep.subr.bf16.mxu0 %v3908
    %4232 = vmatpush1.bf16.msra.mxu0 %v3907
    %4233 = vmatprep.subr.bf16.mxu0 %v3912
    %4234 = vmatpush1.bf16.msra.mxu0 %v3911
    %4235 = vmatprep.subr.bf16.mxu0 %v3916
    %4236 = vmatpush1.bf16.msra.mxu0 %v3915
    %4237 = vmatprep.subr.bf16.mxu0 %v3920
    %4238 = vmatpush1.bf16.msra.mxu0 %v3919
    %4239 = vmatprep.subr.bf16.mxu0 %v3924
    %4240 = vmatpush1.bf16.msra.mxu0 %v3923
    %4241 = vmatprep.subr.bf16.mxu0 %v3928
    %4242 = vmatpush1.bf16.msra.mxu0 %v3927
    %4243 = vmatprep.subr.bf16.mxu0 %v3932
    %4244 = vmatpush1.bf16.msra.mxu0 %v3931
    %4245 = vmatprep.subr.bf16.mxu0 %v3936
    %4246 = vmatpush1.bf16.msra.mxu0 %v3935
    %4247 = vmatprep.mubr.bf16.mxu0 %v2362
    %4248 = vmatmul.mubr.bf16.gmra.mrb[0].mxu0 %v2361
    %v4249 = vpop.f32.mrb[0].mxu0
    %v4250 = vadd.f32 %v3480, %v4249
    %v4251 = vpop.f32.mrb[0].mxu0
    %v4252 = vadd.f32 %v3484, %v4251
    %v4253 = vpop.f32.mrb[0].mxu0
    %v4254 = vadd.f32 %v3480, %v4253
    %v4255 = vpop.f32.mrb[0].mxu0
    %v4256 = vadd.f32 %v3484, %v4255
    %4257 = vdwg.mxu0
    %4258 = vmatprep.subr.bf16.mxu0 %v3940
    %4259 = vmatpush1.bf16.msra.mxu0 %v3939
    %4260 = vmatprep.subr.bf16.mxu0 %v3944
    %4261 = vmatpush1.bf16.msra.mxu0 %v3943
    %4262 = vmatprep.subr.bf16.mxu0 %v3948
    %4263 = vmatpush1.bf16.msra.mxu0 %v3947
    %4264 = vmatprep.subr.bf16.mxu0 %v3952
    %4265 = vmatpush1.bf16.msra.mxu0 %v3951
    %4266 = vmatprep.subr.bf16.mxu0 %v3956
    %4267 = vmatpush1.bf16.msra.mxu0 %v3955
    %4268 = vmatprep.subr.bf16.mxu0 %v3960
    %4269 = vmatpush1.bf16.msra.mxu0 %v3959
    %4270 = vmatprep.subr.bf16.mxu0 %v3964
    %4271 = vmatpush1.bf16.msra.mxu0 %v3963
    %4272 = vmatprep.subr.bf16.mxu0 %v3968
    %4273 = vmatpush1.bf16.msra.mxu0 %v3967
    %4274 = vmatprep.subr.bf16.mxu0 %v3972
    %4275 = vmatpush1.bf16.msra.mxu0 %v3971
    %4276 = vmatprep.subr.bf16.mxu0 %v3976
    %4277 = vmatpush1.bf16.msra.mxu0 %v3975
    %4278 = vmatprep.subr.bf16.mxu0 %v3980
    %4279 = vmatpush1.bf16.msra.mxu0 %v3979
    %4280 = vmatprep.subr.bf16.mxu0 %v3984
    %4281 = vmatpush1.bf16.msra.mxu0 %v3983
    %4282 = vmatprep.subr.bf16.mxu0 %v3988
    %4283 = vmatpush1.bf16.msra.mxu0 %v3987
    %4284 = vmatprep.subr.bf16.mxu0 %v3992
    %4285 = vmatpush1.bf16.msra.mxu0 %v3991
    %4286 = vmatprep.subr.bf16.mxu0 %v3996
    %4287 = vmatpush1.bf16.msra.mxu0 %v3995
    %4288 = vmatprep.subr.bf16.mxu0 %v4000
    %4289 = vmatpush1.bf16.msra.mxu0 %v3999
    %4290 = vmatprep.mubr.bf16.mxu0 %v2364
    %4291 = vmatmul.mubr.bf16.gmra.mrb[0].mxu0 %v2363
    %v4292 = vpop.f32.mrb[0].mxu0
    %v4293 = vadd.f32 %v4250, %v4292
    %v4294 = vpop.f32.mrb[0].mxu0
    %v4295 = vadd.f32 %v4252, %v4294
    %v4296 = vpop.f32.mrb[0].mxu0
    %v4297 = vadd.f32 %v4254, %v4296
    %v4298 = vpop.f32.mrb[0].mxu0
    %v4299 = vadd.f32 %v4256, %v4298
    %4300 = vdwg.mxu0
    %v4301 = vmax.f32 %v4207, 0.0
    %v4302 = vmax.f32 %v4209, 0.0
    %v4303 = vmax.f32 %v4293, 0.0
    %v4304 = vmax.f32 %v4295, 0.0
    %v4305 = vmax.f32 %v4211, 0.0
    %v4306 = vmax.f32 %v4213, 0.0
    %v4307 = vmax.f32 %v4297, 0.0
    %v4308 = vmax.f32 %v4299, 0.0
    %v4309 = vpack.c.bf16 %v4305, %v4301
    %v4310 = vpack.c.bf16 %v4306, %v4302
    %v4311 = vpack.c.bf16 %v4307, %v4303
    %v4312 = vpack.c.bf16 %v4308, %v4304
    %v4313 = vld [vmem:[#allocation9] sm:$0xf]
    %v4314 = vld [vmem:[#allocation9 + $0x4] sm:$0xf]
    %v4315 = vld [vmem:[#allocation9 + $0x8] sm:$0xf]
    %v4316 = vld [vmem:[#allocation9 + $0xc] sm:$0xf]
    %v4317 = vld [vmem:[#allocation9 + $0x10] sm:$0xf]
    %v4318 = vld [vmem:[#allocation9 + $0x14] sm:$0xf]
    %v4319 = vld [vmem:[#allocation9 + $0x18] sm:$0xf]
    %v4320 = vld [vmem:[#allocation9 + $0x1c] sm:$0xf]
    %v4321 = vld [vmem:[#allocation9 + $0x20] sm:$0xf]
    %v4322 = vld [vmem:[#allocation9 + $0x24] sm:$0xf]
    %v4323 = vld [vmem:[#allocation9 + $0x28] sm:$0xf]
    %v4324 = vld [vmem:[#allocation9 + $0x2c] sm:$0xf]
    %v4325 = vld [vmem:[#allocation9 + $0x30] sm:$0xf]
    %v4326 = vld [vmem:[#allocation9 + $0x34] sm:$0xf]
    %v4327 = vld [vmem:[#allocation9 + $0x38] sm:$0xf]
    %v4328 = vld [vmem:[#allocation9 + $0x3c] sm:$0xf]
    %v4329 = vld [vmem:[#allocation9 + $0x40] sm:$0xf]
    %v4330 = vld [vmem:[#allocation9 + $0x44] sm:$0xf]
    %v4331 = vld [vmem:[#allocation9 + $0x48] sm:$0xf]
    %v4332 = vld [vmem:[#allocation9 + $0x4c] sm:$0xf]
    %v4333 = vld [vmem:[#allocation9 + $0x50] sm:$0xf]
    %v4334 = vld [vmem:[#allocation9 + $0x54] sm:$0xf]
    %v4335 = vld [vmem:[#allocation9 + $0x58] sm:$0xf]
    %v4336 = vld [vmem:[#allocation9 + $0x5c] sm:$0xf]
    %v4337 = vld [vmem:[#allocation9 + $0x60] sm:$0xf]
    %v4338 = vld [vmem:[#allocation9 + $0x64] sm:$0xf]
    %v4339 = vld [vmem:[#allocation9 + $0x68] sm:$0xf]
    %v4340 = vld [vmem:[#allocation9 + $0x6c] sm:$0xf]
    %v4341 = vld [vmem:[#allocation9 + $0x70] sm:$0xf]
    %v4342 = vld [vmem:[#allocation9 + $0x74] sm:$0xf]
    %v4343 = vld [vmem:[#allocation9 + $0x78] sm:$0xf]
    %v4344 = vld [vmem:[#allocation9 + $0x7c] sm:$0xf]
    %v4345 = vld [vmem:[#allocation9 + $0x80] sm:$0xf]
    %v4346 = vld [vmem:[#allocation9 + $0x84] sm:$0xf]
    %v4347 = vld [vmem:[#allocation9 + $0x88] sm:$0xf]
    %v4348 = vld [vmem:[#allocation9 + $0x8c] sm:$0xf]
    %v4349 = vld [vmem:[#allocation9 + $0x90] sm:$0xf]
    %v4350 = vld [vmem:[#allocation9 + $0x94] sm:$0xf]
    %v4351 = vld [vmem:[#allocation9 + $0x98] sm:$0xf]
    %v4352 = vld [vmem:[#allocation9 + $0x9c] sm:$0xf]
    %v4353 = vld [vmem:[#allocation9 + $0xa0] sm:$0xf]
    %v4354 = vld [vmem:[#allocation9 + $0xa4] sm:$0xf]
    %v4355 = vld [vmem:[#allocation9 + $0xa8] sm:$0xf]
    %v4356 = vld [vmem:[#allocation9 + $0xac] sm:$0xf]
    %v4357 = vld [vmem:[#allocation9 + $0xb0] sm:$0xf]
    %v4358 = vld [vmem:[#allocation9 + $0xb4] sm:$0xf]
    %v4359 = vld [vmem:[#allocation9 + $0xb8] sm:$0xf]
    %v4360 = vld [vmem:[#allocation9 + $0xbc] sm:$0xf]
    %v4361 = vld [vmem:[#allocation9 + $0xc0] sm:$0xf]
    %v4362 = vld [vmem:[#allocation9 + $0xc4] sm:$0xf]
    %v4363 = vld [vmem:[#allocation9 + $0xc8] sm:$0xf]
    %v4364 = vld [vmem:[#allocation9 + $0xcc] sm:$0xf]
    %v4365 = vld [vmem:[#allocation9 + $0xd0] sm:$0xf]
    %v4366 = vld [vmem:[#allocation9 + $0xd4] sm:$0xf]
    %v4367 = vld [vmem:[#allocation9 + $0xd8] sm:$0xf]
    %v4368 = vld [vmem:[#allocation9 + $0xdc] sm:$0xf]
    %v4369 = vld [vmem:[#allocation9 + $0xe0] sm:$0xf]
    %v4370 = vld [vmem:[#allocation9 + $0xe4] sm:$0xf]
    %v4371 = vld [vmem:[#allocation9 + $0xe8] sm:$0xf]
    %v4372 = vld [vmem:[#allocation9 + $0xec] sm:$0xf]
    %v4373 = vld [vmem:[#allocation9 + $0xf0] sm:$0xf]
    %v4374 = vld [vmem:[#allocation9 + $0xf4] sm:$0xf]
    %v4375 = vld [vmem:[#allocation9 + $0xf8] sm:$0xf]
    %v4376 = vld [vmem:[#allocation9 + $0xfc] sm:$0xf]
    %v4377 = vld [vmem:[#allocation9 + $0x100] sm:$0xf]
    %v4378 = vld [vmem:[#allocation9 + $0x104] sm:$0xf]
    %v4379 = vld [vmem:[#allocation9 + $0x108] sm:$0xf]
    %v4380 = vld [vmem:[#allocation9 + $0x10c] sm:$0xf]
    %v4381 = vld [vmem:[#allocation9 + $0x110] sm:$0xf]
    %v4382 = vld [vmem:[#allocation9 + $0x114] sm:$0xf]
    %v4383 = vld [vmem:[#allocation9 + $0x118] sm:$0xf]
    %v4384 = vld [vmem:[#allocation9 + $0x11c] sm:$0xf]
    %v4385 = vld [vmem:[#allocation9 + $0x120] sm:$0xf]
    %v4386 = vld [vmem:[#allocation9 + $0x124] sm:$0xf]
    %v4387 = vld [vmem:[#allocation9 + $0x128] sm:$0xf]
    %v4388 = vld [vmem:[#allocation9 + $0x12c] sm:$0xf]
    %v4389 = vld [vmem:[#allocation9 + $0x130] sm:$0xf]
    %v4390 = vld [vmem:[#allocation9 + $0x134] sm:$0xf]
    %v4391 = vld [vmem:[#allocation9 + $0x138] sm:$0xf]
    %v4392 = vld [vmem:[#allocation9 + $0x13c] sm:$0xf]
    %v4393 = vld [vmem:[#allocation9 + $0x140] sm:$0xf]
    %v4394 = vld [vmem:[#allocation9 + $0x144] sm:$0xf]
    %v4395 = vld [vmem:[#allocation9 + $0x148] sm:$0xf]
    %v4396 = vld [vmem:[#allocation9 + $0x14c] sm:$0xf]
    %v4397 = vld [vmem:[#allocation9 + $0x150] sm:$0xf]
    %v4398 = vld [vmem:[#allocation9 + $0x154] sm:$0xf]
    %v4399 = vld [vmem:[#allocation9 + $0x158] sm:$0xf]
    %v4400 = vld [vmem:[#allocation9 + $0x15c] sm:$0xf]
    %v4401 = vld [vmem:[#allocation9 + $0x160] sm:$0xf]
    %v4402 = vld [vmem:[#allocation9 + $0x164] sm:$0xf]
    %v4403 = vld [vmem:[#allocation9 + $0x168] sm:$0xf]
    %v4404 = vld [vmem:[#allocation9 + $0x16c] sm:$0xf]
    %v4405 = vld [vmem:[#allocation9 + $0x170] sm:$0xf]
    %v4406 = vld [vmem:[#allocation9 + $0x174] sm:$0xf]
    %v4407 = vld [vmem:[#allocation9 + $0x178] sm:$0xf]
    %v4408 = vld [vmem:[#allocation9 + $0x17c] sm:$0xf]
    %v4409 = vld [vmem:[#allocation9 + $0x180] sm:$0xf]
    %v4410 = vld [vmem:[#allocation9 + $0x184] sm:$0xf]
    %v4411 = vld [vmem:[#allocation9 + $0x188] sm:$0xf]
    %v4412 = vld [vmem:[#allocation9 + $0x18c] sm:$0xf]
    %v4413 = vld [vmem:[#allocation9 + $0x190] sm:$0xf]
    %v4414 = vld [vmem:[#allocation9 + $0x194] sm:$0xf]
    %v4415 = vld [vmem:[#allocation9 + $0x198] sm:$0xf]
    %v4416 = vld [vmem:[#allocation9 + $0x19c] sm:$0xf]
    %v4417 = vld [vmem:[#allocation9 + $0x1a0] sm:$0xf]
    %v4418 = vld [vmem:[#allocation9 + $0x1a4] sm:$0xf]
    %v4419 = vld [vmem:[#allocation9 + $0x1a8] sm:$0xf]
    %v4420 = vld [vmem:[#allocation9 + $0x1ac] sm:$0xf]
    %v4421 = vld [vmem:[#allocation9 + $0x1b0] sm:$0xf]
    %v4422 = vld [vmem:[#allocation9 + $0x1b4] sm:$0xf]
    %v4423 = vld [vmem:[#allocation9 + $0x1b8] sm:$0xf]
    %v4424 = vld [vmem:[#allocation9 + $0x1bc] sm:$0xf]
    %v4425 = vld [vmem:[#allocation9 + $0x1c0] sm:$0xf]
    %v4426 = vld [vmem:[#allocation9 + $0x1c4] sm:$0xf]
    %v4427 = vld [vmem:[#allocation9 + $0x1c8] sm:$0xf]
    %v4428 = vld [vmem:[#allocation9 + $0x1cc] sm:$0xf]
    %v4429 = vld [vmem:[#allocation9 + $0x1d0] sm:$0xf]
    %v4430 = vld [vmem:[#allocation9 + $0x1d4] sm:$0xf]
    %v4431 = vld [vmem:[#allocation9 + $0x1d8] sm:$0xf]
    %v4432 = vld [vmem:[#allocation9 + $0x1dc] sm:$0xf]
    %v4433 = vld [vmem:[#allocation9 + $0x1e0] sm:$0xf]
    %v4434 = vld [vmem:[#allocation9 + $0x1e4] sm:$0xf]
    %v4435 = vld [vmem:[#allocation9 + $0x1e8] sm:$0xf]
    %v4436 = vld [vmem:[#allocation9 + $0x1ec] sm:$0xf]
    %v4437 = vld [vmem:[#allocation9 + $0x1f0] sm:$0xf]
    %v4438 = vld [vmem:[#allocation9 + $0x1f4] sm:$0xf]
    %v4439 = vld [vmem:[#allocation9 + $0x1f8] sm:$0xf]
    %v4440 = vld [vmem:[#allocation9 + $0x1fc] sm:$0xf]
    %v4441 = vld [vmem:[%s10] sm:$0x1]
    %v4443 = vlaneseq
    %v4444 = vshrl.u32 %v4443, 7
    %v4445 = vsub.s32 0, %v4444
    %v4446 = vrot.slane %v4441, %v4445
    %v4576 = vunpack.c.l.b16 %v4313
    %v4577 = vunpack.c.l.b16 %v4314
    %v4578 = vunpack.c.l.b16 %v4315
    %v4579 = vunpack.c.l.b16 %v4316
    %v4580 = vunpack.c.l.b16 %v4317
    %v4581 = vunpack.c.l.b16 %v4318
    %v4582 = vunpack.c.l.b16 %v4319
    %v4583 = vunpack.c.l.b16 %v4320
    %v4584 = vunpack.c.l.b16 %v4321
    %v4585 = vunpack.c.l.b16 %v4322
    %v4586 = vunpack.c.l.b16 %v4323
    %v4587 = vunpack.c.l.b16 %v4324
    %v4588 = vunpack.c.l.b16 %v4325
    %v4589 = vunpack.c.l.b16 %v4326
    %v4590 = vunpack.c.l.b16 %v4327
    %v4591 = vunpack.c.l.b16 %v4328
    %v4592 = vunpack.c.l.b16 %v4329
    %v4593 = vunpack.c.l.b16 %v4330
    %v4594 = vunpack.c.l.b16 %v4331
    %v4595 = vunpack.c.l.b16 %v4332
    %v4596 = vunpack.c.l.b16 %v4333
    %v4597 = vunpack.c.l.b16 %v4334
    %v4598 = vunpack.c.l.b16 %v4335
    %v4599 = vunpack.c.l.b16 %v4336
    %v4600 = vunpack.c.l.b16 %v4337
    %v4601 = vunpack.c.l.b16 %v4338
    %v4602 = vunpack.c.l.b16 %v4339
    %v4603 = vunpack.c.l.b16 %v4340
    %v4604 = vunpack.c.l.b16 %v4341
    %v4605 = vunpack.c.l.b16 %v4342
    %v4606 = vunpack.c.l.b16 %v4343
    %v4607 = vunpack.c.l.b16 %v4344
    %v4608 = vunpack.c.l.b16 %v4345
    %v4609 = vunpack.c.l.b16 %v4346
    %v4610 = vunpack.c.l.b16 %v4347
    %v4611 = vunpack.c.l.b16 %v4348
    %v4612 = vunpack.c.l.b16 %v4349
    %v4613 = vunpack.c.l.b16 %v4350
    %v4614 = vunpack.c.l.b16 %v4351
    %v4615 = vunpack.c.l.b16 %v4352
    %v4616 = vunpack.c.l.b16 %v4353
    %v4617 = vunpack.c.l.b16 %v4354
    %v4618 = vunpack.c.l.b16 %v4355
    %v4619 = vunpack.c.l.b16 %v4356
    %v4620 = vunpack.c.l.b16 %v4357
    %v4621 = vunpack.c.l.b16 %v4358
    %v4622 = vunpack.c.l.b16 %v4359
    %v4623 = vunpack.c.l.b16 %v4360
    %v4624 = vunpack.c.l.b16 %v4361
    %v4625 = vunpack.c.l.b16 %v4362
    %v4626 = vunpack.c.l.b16 %v4363
    %v4627 = vunpack.c.l.b16 %v4364
    %v4628 = vunpack.c.l.b16 %v4365
    %v4629 = vunpack.c.l.b16 %v4366
    %v4630 = vunpack.c.l.b16 %v4367
    %v4631 = vunpack.c.l.b16 %v4368
    %v4632 = vunpack.c.l.b16 %v4369
    %v4633 = vunpack.c.l.b16 %v4370
    %v4634 = vunpack.c.l.b16 %v4371
    %v4635 = vunpack.c.l.b16 %v4372
    %v4636 = vunpack.c.l.b16 %v4373
    %v4637 = vunpack.c.l.b16 %v4374
    %v4638 = vunpack.c.l.b16 %v4375
    %v4639 = vunpack.c.l.b16 %v4376
    %v4640 = vunpack.c.l.b16 %v4377
    %v4641 = vunpack.c.l.b16 %v4378
    %v4642 = vunpack.c.l.b16 %v4379
    %v4643 = vunpack.c.l.b16 %v4380
    %v4644 = vunpack.c.l.b16 %v4381
    %v4645 = vunpack.c.l.b16 %v4382
    %v4646 = vunpack.c.l.b16 %v4383
    %v4647 = vunpack.c.l.b16 %v4384
    %v4648 = vunpack.c.l.b16 %v4385
    %v4649 = vunpack.c.l.b16 %v4386
    %v4650 = vunpack.c.l.b16 %v4387
    %v4651 = vunpack.c.l.b16 %v4388
    %v4652 = vunpack.c.l.b16 %v4389
    %v4653 = vunpack.c.l.b16 %v4390
    %v4654 = vunpack.c.l.b16 %v4391
    %v4655 = vunpack.c.l.b16 %v4392
    %v4656 = vunpack.c.l.b16 %v4393
    %v4657 = vunpack.c.l.b16 %v4394
    %v4658 = vunpack.c.l.b16 %v4395
    %v4659 = vunpack.c.l.b16 %v4396
    %v4660 = vunpack.c.l.b16 %v4397
    %v4661 = vunpack.c.l.b16 %v4398
    %v4662 = vunpack.c.l.b16 %v4399
    %v4663 = vunpack.c.l.b16 %v4400
    %v4664 = vunpack.c.l.b16 %v4401
    %v4665 = vunpack.c.l.b16 %v4402
    %v4666 = vunpack.c.l.b16 %v4403
    %v4667 = vunpack.c.l.b16 %v4404
    %v4668 = vunpack.c.l.b16 %v4405
    %v4669 = vunpack.c.l.b16 %v4406
    %v4670 = vunpack.c.l.b16 %v4407
    %v4671 = vunpack.c.l.b16 %v4408
    %v4672 = vunpack.c.l.b16 %v4409
    %v4673 = vunpack.c.l.b16 %v4410
    %v4674 = vunpack.c.l.b16 %v4411
    %v4675 = vunpack.c.l.b16 %v4412
    %v4676 = vunpack.c.l.b16 %v4413
    %v4677 = vunpack.c.l.b16 %v4414
    %v4678 = vunpack.c.l.b16 %v4415
    %v4679 = vunpack.c.l.b16 %v4416
    %v4680 = vunpack.c.l.b16 %v4417
    %v4681 = vunpack.c.l.b16 %v4418
    %v4682 = vunpack.c.l.b16 %v4419
    %v4683 = vunpack.c.l.b16 %v4420
    %v4684 = vunpack.c.l.b16 %v4421
    %v4685 = vunpack.c.l.b16 %v4422
    %v4686 = vunpack.c.l.b16 %v4423
    %v4687 = vunpack.c.l.b16 %v4424
    %v4688 = vunpack.c.l.b16 %v4425
    %v4689 = vunpack.c.l.b16 %v4426
    %v4690 = vunpack.c.l.b16 %v4427
    %v4691 = vunpack.c.l.b16 %v4428
    %v4692 = vunpack.c.l.b16 %v4429
    %v4693 = vunpack.c.l.b16 %v4430
    %v4694 = vunpack.c.l.b16 %v4431
    %v4695 = vunpack.c.l.b16 %v4432
    %v4696 = vunpack.c.l.b16 %v4433
    %v4697 = vunpack.c.l.b16 %v4434
    %v4698 = vunpack.c.l.b16 %v4435
    %v4699 = vunpack.c.l.b16 %v4436
    %v4700 = vunpack.c.l.b16 %v4437
    %v4701 = vunpack.c.l.b16 %v4438
    %v4702 = vunpack.c.l.b16 %v4439
    %v4703 = vunpack.c.l.b16 %v4440
    %v4704 = vpack.c.b16 %v4577, %v4576
    %v4705 = vpack.c.b16 %v4579, %v4578
    %v4706 = vpack.c.b16 %v4581, %v4580
    %v4707 = vpack.c.b16 %v4583, %v4582
    %v4708 = vpack.c.b16 %v4585, %v4584
    %v4709 = vpack.c.b16 %v4587, %v4586
    %v4710 = vpack.c.b16 %v4589, %v4588
    %v4711 = vpack.c.b16 %v4591, %v4590
    %v4712 = vpack.c.b16 %v4593, %v4592
    %v4713 = vpack.c.b16 %v4595, %v4594
    %v4714 = vpack.c.b16 %v4597, %v4596
    %v4715 = vpack.c.b16 %v4599, %v4598
    %v4716 = vpack.c.b16 %v4601, %v4600
    %v4717 = vpack.c.b16 %v4603, %v4602
    %v4718 = vpack.c.b16 %v4605, %v4604
    %v4719 = vpack.c.b16 %v4607, %v4606
    %v4720 = vpack.c.b16 %v4609, %v4608
    %v4721 = vpack.c.b16 %v4611, %v4610
    %v4722 = vpack.c.b16 %v4613, %v4612
    %v4723 = vpack.c.b16 %v4615, %v4614
    %v4724 = vpack.c.b16 %v4617, %v4616
    %v4725 = vpack.c.b16 %v4619, %v4618
    %v4726 = vpack.c.b16 %v4621, %v4620
    %v4727 = vpack.c.b16 %v4623, %v4622
    %v4728 = vpack.c.b16 %v4625, %v4624
    %v4729 = vpack.c.b16 %v4627, %v4626
    %v4730 = vpack.c.b16 %v4629, %v4628
    %v4731 = vpack.c.b16 %v4631, %v4630
    %v4732 = vpack.c.b16 %v4633, %v4632
    %v4733 = vpack.c.b16 %v4635, %v4634
    %v4734 = vpack.c.b16 %v4637, %v4636
    %v4735 = vpack.c.b16 %v4639, %v4638
    %v4736 = vpack.c.b16 %v4641, %v4640
    %v4737 = vpack.c.b16 %v4643, %v4642
    %v4738 = vpack.c.b16 %v4645, %v4644
    %v4739 = vpack.c.b16 %v4647, %v4646
    %v4740 = vpack.c.b16 %v4649, %v4648
    %v4741 = vpack.c.b16 %v4651, %v4650
    %v4742 = vpack.c.b16 %v4653, %v4652
    %v4743 = vpack.c.b16 %v4655, %v4654
    %v4744 = vpack.c.b16 %v4657, %v4656
    %v4745 = vpack.c.b16 %v4659, %v4658
    %v4746 = vpack.c.b16 %v4661, %v4660
    %v4747 = vpack.c.b16 %v4663, %v4662
    %v4748 = vpack.c.b16 %v4665, %v4664
    %v4749 = vpack.c.b16 %v4667, %v4666
    %v4750 = vpack.c.b16 %v4669, %v4668
    %v4751 = vpack.c.b16 %v4671, %v4670
    %v4752 = vpack.c.b16 %v4673, %v4672
    %v4753 = vpack.c.b16 %v4675, %v4674
    %v4754 = vpack.c.b16 %v4677, %v4676
    %v4755 = vpack.c.b16 %v4679, %v4678
    %v4756 = vpack.c.b16 %v4681, %v4680
    %v4757 = vpack.c.b16 %v4683, %v4682
    %v4758 = vpack.c.b16 %v4685, %v4684
    %v4759 = vpack.c.b16 %v4687, %v4686
    %v4760 = vpack.c.b16 %v4689, %v4688
    %v4761 = vpack.c.b16 %v4691, %v4690
    %v4762 = vpack.c.b16 %v4693, %v4692
    %v4763 = vpack.c.b16 %v4695, %v4694
    %v4764 = vpack.c.b16 %v4697, %v4696
    %v4765 = vpack.c.b16 %v4699, %v4698
    %v4766 = vpack.c.b16 %v4701, %v4700
    %v4767 = vpack.c.b16 %v4703, %v4702
    %4832 = vmatprep.subr.bf16.mxu0 0
    %4833 = vmatpush1.bf16.msra.mxu0 %v4704
    %4834 = vmatprep.subr.bf16.mxu0 0
    %4835 = vmatpush1.bf16.msra.mxu0 %v4705
    %4836 = vmatprep.subr.bf16.mxu0 0
    %4837 = vmatpush1.bf16.msra.mxu0 %v4706
    %4838 = vmatprep.subr.bf16.mxu0 0
    %4839 = vmatpush1.bf16.msra.mxu0 %v4707
    %4840 = vmatprep.subr.bf16.mxu0 0
    %4841 = vmatpush1.bf16.msra.mxu0 %v4708
    %4842 = vmatprep.subr.bf16.mxu0 0
    %4843 = vmatpush1.bf16.msra.mxu0 %v4709
    %4844 = vmatprep.subr.bf16.mxu0 0
    %4845 = vmatpush1.bf16.msra.mxu0 %v4710
    %4846 = vmatprep.subr.bf16.mxu0 0
    %4847 = vmatpush1.bf16.msra.mxu0 %v4711
    %4848 = vmatprep.subr.bf16.mxu0 0
    %4849 = vmatpush1.bf16.msra.mxu0 %v4712
    %4850 = vmatprep.subr.bf16.mxu0 0
    %4851 = vmatpush1.bf16.msra.mxu0 %v4713
    %4852 = vmatprep.subr.bf16.mxu0 0
    %4853 = vmatpush1.bf16.msra.mxu0 %v4714
    %4854 = vmatprep.subr.bf16.mxu0 0
    %4855 = vmatpush1.bf16.msra.mxu0 %v4715
    %4856 = vmatprep.subr.bf16.mxu0 0
    %4857 = vmatpush1.bf16.msra.mxu0 %v4716
    %4858 = vmatprep.subr.bf16.mxu0 0
    %4859 = vmatpush1.bf16.msra.mxu0 %v4717
    %4860 = vmatprep.subr.bf16.mxu0 0
    %4861 = vmatpush1.bf16.msra.mxu0 %v4718
    %4862 = vmatprep.subr.bf16.mxu0 0
    %4863 = vmatpush1.bf16.msra.mxu0 %v4719
    %4864 = vmatprep.mubr.bf16.mxu0 %v3336
    %4865 = vmatmul.mubr.bf16.gmra.mrb[0].mxu0 %v3335
    %v4866 = vpop.f32.mrb[0].mxu0
    %v4867 = vadd.f32 %v4446, %v4866
    %v4868 = vpop.f32.mrb[0].mxu0
    %v4869 = vpop.f32.mrb[0].mxu0
    %v4870 = vadd.f32 %v4446, %v4869
    %v4871 = vpop.f32.mrb[0].mxu0
    %4872 = vdwg.mxu0
    %4873 = vmatprep.subr.bf16.mxu0 0
    %4874 = vmatpush1.bf16.msra.mxu0 %v4720
    %4875 = vmatprep.subr.bf16.mxu0 0
    %4876 = vmatpush1.bf16.msra.mxu0 %v4721
    %4877 = vmatprep.subr.bf16.mxu0 0
    %4878 = vmatpush1.bf16.msra.mxu0 %v4722
    %4879 = vmatprep.subr.bf16.mxu0 0
    %4880 = vmatpush1.bf16.msra.mxu0 %v4723
    %4881 = vmatprep.subr.bf16.mxu0 0
    %4882 = vmatpush1.bf16.msra.mxu0 %v4724
    %4883 = vmatprep.subr.bf16.mxu0 0
    %4884 = vmatpush1.bf16.msra.mxu0 %v4725
    %4885 = vmatprep.subr.bf16.mxu0 0
    %4886 = vmatpush1.bf16.msra.mxu0 %v4726
    %4887 = vmatprep.subr.bf16.mxu0 0
    %4888 = vmatpush1.bf16.msra.mxu0 %v4727
    %4889 = vmatprep.subr.bf16.mxu0 0
    %4890 = vmatpush1.bf16.msra.mxu0 %v4728
    %4891 = vmatprep.subr.bf16.mxu0 0
    %4892 = vmatpush1.bf16.msra.mxu0 %v4729
    %4893 = vmatprep.subr.bf16.mxu0 0
    %4894 = vmatpush1.bf16.msra.mxu0 %v4730
    %4895 = vmatprep.subr.bf16.mxu0 0
    %4896 = vmatpush1.bf16.msra.mxu0 %v4731
    %4897 = vmatprep.subr.bf16.mxu0 0
    %4898 = vmatpush1.bf16.msra.mxu0 %v4732
    %4899 = vmatprep.subr.bf16.mxu0 0
    %4900 = vmatpush1.bf16.msra.mxu0 %v4733
    %4901 = vmatprep.subr.bf16.mxu0 0
    %4902 = vmatpush1.bf16.msra.mxu0 %v4734
    %4903 = vmatprep.subr.bf16.mxu0 0
    %4904 = vmatpush1.bf16.msra.mxu0 %v4735
    %4905 = vmatprep.mubr.bf16.mxu0 %v3338
    %4906 = vmatmul.mubr.bf16.gmra.mrb[0].mxu0 %v3337
    %v4907 = vpop.f32.mrb[0].mxu0
    %v4908 = vadd.f32 %v4867, %v4907
    %v4909 = vpop.f32.mrb[0].mxu0
    %v4910 = vpop.f32.mrb[0].mxu0
    %v4911 = vadd.f32 %v4870, %v4910
    %v4912 = vpop.f32.mrb[0].mxu0
    %4913 = vdwg.mxu0
    %4914 = vmatprep.subr.bf16.mxu0 0
    %4915 = vmatpush1.bf16.msra.mxu0 %v4736
    %4916 = vmatprep.subr.bf16.mxu0 0
    %4917 = vmatpush1.bf16.msra.mxu0 %v4737
    %4918 = vmatprep.subr.bf16.mxu0 0
    %4919 = vmatpush1.bf16.msra.mxu0 %v4738
    %4920 = vmatprep.subr.bf16.mxu0 0
    %4921 = vmatpush1.bf16.msra.mxu0 %v4739
    %4922 = vmatprep.subr.bf16.mxu0 0
    %4923 = vmatpush1.bf16.msra.mxu0 %v4740
    %4924 = vmatprep.subr.bf16.mxu0 0
    %4925 = vmatpush1.bf16.msra.mxu0 %v4741
    %4926 = vmatprep.subr.bf16.mxu0 0
    %4927 = vmatpush1.bf16.msra.mxu0 %v4742
    %4928 = vmatprep.subr.bf16.mxu0 0
    %4929 = vmatpush1.bf16.msra.mxu0 %v4743
    %4930 = vmatprep.subr.bf16.mxu0 0
    %4931 = vmatpush1.bf16.msra.mxu0 %v4744
    %4932 = vmatprep.subr.bf16.mxu0 0
    %4933 = vmatpush1.bf16.msra.mxu0 %v4745
    %4934 = vmatprep.subr.bf16.mxu0 0
    %4935 = vmatpush1.bf16.msra.mxu0 %v4746
    %4936 = vmatprep.subr.bf16.mxu0 0
    %4937 = vmatpush1.bf16.msra.mxu0 %v4747
    %4938 = vmatprep.subr.bf16.mxu0 0
    %4939 = vmatpush1.bf16.msra.mxu0 %v4748
    %4940 = vmatprep.subr.bf16.mxu0 0
    %4941 = vmatpush1.bf16.msra.mxu0 %v4749
    %4942 = vmatprep.subr.bf16.mxu0 0
    %4943 = vmatpush1.bf16.msra.mxu0 %v4750
    %4944 = vmatprep.subr.bf16.mxu0 0
    %4945 = vmatpush1.bf16.msra.mxu0 %v4751
    %4946 = vmatprep.mubr.bf16.mxu0 %v4310
    %4947 = vmatmul.mubr.bf16.gmra.mrb[0].mxu0 %v4309
    %v4948 = vpop.f32.mrb[0].mxu0
    %v4949 = vadd.f32 %v4908, %v4948
    %v4950 = vpop.f32.mrb[0].mxu0
    %v4951 = vpop.f32.mrb[0].mxu0
    %v4952 = vadd.f32 %v4911, %v4951
    %v4953 = vpop.f32.mrb[0].mxu0
    %4954 = vdwg.mxu0
    %4955 = vmatprep.subr.bf16.mxu0 0
    %4956 = vmatpush1.bf16.msra.mxu0 %v4752
    %4957 = vmatprep.subr.bf16.mxu0 0
    %4958 = vmatpush1.bf16.msra.mxu0 %v4753
    %4959 = vmatprep.subr.bf16.mxu0 0
    %4960 = vmatpush1.bf16.msra.mxu0 %v4754
    %4961 = vmatprep.subr.bf16.mxu0 0
    %4962 = vmatpush1.bf16.msra.mxu0 %v4755
    %4963 = vmatprep.subr.bf16.mxu0 0
    %4964 = vmatpush1.bf16.msra.mxu0 %v4756
    %4965 = vmatprep.subr.bf16.mxu0 0
    %4966 = vmatpush1.bf16.msra.mxu0 %v4757
    %4967 = vmatprep.subr.bf16.mxu0 0
    %4968 = vmatpush1.bf16.msra.mxu0 %v4758
    %4969 = vmatprep.subr.bf16.mxu0 0
    %4970 = vmatpush1.bf16.msra.mxu0 %v4759
    %4971 = vmatprep.subr.bf16.mxu0 0
    %4972 = vmatpush1.bf16.msra.mxu0 %v4760
    %4973 = vmatprep.subr.bf16.mxu0 0
    %4974 = vmatpush1.bf16.msra.mxu0 %v4761
    %4975 = vmatprep.subr.bf16.mxu0 0
    %4976 = vmatpush1.bf16.msra.mxu0 %v4762
    %4977 = vmatprep.subr.bf16.mxu0 0
    %4978 = vmatpush1.bf16.msra.mxu0 %v4763
    %4979 = vmatprep.subr.bf16.mxu0 0
    %4980 = vmatpush1.bf16.msra.mxu0 %v4764
    %4981 = vmatprep.subr.bf16.mxu0 0
    %4982 = vmatpush1.bf16.msra.mxu0 %v4765
    %4983 = vmatprep.subr.bf16.mxu0 0
    %4984 = vmatpush1.bf16.msra.mxu0 %v4766
    %4985 = vmatprep.subr.bf16.mxu0 0
    %4986 = vmatpush1.bf16.msra.mxu0 %v4767
    %4987 = vmatprep.mubr.bf16.mxu0 %v4312
    %4988 = vmatmul.mubr.bf16.gmra.mrb[0].mxu0 %v4311
    %v4989 = vpop.f32.mrb[0].mxu0
    %v4990 = vadd.f32 %v4949, %v4989
    %v4991 = vpop.f32.mrb[0].mxu0
    %v4992 = vpop.f32.mrb[0].mxu0
    %v4993 = vadd.f32 %v4952, %v4992
    %v4994 = vpop.f32.mrb[0].mxu0
    %4995 = vdwg.mxu0
    %v4996 = vlaneseq
    %v4997 = vand.u32 %v4996, 127
    %vm4998 = vcmp.lt.s32.totalorder %v4997, 4
    %v4999 = vxor.u32 %v4990, 2147483648
    %v5000 = vxor.u32 %v4993, 2147483648
    %v5001 = vmul.f32 %v4999, 1.442695
    %v5002 = vpow.pop %v5001
    %v5003 = vmul.f32 %v5000, 1.442695
    %v5004 = vpow.pop %v5003
    %v5005 = vadd.f32 %v5002, 1.0
    %v5006 = vadd.f32 %v5004, 1.0
    %v5007 = vrcp.pop %v5005
    %v5008 = vmul.f32 1.0, %v5007
    %v5009 = vrcp.pop %v5006
    %v5010 = vmul.f32 1.0, %v5009
    %v5011 = vsel %vm4998, %v5008, %v4990
    %v5012 = vsel %vm4998, %v5010, %v4993
    %5013 = vst [vmem:[%s11] sm:$0xff] %v5011
    %5014 = vst [vmem:[%s11 + $0x8] sm:$0xff] %v5012
    // Predicated region
    $region66: #{model_forward.1} parent=1 // pred_check
      _
    $region67: #{model_forward.1} parent=1 // pred_check_branch
      %5016 = sbr.rel (0) target = $region69
    $region68: #{model_forward.1} parent=1 // pred_region
      _
    $region69: #{model_forward.1} parent=1 // pred_fallthru
      _
    // Predicated region
    $region70: #{model_forward.1} parent=1 // pred_check
      _
    $region71: #{model_forward.1} parent=1 // pred_check_branch
      %5018 = sbr.rel (0) target = $region73
    $region72: #{model_forward.1} parent=1 // pred_region
      _
    $region73: #{model_forward.1} parent=1 // pred_fallthru
      _
    %5019 = vsyncpa [#allocation3], 1
    %5020 = vsyncpa [#allocation5], 1
    %5021 = vsyncpa [#allocation8], 1

</llo_original>
